<compile_context>
chip_gen: v7x
topology: tpu7x:2x2x1
jax: 0.10.0
libtpu: 0.0.40
codegen_flags: <defaults>
</compile_context>

<pallas_src>
import math

import jax
import jax.numpy as jnp
from jax import lax
from jax.experimental import pallas as pl
from jax.experimental.pallas import tpu as pltpu

# ----------------------------- configuration --------------------------------
N_VOCAB = 40
OUT_CH = 16          # out_channels
HIDDEN = 32          # hidden_channels
FFN = 64             # hidden_channels_ffn
NUM_HEADS = 2
NUM_LAYERS = 2
KERNEL = 3           # FFN conv kernel size
WINDOW = 4           # rel_attn_window_size
B = 2
T = 16
T_LOG2 = 4
DK = HIDDEN // NUM_HEADS
NREL = 2 * WINDOW + 1          # number of non-zero relative positions (9)
CW = NREL * T                  # width of the "replicated" skew workspace (144)
EPS = 1e-5
PAD_L = (KERNEL - 1) // 2
PAD_R = KERNEL // 2

assert T == (1 << T_LOG2)


# ----------------------------- helpers (glue) --------------------------------
def get_rel_emb(emb_rel):
    """torch _get_relative_embeddings for static length T. emb_rel: (1, 2w+1, DK)."""
    pad_len = max(T - (WINDOW + 1), 0)
    start = max((WINDOW + 1) - T, 0)
    padded = jnp.pad(emb_rel, ((0, 0), (pad_len, pad_len), (0, 0)))
    return padded[:, start:start + 2 * T - 1]      # (1, 2T-1, DK)


# ----------------------------- Pallas kernel ---------------------------------
def _layer_norm(x, gamma, beta):
    mu = jnp.mean(x, axis=-1, keepdims=True)
    var = jnp.mean((x - mu) ** 2, axis=-1, keepdims=True)
    return (x - mu) * lax.rsqrt(var + EPS) * gamma + beta


def text_encoder_kernel(lens_ref, x_ref,
                        wqkvl_ref, bqkvl_ref, wo_ref, bo_ref, relv_ref, ln_ref,
                        w1_ref, b1_ref, w2_ref, b2_ref, wp_ref, bp_ref,
                        out_ref):
    blen = lens_ref[pl.program_id(0)]
    x = x_ref[0]                                           # (T, H) scaled embedding

    # ---- masks built in-kernel from the prefetched length ----
    t_col = lax.broadcasted_iota(jnp.int32, (T, 1), 0)
    t_row = lax.broadcasted_iota(jnp.int32, (1, T), 1)
    mask = (t_col < blen).astype(jnp.float32)              # (T, 1)
    attn_mask = mask * (t_row < blen).astype(jnp.float32)  # (T, T)

    # ---- constant selection matrices for the relative-position skews ----
    # column ordering c = o * T + t   (o = window offset index, t = position)
    c_i = lax.broadcasted_iota(jnp.int32, (T, CW), 0)
    c_c = lax.broadcasted_iota(jnp.int32, (T, CW), 1)
    c_t = jnp.bitwise_and(c_c, T - 1)                      # c % T
    c_o = jnp.right_shift(c_c, T_LOG2)                     # c // T
    diag_sel = (c_i == c_t).astype(jnp.float32)            # (T, CW)  row == t
    skew_v_mask = ((c_t - c_i) == (c_o - WINDOW)).astype(jnp.float32)   # (T, CW)

    r_o = lax.broadcasted_iota(jnp.int32, (NREL, CW), 0)
    r_c = lax.broadcasted_iota(jnp.int32, (NREL, CW), 1)
    rep_q = (r_o == jnp.right_shift(r_c, T_LOG2)).astype(jnp.float32)   # (NREL, CW)

    g_c = lax.broadcasted_iota(jnp.int32, (CW, T), 0)
    g_j = lax.broadcasted_iota(jnp.int32, (CW, T), 1)
    gather_q = (g_j == (jnp.bitwise_and(g_c, T - 1)
                        + jnp.right_shift(g_c, T_LOG2) - WINDOW)
                ).astype(jnp.float32)                      # (CW, T)

    neg = jnp.float32(-1e4)

    for li in range(NUM_LAYERS):
        xm = x * mask

        # ---- fused Q | K | V | rel-K-logit projection: one (T,H)@(H,114) ----
        proj = (jnp.dot(xm, wqkvl_ref[li], preferred_element_type=jnp.float32)
                + bqkvl_ref[li])                           # (T, 3H + nH*NREL)

        heads = []
        for h in range(NUM_HEADS):
            qh = proj[:, h * DK:(h + 1) * DK]                              # pre-scaled q
            kh = proj[:, HIDDEN + h * DK:HIDDEN + (h + 1) * DK]
            vh = proj[:, 2 * HIDDEN + h * DK:2 * HIDDEN + (h + 1) * DK]
            lh = proj[:, 3 * HIDDEN + h * NREL:3 * HIDDEN + (h + 1) * NREL]  # (T, 9)

            scores = lax.dot_general(qh, kh, (((1,), (1,)), ((), ())),
                                     preferred_element_type=jnp.float32)  # (T, T)
            # relative-key skew: replicate L along columns, mask to the
            # diagonal block-structure, gather back to absolute positions.
            l_rep = jnp.dot(lh, rep_q, preferred_element_type=jnp.float32)   # (T, CW)
            scores = scores + jnp.dot(l_rep * diag_sel, gather_q,
                                      preferred_element_type=jnp.float32)
            scores = jnp.where(attn_mask > 0.0, scores, neg)

            e = jnp.exp(scores - jnp.max(scores, axis=-1, keepdims=True))
            p = e * pl.reciprocal(jnp.sum(e, axis=-1, keepdims=True), approx=True)

            # relative-value skew: replicate p, mask to the window diagonals,
            # then one (T,CW)@(CW,DK) matmul against the replicated rel-V table.
            p_rep = jnp.dot(p, diag_sel, preferred_element_type=jnp.float32)  # (T, CW)
            out_h = (jnp.dot(p, vh, preferred_element_type=jnp.float32)
                     + jnp.dot(p_rep * skew_v_mask, relv_ref[li],
                               preferred_element_type=jnp.float32))           # (T, DK)
            heads.append(out_h)

        att = jnp.concatenate(heads, axis=1)                                   # (T, H)
        y = jnp.dot(att, wo_ref[li], preferred_element_type=jnp.float32) + bo_ref[li]
        x = _layer_norm(xm + y, ln_ref[li, 0], ln_ref[li, 1])

        # ---- FFN: two same-padded 1-D convs, 3 taps folded into one matmul ----
        xm2 = x * mask
        zpad = jnp.zeros((8, HIDDEN), jnp.float32)
        xpad = jnp.concatenate([zpad, xm2, zpad], axis=0)          # (T + 16, H)
        xcat = jnp.concatenate([xpad[7:7 + T], xm2, xpad[9:9 + T]], axis=1)   # (T, 3H)
        h1 = jnp.maximum(
            jnp.dot(xcat, w1_ref[li], preferred_element_type=jnp.float32)
            + b1_ref[li], 0.0) * mask                              # (T, F)
        zpadf = jnp.zeros((8, FFN), jnp.float32)
        hpad = jnp.concatenate([zpadf, h1, zpadf], axis=0)         # (T + 16, F)
        hcat = jnp.concatenate([hpad[7:7 + T], h1, hpad[9:9 + T]], axis=1)    # (T, 3F)
        y2 = (jnp.dot(hcat, w2_ref[li], preferred_element_type=jnp.float32)
              + b2_ref[li]) * mask
        x = _layer_norm(x + y2, ln_ref[li, 2], ln_ref[li, 3])

    # ---- final fused m|logs projection, single lane-dense output ----
    x = x * mask
    stats = (jnp.dot(x, wp_ref[...], preferred_element_type=jnp.float32)
             + bp_ref[...]) * mask                                 # (T, 2*OUT)
    out_ref[0] = jnp.concatenate([x, stats], axis=1)               # (T, H + 2*OUT)


# ------------------------------- wrapper -------------------------------------
_PARAM_ORDER = ["w_qkvl", "b_qkvl", "w_o", "b_o", "relv_rep", "ln",
                "w1", "b1", "w2", "b2", "wp", "bp"]


def _const_spec(shape):
    n = len(shape)
    return pl.BlockSpec(shape, lambda b, lens, n=n: (0,) * n)


def text_encoder_forward(tokens, x_lengths, params):
    # embedding lookup + sqrt(H) scaling (glue; gather stays in plain JAX)
    x_emb = jnp.take(params["emb"], tokens, axis=0) * math.sqrt(HIDDEN)   # (B, T, H)
    param_args = [params[k] for k in _PARAM_ORDER]

    in_specs = [pl.BlockSpec((1, T, HIDDEN), lambda b, lens: (b, 0, 0))]
    in_specs += [_const_spec(p.shape) for p in param_args]
    out_w = HIDDEN + 2 * OUT_CH

    out = pl.pallas_call(
        text_encoder_kernel,
        out_shape=jax.ShapeDtypeStruct((B, T, out_w), jnp.float32),
        grid_spec=pltpu.PrefetchScalarGridSpec(
            num_scalar_prefetch=1,
            grid=(B,),
            in_specs=in_specs,
            out_specs=pl.BlockSpec((1, T, out_w), lambda b, lens: (b, 0, 0)),
        ),
        compiler_params=pltpu.CompilerParams(dimension_semantics=("parallel",)),
    )(x_lengths.astype(jnp.int32), x_emb, *param_args)

    x_btc = out[..., :HIDDEN]
    m_btc = out[..., HIDDEN:HIDDEN + OUT_CH]
    logs_btc = out[..., HIDDEN + OUT_CH:]
    seq_mask = (jnp.arange(T)[None, :] < x_lengths[:, None]).astype(jnp.float32)
    x_mask = seq_mask[:, None, :]
    # back to PyTorch conventions: x,m,logs -> [B, C, T], x_mask -> [B, 1, T]
    return (jnp.transpose(x_btc, (0, 2, 1)), jnp.transpose(m_btc, (0, 2, 1)),
            jnp.transpose(logs_btc, (0, 2, 1)), x_mask)


# ----------------------- deterministic parameter init ------------------------
def init_raw_params(key):
    keys = iter(jax.random.split(key, 64))

    def nrm(shape, scale):
        return jax.random.normal(next(keys), shape, jnp.float32) * scale

    raw = {}
    emb = nrm((N_VOCAB, HIDDEN), HIDDEN ** -0.5)
    raw["emb"] = emb.at[0].set(0.0)           # padding_idx = 0
    rel_std = DK ** -0.5
    layers = []
    for _ in range(NUM_LAYERS):
        layers.append({
            "wq": nrm((HIDDEN, HIDDEN, 1), HIDDEN ** -0.5),
            "bq": nrm((HIDDEN,), 0.02),
            "wk": nrm((HIDDEN, HIDDEN, 1), HIDDEN ** -0.5),
            "bk": nrm((HIDDEN,), 0.02),
            "wv": nrm((HIDDEN, HIDDEN, 1), HIDDEN ** -0.5),
            "bv": nrm((HIDDEN,), 0.02),
            "wo": nrm((HIDDEN, HIDDEN, 1), HIDDEN ** -0.5),
            "bo": nrm((HIDDEN,), 0.02),
            "emb_rel_k": nrm((1, 2 * WINDOW + 1, DK), rel_std),
            "emb_rel_v": nrm((1, 2 * WINDOW + 1, DK), rel_std),
            "g1": jnp.ones((HIDDEN,), jnp.float32),
            "be1": jnp.zeros((HIDDEN,), jnp.float32),
            "w1": nrm((FFN, HIDDEN, KERNEL), (HIDDEN * KERNEL) ** -0.5),
            "b1": nrm((FFN,), 0.02),
            "w2": nrm((HIDDEN, FFN, KERNEL), (FFN * KERNEL) ** -0.5),
            "b2": nrm((HIDDEN,), 0.02),
            "g2": jnp.ones((HIDDEN,), jnp.float32),
            "be2": jnp.zeros((HIDDEN,), jnp.float32),
        })
    raw["layers"] = layers
    raw["wp"] = nrm((2 * OUT_CH, HIDDEN, 1), HIDDEN ** -0.5)
    raw["bp"] = nrm((2 * OUT_CH,), 0.02)
    return raw


def derive_kernel_params(raw):
    """Pack/fuse torch-layout weights into the kernel's VMEM slabs."""
    inv = 1.0 / math.sqrt(DK)
    per = {k: [] for k in ["w_qkvl", "b_qkvl", "w_o", "b_o", "relv_rep", "ln",
                           "w1", "b1", "w2", "b2"]}
    for lp in raw["layers"]:
        wq = lp["wq"][:, :, 0].T * inv     # (H, H) with 1/sqrt(dk) folded in
        bq = lp["bq"] * inv
        wk = lp["wk"][:, :, 0].T
        bk = lp["bk"]
        wv = lp["wv"][:, :, 0].T
        bv = lp["bv"]
        relk_win = get_rel_emb(lp["emb_rel_k"])[0][T - 1 - WINDOW:T + WINDOW]   # (9, DK)
        relv_win = get_rel_emb(lp["emb_rel_v"])[0][T - 1 - WINDOW:T + WINDOW]   # (9, DK)

        wl_cols, bl_cols = [], []
        for h in range(NUM_HEADS):
            sl = slice(h * DK, (h + 1) * DK)
            wl_cols.append(wq[:, sl] @ relk_win.T)      # (H, 9): q' . relk columns
            bl_cols.append(bq[sl] @ relk_win.T)         # (9,)

        per["w_qkvl"].append(jnp.concatenate([wq, wk, wv] + wl_cols, axis=1))    # (H, 114)
        per["b_qkvl"].append(jnp.concatenate([bq, bk, bv] + bl_cols)[None, :])   # (1, 114)
        per["w_o"].append(lp["wo"][:, :, 0].T)                                   # (H, H)
        per["b_o"].append(lp["bo"][None, :])                                     # (1, H)
        per["relv_rep"].append(jnp.repeat(relv_win, T, axis=0))                  # (9T, DK)
        per["ln"].append(jnp.stack([lp["g1"], lp["be1"],
                                    lp["g2"], lp["be2"]])[:, None, :])           # (4, 1, H)
        per["w1"].append(jnp.transpose(lp["w1"], (2, 1, 0)).reshape(KERNEL * HIDDEN, FFN))
        per["b1"].append(lp["b1"][None, :])
        per["w2"].append(jnp.transpose(lp["w2"], (2, 1, 0)).reshape(KERNEL * FFN, HIDDEN))
        per["b2"].append(lp["b2"][None, :])

    p = {k: jnp.stack(v, axis=0) for k, v in per.items()}
    p["emb"] = raw["emb"]
    p["wp"] = raw["wp"][:, :, 0].T        # (H, 2*OUT): [m | logs] columns
    p["bp"] = raw["bp"][None, :]          # (1, 2*OUT)
    return p


# -------------------- pure-JAX reference (torch translation) -----------------
def ref_forward(tokens, x_lengths, raw):
    x = jnp.take(raw["emb"], tokens, axis=0) * math.sqrt(HIDDEN)     # (B, T, H)
    x = jnp.transpose(x, (0, 2, 1))                                   # (B, H, T)
    x_mask = (jnp.arange(T)[None, :] < x_lengths[:, None]).astype(jnp.float32)[:, None, :]
    attn_mask = x_mask[:, :, None, :] * x_mask[:, :, :, None]         # (B, 1, T, T)

    def conv1x1(z, w, b):
        return jnp.einsum("oc,bct->bot", w[:, :, 0], z) + b[None, :, None]

    def layernorm2(z, g, be):
        zt = jnp.transpose(z, (0, 2, 1))
        mu = zt.mean(-1, keepdims=True)
        var = ((zt - mu) ** 2).mean(-1, keepdims=True)
        y = (zt - mu) / jnp.sqrt(var + EPS) * g + be
        return jnp.transpose(y, (0, 2, 1))

    def rel_to_abs(xr):
        b, h, t, _ = xr.shape
        xr = jnp.pad(xr, ((0, 0), (0, 0), (0, 0), (0, 1)))
        xf = xr.reshape(b, h, t * 2 * t)
        xf = jnp.pad(xf, ((0, 0), (0, 0), (0, t - 1)))
        return xf.reshape(b, h, t + 1, 2 * t - 1)[:, :, :t, t - 1:]

    def abs_to_rel(xa):
        b, h, t, _ = xa.shape
        xa = jnp.pad(xa, ((0, 0), (0, 0), (0, 0), (0, t - 1)))
        xf = xa.reshape(b, h, t * t + t * (t - 1))
        xf = jnp.pad(xf, ((0, 0), (0, 0), (t, 0)))
        return xf.reshape(b, h, t, 2 * t)[:, :, :, 1:]

    for l in range(NUM_LAYERS):
        lp = raw["layers"][l]
        xc = x * x_mask
        q = conv1x1(xc, lp["wq"], lp["bq"])
        k = conv1x1(xc, lp["wk"], lp["bk"])
        v = conv1x1(xc, lp["wv"], lp["bv"])

        def split_heads(z):
            return jnp.transpose(z.reshape(B, NUM_HEADS, DK, T), (0, 1, 3, 2))

        qh, kh, vh = split_heads(q), split_heads(k), split_heads(v)
        scores = jnp.einsum("bhtd,bhsd->bhts", qh / math.sqrt(DK), kh)
        relk = get_rel_emb(lp["emb_rel_k"])[0]
        rel_logits = jnp.einsum("bhtd,vd->bhtv", qh / math.sqrt(DK), relk)
        scores = scores + rel_to_abs(rel_logits)
        scores = jnp.where(attn_mask == 0, -1e4, scores)
        p = jax.nn.softmax(scores, axis=-1)
        out = jnp.einsum("bhts,bhsd->bhtd", p, vh)
        relv = get_rel_emb(lp["emb_rel_v"])[0]
        out = out + jnp.einsum("bhtv,vd->bhtd", abs_to_rel(p), relv)
        out = jnp.transpose(out, (0, 1, 3, 2)).reshape(B, HIDDEN, T)
        y = conv1x1(out, lp["wo"], lp["bo"])
        x = layernorm2(xc + y, lp["g1"], lp["be1"])

        xm = x * x_mask
        xp = jnp.pad(xm, ((0, 0), (0, 0), (PAD_L, PAD_R)))
        h1 = lax.conv_general_dilated(xp, lp["w1"], (1,), "VALID",
                                      dimension_numbers=("NCH", "OIH", "NCH"))
        h1 = jnp.maximum(h1 + lp["b1"][None, :, None], 0.0)
        h1 = h1 * x_mask
        h1p = jnp.pad(h1, ((0, 0), (0, 0), (PAD_L, PAD_R)))
        y2 = lax.conv_general_dilated(h1p, lp["w2"], (1,), "VALID",
                                      dimension_numbers=("NCH", "OIH", "NCH"))
        y2 = (y2 + lp["b2"][None, :, None]) * x_mask
        x = layernorm2(x + y2, lp["g2"], lp["be2"])

    x = x * x_mask
    stats = conv1x1(x, raw["wp"], raw["bp"]) * x_mask
    return x, stats[:, :OUT_CH], stats[:, OUT_CH:], x_mask


# --------------------------------- main ---------------------------------------
if __name__ == "__main__":
    key = jax.random.PRNGKey(0)
    kp, kt = jax.random.split(key)
    raw = init_raw_params(kp)
    kparams = derive_kernel_params(raw)

    tokens = jax.random.randint(kt, (B, T), 1, N_VOCAB, dtype=jnp.int32)
    x_lengths = jnp.array([T, 11], dtype=jnp.int32)

    x_out, m_out, logs_out, x_mask = text_encoder_forward(tokens, x_lengths, kparams)
    jax.block_until_ready((x_out, m_out, logs_out, x_mask))

    # reference at float32 matmul precision; the kernel's matmuls run at the
    # MXU's native single-pass bf16 precision (f32 accumulate), hence 3e-2 tol.
    with jax.default_matmul_precision("float32"):
        xr, mr, lr, maskr = ref_forward(tokens, x_lengths, raw)
        jax.block_until_ready((xr, mr, lr, maskr))

    for got, ref, name in ((x_out, xr, "x"), (m_out, mr, "m"),
                           (logs_out, lr, "logs"), (x_mask, maskr, "x_mask")):
        if not bool(jnp.allclose(got, ref, atol=3e-2, rtol=3e-2)):
            raise AssertionError(f"mismatch in {name}")

    print("KERNEL_OK")
</pallas_src>

<mosaic_0001>
module attributes {stable_mosaic.version = 11 : i64} {
  func.func @text_encoder_kernel(%arg0: i32, %arg1: memref<2xi32, #tpu.memory_space<smem>>, %arg2: memref<1x16x32xf32, #tpu.memory_space<vmem>>, %arg3: memref<2x32x114xf32, #tpu.memory_space<vmem>>, %arg4: memref<2x1x114xf32, #tpu.memory_space<vmem>>, %arg5: memref<2x32x32xf32, #tpu.memory_space<vmem>>, %arg6: memref<2x1x32xf32, #tpu.memory_space<vmem>>, %arg7: memref<2x144x16xf32, #tpu.memory_space<vmem>>, %arg8: memref<2x4x1x32xf32, #tpu.memory_space<vmem>>, %arg9: memref<2x96x64xf32, #tpu.memory_space<vmem>>, %arg10: memref<2x1x64xf32, #tpu.memory_space<vmem>>, %arg11: memref<2x192x32xf32, #tpu.memory_space<vmem>>, %arg12: memref<2x1x32xf32, #tpu.memory_space<vmem>>, %arg13: memref<32x32xf32, #tpu.memory_space<vmem>>, %arg14: memref<1x32xf32, #tpu.memory_space<vmem>>, %arg15: memref<1x16x64xf32, #tpu.memory_space<vmem>>) attributes {dimension_semantics = [#tpu.dimension_semantics<parallel>], iteration_bounds = array<i64: 2>, scalar_prefetch = 1 : i64, scratch_operands = 0 : i64, tpu.core_type = #tpu.core_type<tc>, window_params = [{transform_indices = @transform_0, window_bounds = array<i64: 1, 16, 32>}, {pipeline_mode = #tpu.pipeline_mode<synchronous>, transform_indices = @transform_1, window_bounds = array<i64: 2, 32, 114>}, {pipeline_mode = #tpu.pipeline_mode<synchronous>, transform_indices = @transform_2, window_bounds = array<i64: 2, 1, 114>}, {pipeline_mode = #tpu.pipeline_mode<synchronous>, transform_indices = @transform_3, window_bounds = array<i64: 2, 32, 32>}, {pipeline_mode = #tpu.pipeline_mode<synchronous>, transform_indices = @transform_4, window_bounds = array<i64: 2, 1, 32>}, {pipeline_mode = #tpu.pipeline_mode<synchronous>, transform_indices = @transform_5, window_bounds = array<i64: 2, 144, 16>}, {pipeline_mode = #tpu.pipeline_mode<synchronous>, transform_indices = @transform_6, window_bounds = array<i64: 2, 4, 1, 32>}, {pipeline_mode = #tpu.pipeline_mode<synchronous>, transform_indices = @transform_7, window_bounds = array<i64: 2, 96, 64>}, {pipeline_mode = #tpu.pipeline_mode<synchronous>, transform_indices = @transform_8, window_bounds = array<i64: 2, 1, 64>}, {pipeline_mode = #tpu.pipeline_mode<synchronous>, transform_indices = @transform_9, window_bounds = array<i64: 2, 192, 32>}, {pipeline_mode = #tpu.pipeline_mode<synchronous>, transform_indices = @transform_10, window_bounds = array<i64: 2, 1, 32>}, {pipeline_mode = #tpu.pipeline_mode<synchronous>, transform_indices = @transform_11, window_bounds = array<i64: 32, 32>}, {pipeline_mode = #tpu.pipeline_mode<synchronous>, transform_indices = @transform_12, window_bounds = array<i64: 1, 32>}, {transform_indices = @transform_13, window_bounds = array<i64: 1, 16, 64>}]} {
    %0 = arith.index_cast %arg0 : i32 to index
    %1 = memref.load %arg1[%0] : memref<2xi32, #tpu.memory_space<smem>>
    %c0 = arith.constant 0 : index
    %c0_0 = arith.constant 0 : index
    %c0_1 = arith.constant 0 : index
    %2 = vector.load %arg2[%c0, %c0_0, %c0_1] : memref<1x16x32xf32, #tpu.memory_space<vmem>>, vector<1x16x32xf32>
    %3 = vector.shape_cast %2 : vector<1x16x32xf32> to vector<16x32xf32>
    %4 = tpu.iota {dimensions = array<i32: 0>} : vector<16x1xi32>
    %5 = tpu.iota {dimensions = array<i32: 1>} : vector<1x16xi32>
    %6 = vector.broadcast %1 : i32 to vector<16x1xi32>
    %7 = arith.cmpi slt, %4, %6 : vector<16x1xi32>
    %8 = arith.extui %7 : vector<16x1xi1> to vector<16x1xi32>
    %9 = arith.sitofp %8 : vector<16x1xi32> to vector<16x1xf32>
    %10 = vector.broadcast %1 : i32 to vector<1x16xi32>
    %11 = arith.cmpi slt, %5, %10 : vector<1x16xi32>
    %12 = arith.extui %11 : vector<1x16xi1> to vector<1x16xi32>
    %13 = arith.sitofp %12 : vector<1x16xi32> to vector<1x16xf32>
    %14 = vector.broadcast %9 : vector<16x1xf32> to vector<16x16xf32>
    %15 = vector.broadcast %13 : vector<1x16xf32> to vector<16x16xf32>
    %16 = arith.mulf %14, %15 : vector<16x16xf32>
    %17 = tpu.iota {dimensions = array<i32: 0>} : vector<16x144xi32>
    %18 = tpu.iota {dimensions = array<i32: 1>} : vector<16x144xi32>
    %c15_i32 = arith.constant 15 : i32
    %19 = vector.broadcast %c15_i32 : i32 to vector<16x144xi32>
    %20 = arith.andi %18, %19 : vector<16x144xi32>
    %c4_i32 = arith.constant 4 : i32
    %21 = vector.broadcast %c4_i32 : i32 to vector<16x144xi32>
    %22 = arith.shrsi %18, %21 : vector<16x144xi32>
    %23 = arith.cmpi eq, %17, %20 : vector<16x144xi32>
    %24 = arith.extui %23 : vector<16x144xi1> to vector<16x144xi32>
    %25 = arith.sitofp %24 : vector<16x144xi32> to vector<16x144xf32>
    %26 = arith.subi %20, %17 : vector<16x144xi32>
    %c4_i32_2 = arith.constant 4 : i32
    %27 = vector.broadcast %c4_i32_2 : i32 to vector<16x144xi32>
    %28 = arith.subi %22, %27 : vector<16x144xi32>
    %29 = arith.cmpi eq, %26, %28 : vector<16x144xi32>
    %30 = arith.extui %29 : vector<16x144xi1> to vector<16x144xi32>
    %31 = arith.sitofp %30 : vector<16x144xi32> to vector<16x144xf32>
    %32 = tpu.iota {dimensions = array<i32: 0>} : vector<9x144xi32>
    %33 = tpu.iota {dimensions = array<i32: 1>} : vector<9x144xi32>
    %c4_i32_3 = arith.constant 4 : i32
    %34 = vector.broadcast %c4_i32_3 : i32 to vector<9x144xi32>
    %35 = arith.shrsi %33, %34 : vector<9x144xi32>
    %36 = arith.cmpi eq, %32, %35 : vector<9x144xi32>
    %37 = arith.extui %36 : vector<9x144xi1> to vector<9x144xi32>
    %38 = arith.sitofp %37 : vector<9x144xi32> to vector<9x144xf32>
    %39 = tpu.iota {dimensions = array<i32: 0>} : vector<144x16xi32>
    %40 = tpu.iota {dimensions = array<i32: 1>} : vector<144x16xi32>
    %c15_i32_4 = arith.constant 15 : i32
    %41 = vector.broadcast %c15_i32_4 : i32 to vector<144x16xi32>
    %42 = arith.andi %39, %41 : vector<144x16xi32>
    %c4_i32_5 = arith.constant 4 : i32
    %43 = vector.broadcast %c4_i32_5 : i32 to vector<144x16xi32>
    %44 = arith.shrsi %39, %43 : vector<144x16xi32>
    %45 = arith.addi %42, %44 : vector<144x16xi32>
    %c4_i32_6 = arith.constant 4 : i32
    %46 = vector.broadcast %c4_i32_6 : i32 to vector<144x16xi32>
    %47 = arith.subi %45, %46 : vector<144x16xi32>
    %48 = arith.cmpi eq, %40, %47 : vector<144x16xi32>
    %49 = arith.extui %48 : vector<144x16xi1> to vector<144x16xi32>
    %50 = arith.sitofp %49 : vector<144x16xi32> to vector<144x16xf32>
    %51 = vector.broadcast %9 : vector<16x1xf32> to vector<16x32xf32>
    %52 = arith.mulf %3, %51 : vector<16x32xf32>
    %c0_7 = arith.constant 0 : index
    %c0_8 = arith.constant 0 : index
    %c0_9 = arith.constant 0 : index
    %53 = vector.load %arg3[%c0_7, %c0_8, %c0_9] : memref<2x32x114xf32, #tpu.memory_space<vmem>>, vector<1x32x114xf32>
    %54 = vector.shape_cast %53 : vector<1x32x114xf32> to vector<32x114xf32>
    %cst = arith.constant dense<0.000000e+00> : vector<16x114xf32>
    %55 = tpu.matmul %52, %54, %cst {dimension_numbers = #tpu.dot_dimension_numbers<[1], [0], [0], [1], [0, 0, 1, 1], [], []>} : vector<16x32xf32>, vector<32x114xf32>, vector<16x114xf32> -> vector<16x114xf32>
    %c0_10 = arith.constant 0 : index
    %c0_11 = arith.constant 0 : index
    %c0_12 = arith.constant 0 : index
    %56 = vector.load %arg4[%c0_10, %c0_11, %c0_12] : memref<2x1x114xf32, #tpu.memory_space<vmem>>, vector<1x1x114xf32>
    %57 = vector.shape_cast %56 : vector<1x1x114xf32> to vector<1x114xf32>
    %58 = vector.broadcast %57 : vector<1x114xf32> to vector<16x114xf32>
    %59 = arith.addf %55, %58 : vector<16x114xf32>
    %60 = vector.extract_strided_slice %59 {offsets = [0, 0], sizes = [16, 16], strides = [1, 1]} : vector<16x114xf32> to vector<16x16xf32>
    %61 = vector.extract_strided_slice %59 {offsets = [0, 32], sizes = [16, 16], strides = [1, 1]} : vector<16x114xf32> to vector<16x16xf32>
    %62 = vector.extract_strided_slice %59 {offsets = [0, 64], sizes = [16, 16], strides = [1, 1]} : vector<16x114xf32> to vector<16x16xf32>
    %63 = vector.extract_strided_slice %59 {offsets = [0, 96], sizes = [16, 9], strides = [1, 1]} : vector<16x114xf32> to vector<16x9xf32>
    %cst_13 = arith.constant dense<0.000000e+00> : vector<16x16xf32>
    %64 = tpu.matmul %60, %61, %cst_13 {dimension_numbers = #tpu.dot_dimension_numbers<[1], [1], [0], [0], [0, 0, 1, 0], [], []>} : vector<16x16xf32>, vector<16x16xf32>, vector<16x16xf32> -> vector<16x16xf32>
    %cst_14 = arith.constant dense<0.000000e+00> : vector<16x144xf32>
    %65 = tpu.matmul %63, %38, %cst_14 {dimension_numbers = #tpu.dot_dimension_numbers<[1], [0], [0], [1], [0, 0, 1, 1], [], []>} : vector<16x9xf32>, vector<9x144xf32>, vector<16x144xf32> -> vector<16x144xf32>
    %66 = arith.mulf %65, %25 : vector<16x144xf32>
    %cst_15 = arith.constant dense<0.000000e+00> : vector<16x16xf32>
    %67 = tpu.matmul %66, %50, %cst_15 {dimension_numbers = #tpu.dot_dimension_numbers<[1], [0], [0], [1], [0, 0, 1, 1], [], []>} : vector<16x144xf32>, vector<144x16xf32>, vector<16x16xf32> -> vector<16x16xf32>
    %68 = arith.addf %64, %67 : vector<16x16xf32>
    %cst_16 = arith.constant 0.000000e+00 : f32
    %69 = vector.broadcast %cst_16 : f32 to vector<16x16xf32>
    %70 = arith.cmpf ogt, %16, %69 : vector<16x16xf32>
    %cst_17 = arith.constant -1.000000e+04 : f32
    %71 = vector.broadcast %cst_17 : f32 to vector<16x16xf32>
    %72 = arith.select %70, %68, %71 : vector<16x16xi1>, vector<16x16xf32>
    %cst_18 = arith.constant dense<0xFF800000> : vector<16xf32>
    %73 = vector.multi_reduction <maximumf>, %72, %cst_18 [1] : vector<16x16xf32> to vector<16xf32>
    %74 = vector.shape_cast %73 : vector<16xf32> to vector<16x1xf32>
    %75 = vector.broadcast %74 : vector<16x1xf32> to vector<16x16xf32>
    %76 = arith.subf %72, %75 : vector<16x16xf32>
    %77 = math.exp %76 : vector<16x16xf32>
    %cst_19 = arith.constant dense<0.000000e+00> : vector<16xf32>
    %78 = vector.multi_reduction <add>, %77, %cst_19 [1] : vector<16x16xf32> to vector<16xf32>
    %79 = vector.shape_cast %78 : vector<16xf32> to vector<16x1xf32>
    %80 = tpu.reciprocal %79 {approx = true} : vector<16x1xf32> -> vector<16x1xf32>
    %81 = vector.broadcast %80 : vector<16x1xf32> to vector<16x16xf32>
    %82 = arith.mulf %77, %81 : vector<16x16xf32>
    %cst_20 = arith.constant dense<0.000000e+00> : vector<16x144xf32>
    %83 = tpu.matmul %82, %25, %cst_20 {dimension_numbers = #tpu.dot_dimension_numbers<[1], [0], [0], [1], [0, 0, 1, 1], [], []>} : vector<16x16xf32>, vector<16x144xf32>, vector<16x144xf32> -> vector<16x144xf32>
    %cst_21 = arith.constant dense<0.000000e+00> : vector<16x16xf32>
    %84 = tpu.matmul %82, %62, %cst_21 {dimension_numbers = #tpu.dot_dimension_numbers<[1], [0], [0], [1], [0, 0, 1, 1], [], []>} : vector<16x16xf32>, vector<16x16xf32>, vector<16x16xf32> -> vector<16x16xf32>
    %85 = arith.mulf %83, %31 : vector<16x144xf32>
    %c0_22 = arith.constant 0 : index
    %c0_23 = arith.constant 0 : index
    %c0_24 = arith.constant 0 : index
    %86 = vector.load %arg7[%c0_22, %c0_23, %c0_24] : memref<2x144x16xf32, #tpu.memory_space<vmem>>, vector<1x144x16xf32>
    %87 = vector.shape_cast %86 : vector<1x144x16xf32> to vector<144x16xf32>
    %cst_25 = arith.constant dense<0.000000e+00> : vector<16x16xf32>
    %88 = tpu.matmul %85, %87, %cst_25 {dimension_numbers = #tpu.dot_dimension_numbers<[1], [0], [0], [1], [0, 0, 1, 1], [], []>} : vector<16x144xf32>, vector<144x16xf32>, vector<16x16xf32> -> vector<16x16xf32>
    %89 = arith.addf %84, %88 : vector<16x16xf32>
    %90 = vector.extract_strided_slice %59 {offsets = [0, 16], sizes = [16, 16], strides = [1, 1]} : vector<16x114xf32> to vector<16x16xf32>
    %91 = vector.extract_strided_slice %59 {offsets = [0, 48], sizes = [16, 16], strides = [1, 1]} : vector<16x114xf32> to vector<16x16xf32>
    %92 = vector.extract_strided_slice %59 {offsets = [0, 80], sizes = [16, 16], strides = [1, 1]} : vector<16x114xf32> to vector<16x16xf32>
    %93 = vector.extract_strided_slice %59 {offsets = [0, 105], sizes = [16, 9], strides = [1, 1]} : vector<16x114xf32> to vector<16x9xf32>
    %cst_26 = arith.constant dense<0.000000e+00> : vector<16x16xf32>
    %94 = tpu.matmul %90, %91, %cst_26 {dimension_numbers = #tpu.dot_dimension_numbers<[1], [1], [0], [0], [0, 0, 1, 0], [], []>} : vector<16x16xf32>, vector<16x16xf32>, vector<16x16xf32> -> vector<16x16xf32>
    %cst_27 = arith.constant dense<0.000000e+00> : vector<16x144xf32>
    %95 = tpu.matmul %93, %38, %cst_27 {dimension_numbers = #tpu.dot_dimension_numbers<[1], [0], [0], [1], [0, 0, 1, 1], [], []>} : vector<16x9xf32>, vector<9x144xf32>, vector<16x144xf32> -> vector<16x144xf32>
    %96 = arith.mulf %95, %25 : vector<16x144xf32>
    %cst_28 = arith.constant dense<0.000000e+00> : vector<16x16xf32>
    %97 = tpu.matmul %96, %50, %cst_28 {dimension_numbers = #tpu.dot_dimension_numbers<[1], [0], [0], [1], [0, 0, 1, 1], [], []>} : vector<16x144xf32>, vector<144x16xf32>, vector<16x16xf32> -> vector<16x16xf32>
    %98 = arith.addf %94, %97 : vector<16x16xf32>
    %cst_29 = arith.constant 0.000000e+00 : f32
    %99 = vector.broadcast %cst_29 : f32 to vector<16x16xf32>
    %100 = arith.cmpf ogt, %16, %99 : vector<16x16xf32>
    %cst_30 = arith.constant -1.000000e+04 : f32
    %101 = vector.broadcast %cst_30 : f32 to vector<16x16xf32>
    %102 = arith.select %100, %98, %101 : vector<16x16xi1>, vector<16x16xf32>
    %cst_31 = arith.constant dense<0xFF800000> : vector<16xf32>
    %103 = vector.multi_reduction <maximumf>, %102, %cst_31 [1] : vector<16x16xf32> to vector<16xf32>
    %104 = vector.shape_cast %103 : vector<16xf32> to vector<16x1xf32>
    %105 = vector.broadcast %104 : vector<16x1xf32> to vector<16x16xf32>
    %106 = arith.subf %102, %105 : vector<16x16xf32>
    %107 = math.exp %106 : vector<16x16xf32>
    %cst_32 = arith.constant dense<0.000000e+00> : vector<16xf32>
    %108 = vector.multi_reduction <add>, %107, %cst_32 [1] : vector<16x16xf32> to vector<16xf32>
    %109 = vector.shape_cast %108 : vector<16xf32> to vector<16x1xf32>
    %110 = tpu.reciprocal %109 {approx = true} : vector<16x1xf32> -> vector<16x1xf32>
    %111 = vector.broadcast %110 : vector<16x1xf32> to vector<16x16xf32>
    %112 = arith.mulf %107, %111 : vector<16x16xf32>
    %cst_33 = arith.constant dense<0.000000e+00> : vector<16x144xf32>
    %113 = tpu.matmul %112, %25, %cst_33 {dimension_numbers = #tpu.dot_dimension_numbers<[1], [0], [0], [1], [0, 0, 1, 1], [], []>} : vector<16x16xf32>, vector<16x144xf32>, vector<16x144xf32> -> vector<16x144xf32>
    %cst_34 = arith.constant dense<0.000000e+00> : vector<16x16xf32>
    %114 = tpu.matmul %112, %92, %cst_34 {dimension_numbers = #tpu.dot_dimension_numbers<[1], [0], [0], [1], [0, 0, 1, 1], [], []>} : vector<16x16xf32>, vector<16x16xf32>, vector<16x16xf32> -> vector<16x16xf32>
    %115 = arith.mulf %113, %31 : vector<16x144xf32>
    %c0_35 = arith.constant 0 : index
    %c0_36 = arith.constant 0 : index
    %c0_37 = arith.constant 0 : index
    %116 = vector.load %arg7[%c0_35, %c0_36, %c0_37] : memref<2x144x16xf32, #tpu.memory_space<vmem>>, vector<1x144x16xf32>
    %117 = vector.shape_cast %116 : vector<1x144x16xf32> to vector<144x16xf32>
    %cst_38 = arith.constant dense<0.000000e+00> : vector<16x16xf32>
    %118 = tpu.matmul %115, %117, %cst_38 {dimension_numbers = #tpu.dot_dimension_numbers<[1], [0], [0], [1], [0, 0, 1, 1], [], []>} : vector<16x144xf32>, vector<144x16xf32>, vector<16x16xf32> -> vector<16x16xf32>
    %119 = arith.addf %114, %118 : vector<16x16xf32>
    %120 = tpu.concatenate %89, %119 in 1 : vector<16x16xf32>, vector<16x16xf32> -> vector<16x32xf32>
    %c0_39 = arith.constant 0 : index
    %c0_40 = arith.constant 0 : index
    %c0_41 = arith.constant 0 : index
    %121 = vector.load %arg5[%c0_39, %c0_40, %c0_41] : memref<2x32x32xf32, #tpu.memory_space<vmem>>, vector<1x32x32xf32>
    %122 = vector.shape_cast %121 : vector<1x32x32xf32> to vector<32x32xf32>
    %cst_42 = arith.constant dense<0.000000e+00> : vector<16x32xf32>
    %123 = tpu.matmul %120, %122, %cst_42 {dimension_numbers = #tpu.dot_dimension_numbers<[1], [0], [0], [1], [0, 0, 1, 1], [], []>} : vector<16x32xf32>, vector<32x32xf32>, vector<16x32xf32> -> vector<16x32xf32>
    %c0_43 = arith.constant 0 : index
    %c0_44 = arith.constant 0 : index
    %c0_45 = arith.constant 0 : index
    %124 = vector.load %arg6[%c0_43, %c0_44, %c0_45] : memref<2x1x32xf32, #tpu.memory_space<vmem>>, vector<1x1x32xf32>
    %125 = vector.shape_cast %124 : vector<1x1x32xf32> to vector<1x32xf32>
    %126 = vector.broadcast %125 : vector<1x32xf32> to vector<16x32xf32>
    %127 = arith.addf %123, %126 : vector<16x32xf32>
    %128 = arith.addf %52, %127 : vector<16x32xf32>
    %c0_46 = arith.constant 0 : index
    %c0_47 = arith.constant 0 : index
    %c0_48 = arith.constant 0 : index
    %c0_49 = arith.constant 0 : index
    %129 = vector.load %arg8[%c0_46, %c0_47, %c0_48, %c0_49] : memref<2x4x1x32xf32, #tpu.memory_space<vmem>>, vector<1x1x1x32xf32>
    %130 = vector.shape_cast %129 : vector<1x1x1x32xf32> to vector<1x32xf32>
    %c0_50 = arith.constant 0 : index
    %c1 = arith.constant 1 : index
    %c0_51 = arith.constant 0 : index
    %c0_52 = arith.constant 0 : index
    %131 = vector.load %arg8[%c0_50, %c1, %c0_51, %c0_52] : memref<2x4x1x32xf32, #tpu.memory_space<vmem>>, vector<1x1x1x32xf32>
    %132 = vector.shape_cast %131 : vector<1x1x1x32xf32> to vector<1x32xf32>
    %cst_53 = arith.constant dense<0.000000e+00> : vector<16xf32>
    %133 = vector.multi_reduction <add>, %128, %cst_53 [1] : vector<16x32xf32> to vector<16xf32>
    %134 = vector.shape_cast %133 : vector<16xf32> to vector<16x1xf32>
    %cst_54 = arith.constant 3.200000e+01 : f32
    %135 = vector.broadcast %cst_54 : f32 to vector<16x1xf32>
    %136 = arith.divf %134, %135 : vector<16x1xf32>
    %137 = vector.broadcast %136 : vector<16x1xf32> to vector<16x32xf32>
    %138 = arith.subf %128, %137 : vector<16x32xf32>
    %139 = arith.mulf %138, %138 : vector<16x32xf32>
    %cst_55 = arith.constant dense<0.000000e+00> : vector<16xf32>
    %140 = vector.multi_reduction <add>, %139, %cst_55 [1] : vector<16x32xf32> to vector<16xf32>
    %141 = vector.shape_cast %140 : vector<16xf32> to vector<16x1xf32>
    %cst_56 = arith.constant 3.200000e+01 : f32
    %142 = vector.broadcast %cst_56 : f32 to vector<16x1xf32>
    %143 = arith.divf %141, %142 : vector<16x1xf32>
    %144 = vector.broadcast %136 : vector<16x1xf32> to vector<16x32xf32>
    %145 = arith.subf %128, %144 : vector<16x32xf32>
    %cst_57 = arith.constant 9.99999974E-6 : f32
    %146 = vector.broadcast %cst_57 : f32 to vector<16x1xf32>
    %147 = arith.addf %143, %146 : vector<16x1xf32>
    %148 = math.rsqrt %147 : vector<16x1xf32>
    %149 = vector.broadcast %148 : vector<16x1xf32> to vector<16x32xf32>
    %150 = arith.mulf %145, %149 : vector<16x32xf32>
    %151 = vector.broadcast %130 : vector<1x32xf32> to vector<16x32xf32>
    %152 = arith.mulf %150, %151 : vector<16x32xf32>
    %153 = vector.broadcast %132 : vector<1x32xf32> to vector<16x32xf32>
    %154 = arith.addf %152, %153 : vector<16x32xf32>
    %155 = vector.broadcast %9 : vector<16x1xf32> to vector<16x32xf32>
    %156 = arith.mulf %154, %155 : vector<16x32xf32>
    %cst_58 = arith.constant 0.000000e+00 : f32
    %157 = vector.broadcast %cst_58 : f32 to vector<8x32xf32>
    %158 = tpu.concatenate %157, %156, %157 in 0 : vector<8x32xf32>, vector<16x32xf32>, vector<8x32xf32> -> vector<32x32xf32>
    %159 = vector.extract_strided_slice %158 {offsets = [7, 0], sizes = [16, 32], strides = [1, 1]} : vector<32x32xf32> to vector<16x32xf32>
    %160 = vector.extract_strided_slice %158 {offsets = [9, 0], sizes = [16, 32], strides = [1, 1]} : vector<32x32xf32> to vector<16x32xf32>
    %161 = tpu.concatenate %159, %156, %160 in 1 : vector<16x32xf32>, vector<16x32xf32>, vector<16x32xf32> -> vector<16x96xf32>
    %c0_59 = arith.constant 0 : index
    %c0_60 = arith.constant 0 : index
    %c0_61 = arith.constant 0 : index
    %162 = vector.load %arg9[%c0_59, %c0_60, %c0_61] : memref<2x96x64xf32, #tpu.memory_space<vmem>>, vector<1x96x64xf32>
    %163 = vector.shape_cast %162 : vector<1x96x64xf32> to vector<96x64xf32>
    %cst_62 = arith.constant dense<0.000000e+00> : vector<16x64xf32>
    %164 = tpu.matmul %161, %163, %cst_62 {dimension_numbers = #tpu.dot_dimension_numbers<[1], [0], [0], [1], [0, 0, 1, 1], [], []>} : vector<16x96xf32>, vector<96x64xf32>, vector<16x64xf32> -> vector<16x64xf32>
    %c0_63 = arith.constant 0 : index
    %c0_64 = arith.constant 0 : index
    %c0_65 = arith.constant 0 : index
    %165 = vector.load %arg10[%c0_63, %c0_64, %c0_65] : memref<2x1x64xf32, #tpu.memory_space<vmem>>, vector<1x1x64xf32>
    %166 = vector.shape_cast %165 : vector<1x1x64xf32> to vector<1x64xf32>
    %167 = vector.broadcast %166 : vector<1x64xf32> to vector<16x64xf32>
    %168 = arith.addf %164, %167 : vector<16x64xf32>
    %cst_66 = arith.constant 0.000000e+00 : f32
    %169 = vector.broadcast %cst_66 : f32 to vector<16x64xf32>
    %170 = arith.maximumf %168, %169 : vector<16x64xf32>
    %171 = vector.broadcast %9 : vector<16x1xf32> to vector<16x64xf32>
    %172 = arith.mulf %170, %171 : vector<16x64xf32>
    %cst_67 = arith.constant 0.000000e+00 : f32
    %173 = vector.broadcast %cst_67 : f32 to vector<8x64xf32>
    %174 = tpu.concatenate %173, %172, %173 in 0 : vector<8x64xf32>, vector<16x64xf32>, vector<8x64xf32> -> vector<32x64xf32>
    %175 = vector.extract_strided_slice %174 {offsets = [7, 0], sizes = [16, 64], strides = [1, 1]} : vector<32x64xf32> to vector<16x64xf32>
    %176 = vector.extract_strided_slice %174 {offsets = [9, 0], sizes = [16, 64], strides = [1, 1]} : vector<32x64xf32> to vector<16x64xf32>
    %177 = tpu.concatenate %175, %172, %176 in 1 : vector<16x64xf32>, vector<16x64xf32>, vector<16x64xf32> -> vector<16x192xf32>
    %c0_68 = arith.constant 0 : index
    %c0_69 = arith.constant 0 : index
    %c0_70 = arith.constant 0 : index
    %178 = vector.load %arg11[%c0_68, %c0_69, %c0_70] : memref<2x192x32xf32, #tpu.memory_space<vmem>>, vector<1x192x32xf32>
    %179 = vector.shape_cast %178 : vector<1x192x32xf32> to vector<192x32xf32>
    %cst_71 = arith.constant dense<0.000000e+00> : vector<16x32xf32>
    %180 = tpu.matmul %177, %179, %cst_71 {dimension_numbers = #tpu.dot_dimension_numbers<[1], [0], [0], [1], [0, 0, 1, 1], [], []>} : vector<16x192xf32>, vector<192x32xf32>, vector<16x32xf32> -> vector<16x32xf32>
    %c0_72 = arith.constant 0 : index
    %c0_73 = arith.constant 0 : index
    %c0_74 = arith.constant 0 : index
    %181 = vector.load %arg12[%c0_72, %c0_73, %c0_74] : memref<2x1x32xf32, #tpu.memory_space<vmem>>, vector<1x1x32xf32>
    %182 = vector.shape_cast %181 : vector<1x1x32xf32> to vector<1x32xf32>
    %183 = vector.broadcast %182 : vector<1x32xf32> to vector<16x32xf32>
    %184 = arith.addf %180, %183 : vector<16x32xf32>
    %185 = vector.broadcast %9 : vector<16x1xf32> to vector<16x32xf32>
    %186 = arith.mulf %184, %185 : vector<16x32xf32>
    %187 = arith.addf %154, %186 : vector<16x32xf32>
    %c0_75 = arith.constant 0 : index
    %c2 = arith.constant 2 : index
    %c0_76 = arith.constant 0 : index
    %c0_77 = arith.constant 0 : index
    %188 = vector.load %arg8[%c0_75, %c2, %c0_76, %c0_77] : memref<2x4x1x32xf32, #tpu.memory_space<vmem>>, vector<1x1x1x32xf32>
    %189 = vector.shape_cast %188 : vector<1x1x1x32xf32> to vector<1x32xf32>
    %c0_78 = arith.constant 0 : index
    %c3 = arith.constant 3 : index
    %c0_79 = arith.constant 0 : index
    %c0_80 = arith.constant 0 : index
    %190 = vector.load %arg8[%c0_78, %c3, %c0_79, %c0_80] : memref<2x4x1x32xf32, #tpu.memory_space<vmem>>, vector<1x1x1x32xf32>
    %191 = vector.shape_cast %190 : vector<1x1x1x32xf32> to vector<1x32xf32>
    %cst_81 = arith.constant dense<0.000000e+00> : vector<16xf32>
    %192 = vector.multi_reduction <add>, %187, %cst_81 [1] : vector<16x32xf32> to vector<16xf32>
    %193 = vector.shape_cast %192 : vector<16xf32> to vector<16x1xf32>
    %cst_82 = arith.constant 3.200000e+01 : f32
    %194 = vector.broadcast %cst_82 : f32 to vector<16x1xf32>
    %195 = arith.divf %193, %194 : vector<16x1xf32>
    %196 = vector.broadcast %195 : vector<16x1xf32> to vector<16x32xf32>
    %197 = arith.subf %187, %196 : vector<16x32xf32>
    %198 = arith.mulf %197, %197 : vector<16x32xf32>
    %cst_83 = arith.constant dense<0.000000e+00> : vector<16xf32>
    %199 = vector.multi_reduction <add>, %198, %cst_83 [1] : vector<16x32xf32> to vector<16xf32>
    %200 = vector.shape_cast %199 : vector<16xf32> to vector<16x1xf32>
    %cst_84 = arith.constant 3.200000e+01 : f32
    %201 = vector.broadcast %cst_84 : f32 to vector<16x1xf32>
    %202 = arith.divf %200, %201 : vector<16x1xf32>
    %203 = vector.broadcast %195 : vector<16x1xf32> to vector<16x32xf32>
    %204 = arith.subf %187, %203 : vector<16x32xf32>
    %cst_85 = arith.constant 9.99999974E-6 : f32
    %205 = vector.broadcast %cst_85 : f32 to vector<16x1xf32>
    %206 = arith.addf %202, %205 : vector<16x1xf32>
    %207 = math.rsqrt %206 : vector<16x1xf32>
    %208 = vector.broadcast %207 : vector<16x1xf32> to vector<16x32xf32>
    %209 = arith.mulf %204, %208 : vector<16x32xf32>
    %210 = vector.broadcast %189 : vector<1x32xf32> to vector<16x32xf32>
    %211 = arith.mulf %209, %210 : vector<16x32xf32>
    %212 = vector.broadcast %191 : vector<1x32xf32> to vector<16x32xf32>
    %213 = arith.addf %211, %212 : vector<16x32xf32>
    %214 = vector.broadcast %9 : vector<16x1xf32> to vector<16x32xf32>
    %215 = arith.mulf %213, %214 : vector<16x32xf32>
    %c1_86 = arith.constant 1 : index
    %c0_87 = arith.constant 0 : index
    %c0_88 = arith.constant 0 : index
    %216 = vector.load %arg3[%c1_86, %c0_87, %c0_88] : memref<2x32x114xf32, #tpu.memory_space<vmem>>, vector<1x32x114xf32>
    %217 = vector.shape_cast %216 : vector<1x32x114xf32> to vector<32x114xf32>
    %cst_89 = arith.constant dense<0.000000e+00> : vector<16x114xf32>
    %218 = tpu.matmul %215, %217, %cst_89 {dimension_numbers = #tpu.dot_dimension_numbers<[1], [0], [0], [1], [0, 0, 1, 1], [], []>} : vector<16x32xf32>, vector<32x114xf32>, vector<16x114xf32> -> vector<16x114xf32>
    %c1_90 = arith.constant 1 : index
    %c0_91 = arith.constant 0 : index
    %c0_92 = arith.constant 0 : index
    %219 = vector.load %arg4[%c1_90, %c0_91, %c0_92] : memref<2x1x114xf32, #tpu.memory_space<vmem>>, vector<1x1x114xf32>
    %220 = vector.shape_cast %219 : vector<1x1x114xf32> to vector<1x114xf32>
    %221 = vector.broadcast %220 : vector<1x114xf32> to vector<16x114xf32>
    %222 = arith.addf %218, %221 : vector<16x114xf32>
    %223 = vector.extract_strided_slice %222 {offsets = [0, 0], sizes = [16, 16], strides = [1, 1]} : vector<16x114xf32> to vector<16x16xf32>
    %224 = vector.extract_strided_slice %222 {offsets = [0, 32], sizes = [16, 16], strides = [1, 1]} : vector<16x114xf32> to vector<16x16xf32>
    %225 = vector.extract_strided_slice %222 {offsets = [0, 64], sizes = [16, 16], strides = [1, 1]} : vector<16x114xf32> to vector<16x16xf32>
    %226 = vector.extract_strided_slice %222 {offsets = [0, 96], sizes = [16, 9], strides = [1, 1]} : vector<16x114xf32> to vector<16x9xf32>
    %cst_93 = arith.constant dense<0.000000e+00> : vector<16x16xf32>
    %227 = tpu.matmul %223, %224, %cst_93 {dimension_numbers = #tpu.dot_dimension_numbers<[1], [1], [0], [0], [0, 0, 1, 0], [], []>} : vector<16x16xf32>, vector<16x16xf32>, vector<16x16xf32> -> vector<16x16xf32>
    %cst_94 = arith.constant dense<0.000000e+00> : vector<16x144xf32>
    %228 = tpu.matmul %226, %38, %cst_94 {dimension_numbers = #tpu.dot_dimension_numbers<[1], [0], [0], [1], [0, 0, 1, 1], [], []>} : vector<16x9xf32>, vector<9x144xf32>, vector<16x144xf32> -> vector<16x144xf32>
    %229 = arith.mulf %228, %25 : vector<16x144xf32>
    %cst_95 = arith.constant dense<0.000000e+00> : vector<16x16xf32>
    %230 = tpu.matmul %229, %50, %cst_95 {dimension_numbers = #tpu.dot_dimension_numbers<[1], [0], [0], [1], [0, 0, 1, 1], [], []>} : vector<16x144xf32>, vector<144x16xf32>, vector<16x16xf32> -> vector<16x16xf32>
    %231 = arith.addf %227, %230 : vector<16x16xf32>
    %cst_96 = arith.constant 0.000000e+00 : f32
    %232 = vector.broadcast %cst_96 : f32 to vector<16x16xf32>
    %233 = arith.cmpf ogt, %16, %232 : vector<16x16xf32>
    %cst_97 = arith.constant -1.000000e+04 : f32
    %234 = vector.broadcast %cst_97 : f32 to vector<16x16xf32>
    %235 = arith.select %233, %231, %234 : vector<16x16xi1>, vector<16x16xf32>
    %cst_98 = arith.constant dense<0xFF800000> : vector<16xf32>
    %236 = vector.multi_reduction <maximumf>, %235, %cst_98 [1] : vector<16x16xf32> to vector<16xf32>
    %237 = vector.shape_cast %236 : vector<16xf32> to vector<16x1xf32>
    %238 = vector.broadcast %237 : vector<16x1xf32> to vector<16x16xf32>
    %239 = arith.subf %235, %238 : vector<16x16xf32>
    %240 = math.exp %239 : vector<16x16xf32>
    %cst_99 = arith.constant dense<0.000000e+00> : vector<16xf32>
    %241 = vector.multi_reduction <add>, %240, %cst_99 [1] : vector<16x16xf32> to vector<16xf32>
    %242 = vector.shape_cast %241 : vector<16xf32> to vector<16x1xf32>
    %243 = tpu.reciprocal %242 {approx = true} : vector<16x1xf32> -> vector<16x1xf32>
    %244 = vector.broadcast %243 : vector<16x1xf32> to vector<16x16xf32>
    %245 = arith.mulf %240, %244 : vector<16x16xf32>
    %cst_100 = arith.constant dense<0.000000e+00> : vector<16x144xf32>
    %246 = tpu.matmul %245, %25, %cst_100 {dimension_numbers = #tpu.dot_dimension_numbers<[1], [0], [0], [1], [0, 0, 1, 1], [], []>} : vector<16x16xf32>, vector<16x144xf32>, vector<16x144xf32> -> vector<16x144xf32>
    %cst_101 = arith.constant dense<0.000000e+00> : vector<16x16xf32>
    %247 = tpu.matmul %245, %225, %cst_101 {dimension_numbers = #tpu.dot_dimension_numbers<[1], [0], [0], [1], [0, 0, 1, 1], [], []>} : vector<16x16xf32>, vector<16x16xf32>, vector<16x16xf32> -> vector<16x16xf32>
    %248 = arith.mulf %246, %31 : vector<16x144xf32>
    %c1_102 = arith.constant 1 : index
    %c0_103 = arith.constant 0 : index
    %c0_104 = arith.constant 0 : index
    %249 = vector.load %arg7[%c1_102, %c0_103, %c0_104] : memref<2x144x16xf32, #tpu.memory_space<vmem>>, vector<1x144x16xf32>
    %250 = vector.shape_cast %249 : vector<1x144x16xf32> to vector<144x16xf32>
    %cst_105 = arith.constant dense<0.000000e+00> : vector<16x16xf32>
    %251 = tpu.matmul %248, %250, %cst_105 {dimension_numbers = #tpu.dot_dimension_numbers<[1], [0], [0], [1], [0, 0, 1, 1], [], []>} : vector<16x144xf32>, vector<144x16xf32>, vector<16x16xf32> -> vector<16x16xf32>
    %252 = arith.addf %247, %251 : vector<16x16xf32>
    %253 = vector.extract_strided_slice %222 {offsets = [0, 16], sizes = [16, 16], strides = [1, 1]} : vector<16x114xf32> to vector<16x16xf32>
    %254 = vector.extract_strided_slice %222 {offsets = [0, 48], sizes = [16, 16], strides = [1, 1]} : vector<16x114xf32> to vector<16x16xf32>
    %255 = vector.extract_strided_slice %222 {offsets = [0, 80], sizes = [16, 16], strides = [1, 1]} : vector<16x114xf32> to vector<16x16xf32>
    %256 = vector.extract_strided_slice %222 {offsets = [0, 105], sizes = [16, 9], strides = [1, 1]} : vector<16x114xf32> to vector<16x9xf32>
    %cst_106 = arith.constant dense<0.000000e+00> : vector<16x16xf32>
    %257 = tpu.matmul %253, %254, %cst_106 {dimension_numbers = #tpu.dot_dimension_numbers<[1], [1], [0], [0], [0, 0, 1, 0], [], []>} : vector<16x16xf32>, vector<16x16xf32>, vector<16x16xf32> -> vector<16x16xf32>
    %cst_107 = arith.constant dense<0.000000e+00> : vector<16x144xf32>
    %258 = tpu.matmul %256, %38, %cst_107 {dimension_numbers = #tpu.dot_dimension_numbers<[1], [0], [0], [1], [0, 0, 1, 1], [], []>} : vector<16x9xf32>, vector<9x144xf32>, vector<16x144xf32> -> vector<16x144xf32>
    %259 = arith.mulf %258, %25 : vector<16x144xf32>
    %cst_108 = arith.constant dense<0.000000e+00> : vector<16x16xf32>
    %260 = tpu.matmul %259, %50, %cst_108 {dimension_numbers = #tpu.dot_dimension_numbers<[1], [0], [0], [1], [0, 0, 1, 1], [], []>} : vector<16x144xf32>, vector<144x16xf32>, vector<16x16xf32> -> vector<16x16xf32>
    %261 = arith.addf %257, %260 : vector<16x16xf32>
    %cst_109 = arith.constant 0.000000e+00 : f32
    %262 = vector.broadcast %cst_109 : f32 to vector<16x16xf32>
    %263 = arith.cmpf ogt, %16, %262 : vector<16x16xf32>
    %cst_110 = arith.constant -1.000000e+04 : f32
    %264 = vector.broadcast %cst_110 : f32 to vector<16x16xf32>
    %265 = arith.select %263, %261, %264 : vector<16x16xi1>, vector<16x16xf32>
    %cst_111 = arith.constant dense<0xFF800000> : vector<16xf32>
    %266 = vector.multi_reduction <maximumf>, %265, %cst_111 [1] : vector<16x16xf32> to vector<16xf32>
    %267 = vector.shape_cast %266 : vector<16xf32> to vector<16x1xf32>
    %268 = vector.broadcast %267 : vector<16x1xf32> to vector<16x16xf32>
    %269 = arith.subf %265, %268 : vector<16x16xf32>
    %270 = math.exp %269 : vector<16x16xf32>
    %cst_112 = arith.constant dense<0.000000e+00> : vector<16xf32>
    %271 = vector.multi_reduction <add>, %270, %cst_112 [1] : vector<16x16xf32> to vector<16xf32>
    %272 = vector.shape_cast %271 : vector<16xf32> to vector<16x1xf32>
    %273 = tpu.reciprocal %272 {approx = true} : vector<16x1xf32> -> vector<16x1xf32>
    %274 = vector.broadcast %273 : vector<16x1xf32> to vector<16x16xf32>
    %275 = arith.mulf %270, %274 : vector<16x16xf32>
    %cst_113 = arith.constant dense<0.000000e+00> : vector<16x144xf32>
    %276 = tpu.matmul %275, %25, %cst_113 {dimension_numbers = #tpu.dot_dimension_numbers<[1], [0], [0], [1], [0, 0, 1, 1], [], []>} : vector<16x16xf32>, vector<16x144xf32>, vector<16x144xf32> -> vector<16x144xf32>
    %cst_114 = arith.constant dense<0.000000e+00> : vector<16x16xf32>
    %277 = tpu.matmul %275, %255, %cst_114 {dimension_numbers = #tpu.dot_dimension_numbers<[1], [0], [0], [1], [0, 0, 1, 1], [], []>} : vector<16x16xf32>, vector<16x16xf32>, vector<16x16xf32> -> vector<16x16xf32>
    %278 = arith.mulf %276, %31 : vector<16x144xf32>
    %c1_115 = arith.constant 1 : index
    %c0_116 = arith.constant 0 : index
    %c0_117 = arith.constant 0 : index
    %279 = vector.load %arg7[%c1_115, %c0_116, %c0_117] : memref<2x144x16xf32, #tpu.memory_space<vmem>>, vector<1x144x16xf32>
    %280 = vector.shape_cast %279 : vector<1x144x16xf32> to vector<144x16xf32>
    %cst_118 = arith.constant dense<0.000000e+00> : vector<16x16xf32>
    %281 = tpu.matmul %278, %280, %cst_118 {dimension_numbers = #tpu.dot_dimension_numbers<[1], [0], [0], [1], [0, 0, 1, 1], [], []>} : vector<16x144xf32>, vector<144x16xf32>, vector<16x16xf32> -> vector<16x16xf32>
    %282 = arith.addf %277, %281 : vector<16x16xf32>
    %283 = tpu.concatenate %252, %282 in 1 : vector<16x16xf32>, vector<16x16xf32> -> vector<16x32xf32>
    %c1_119 = arith.constant 1 : index
    %c0_120 = arith.constant 0 : index
    %c0_121 = arith.constant 0 : index
    %284 = vector.load %arg5[%c1_119, %c0_120, %c0_121] : memref<2x32x32xf32, #tpu.memory_space<vmem>>, vector<1x32x32xf32>
    %285 = vector.shape_cast %284 : vector<1x32x32xf32> to vector<32x32xf32>
    %cst_122 = arith.constant dense<0.000000e+00> : vector<16x32xf32>
    %286 = tpu.matmul %283, %285, %cst_122 {dimension_numbers = #tpu.dot_dimension_numbers<[1], [0], [0], [1], [0, 0, 1, 1], [], []>} : vector<16x32xf32>, vector<32x32xf32>, vector<16x32xf32> -> vector<16x32xf32>
    %c1_123 = arith.constant 1 : index
    %c0_124 = arith.constant 0 : index
    %c0_125 = arith.constant 0 : index
    %287 = vector.load %arg6[%c1_123, %c0_124, %c0_125] : memref<2x1x32xf32, #tpu.memory_space<vmem>>, vector<1x1x32xf32>
    %288 = vector.shape_cast %287 : vector<1x1x32xf32> to vector<1x32xf32>
    %289 = vector.broadcast %288 : vector<1x32xf32> to vector<16x32xf32>
    %290 = arith.addf %286, %289 : vector<16x32xf32>
    %291 = arith.addf %215, %290 : vector<16x32xf32>
    %c1_126 = arith.constant 1 : index
    %c0_127 = arith.constant 0 : index
    %c0_128 = arith.constant 0 : index
    %c0_129 = arith.constant 0 : index
    %292 = vector.load %arg8[%c1_126, %c0_127, %c0_128, %c0_129] : memref<2x4x1x32xf32, #tpu.memory_space<vmem>>, vector<1x1x1x32xf32>
    %293 = vector.shape_cast %292 : vector<1x1x1x32xf32> to vector<1x32xf32>
    %c1_130 = arith.constant 1 : index
    %c1_131 = arith.constant 1 : index
    %c0_132 = arith.constant 0 : index
    %c0_133 = arith.constant 0 : index
    %294 = vector.load %arg8[%c1_130, %c1_131, %c0_132, %c0_133] : memref<2x4x1x32xf32, #tpu.memory_space<vmem>>, vector<1x1x1x32xf32>
    %295 = vector.shape_cast %294 : vector<1x1x1x32xf32> to vector<1x32xf32>
    %cst_134 = arith.constant dense<0.000000e+00> : vector<16xf32>
    %296 = vector.multi_reduction <add>, %291, %cst_134 [1] : vector<16x32xf32> to vector<16xf32>
    %297 = vector.shape_cast %296 : vector<16xf32> to vector<16x1xf32>
    %cst_135 = arith.constant 3.200000e+01 : f32
    %298 = vector.broadcast %cst_135 : f32 to vector<16x1xf32>
    %299 = arith.divf %297, %298 : vector<16x1xf32>
    %300 = vector.broadcast %299 : vector<16x1xf32> to vector<16x32xf32>
    %301 = arith.subf %291, %300 : vector<16x32xf32>
    %302 = arith.mulf %301, %301 : vector<16x32xf32>
    %cst_136 = arith.constant dense<0.000000e+00> : vector<16xf32>
    %303 = vector.multi_reduction <add>, %302, %cst_136 [1] : vector<16x32xf32> to vector<16xf32>
    %304 = vector.shape_cast %303 : vector<16xf32> to vector<16x1xf32>
    %cst_137 = arith.constant 3.200000e+01 : f32
    %305 = vector.broadcast %cst_137 : f32 to vector<16x1xf32>
    %306 = arith.divf %304, %305 : vector<16x1xf32>
    %307 = vector.broadcast %299 : vector<16x1xf32> to vector<16x32xf32>
    %308 = arith.subf %291, %307 : vector<16x32xf32>
    %cst_138 = arith.constant 9.99999974E-6 : f32
    %309 = vector.broadcast %cst_138 : f32 to vector<16x1xf32>
    %310 = arith.addf %306, %309 : vector<16x1xf32>
    %311 = math.rsqrt %310 : vector<16x1xf32>
    %312 = vector.broadcast %311 : vector<16x1xf32> to vector<16x32xf32>
    %313 = arith.mulf %308, %312 : vector<16x32xf32>
    %314 = vector.broadcast %293 : vector<1x32xf32> to vector<16x32xf32>
    %315 = arith.mulf %313, %314 : vector<16x32xf32>
    %316 = vector.broadcast %295 : vector<1x32xf32> to vector<16x32xf32>
    %317 = arith.addf %315, %316 : vector<16x32xf32>
    %318 = vector.broadcast %9 : vector<16x1xf32> to vector<16x32xf32>
    %319 = arith.mulf %317, %318 : vector<16x32xf32>
    %cst_139 = arith.constant 0.000000e+00 : f32
    %320 = vector.broadcast %cst_139 : f32 to vector<8x32xf32>
    %321 = tpu.concatenate %320, %319, %320 in 0 : vector<8x32xf32>, vector<16x32xf32>, vector<8x32xf32> -> vector<32x32xf32>
    %322 = vector.extract_strided_slice %321 {offsets = [7, 0], sizes = [16, 32], strides = [1, 1]} : vector<32x32xf32> to vector<16x32xf32>
    %323 = vector.extract_strided_slice %321 {offsets = [9, 0], sizes = [16, 32], strides = [1, 1]} : vector<32x32xf32> to vector<16x32xf32>
    %324 = tpu.concatenate %322, %319, %323 in 1 : vector<16x32xf32>, vector<16x32xf32>, vector<16x32xf32> -> vector<16x96xf32>
    %c1_140 = arith.constant 1 : index
    %c0_141 = arith.constant 0 : index
    %c0_142 = arith.constant 0 : index
    %325 = vector.load %arg9[%c1_140, %c0_141, %c0_142] : memref<2x96x64xf32, #tpu.memory_space<vmem>>, vector<1x96x64xf32>
    %326 = vector.shape_cast %325 : vector<1x96x64xf32> to vector<96x64xf32>
    %cst_143 = arith.constant dense<0.000000e+00> : vector<16x64xf32>
    %327 = tpu.matmul %324, %326, %cst_143 {dimension_numbers = #tpu.dot_dimension_numbers<[1], [0], [0], [1], [0, 0, 1, 1], [], []>} : vector<16x96xf32>, vector<96x64xf32>, vector<16x64xf32> -> vector<16x64xf32>
    %c1_144 = arith.constant 1 : index
    %c0_145 = arith.constant 0 : index
    %c0_146 = arith.constant 0 : index
    %328 = vector.load %arg10[%c1_144, %c0_145, %c0_146] : memref<2x1x64xf32, #tpu.memory_space<vmem>>, vector<1x1x64xf32>
    %329 = vector.shape_cast %328 : vector<1x1x64xf32> to vector<1x64xf32>
    %330 = vector.broadcast %329 : vector<1x64xf32> to vector<16x64xf32>
    %331 = arith.addf %327, %330 : vector<16x64xf32>
    %cst_147 = arith.constant 0.000000e+00 : f32
    %332 = vector.broadcast %cst_147 : f32 to vector<16x64xf32>
    %333 = arith.maximumf %331, %332 : vector<16x64xf32>
    %334 = vector.broadcast %9 : vector<16x1xf32> to vector<16x64xf32>
    %335 = arith.mulf %333, %334 : vector<16x64xf32>
    %cst_148 = arith.constant 0.000000e+00 : f32
    %336 = vector.broadcast %cst_148 : f32 to vector<8x64xf32>
    %337 = tpu.concatenate %336, %335, %336 in 0 : vector<8x64xf32>, vector<16x64xf32>, vector<8x64xf32> -> vector<32x64xf32>
    %338 = vector.extract_strided_slice %337 {offsets = [7, 0], sizes = [16, 64], strides = [1, 1]} : vector<32x64xf32> to vector<16x64xf32>
    %339 = vector.extract_strided_slice %337 {offsets = [9, 0], sizes = [16, 64], strides = [1, 1]} : vector<32x64xf32> to vector<16x64xf32>
    %340 = tpu.concatenate %338, %335, %339 in 1 : vector<16x64xf32>, vector<16x64xf32>, vector<16x64xf32> -> vector<16x192xf32>
    %c1_149 = arith.constant 1 : index
    %c0_150 = arith.constant 0 : index
    %c0_151 = arith.constant 0 : index
    %341 = vector.load %arg11[%c1_149, %c0_150, %c0_151] : memref<2x192x32xf32, #tpu.memory_space<vmem>>, vector<1x192x32xf32>
    %342 = vector.shape_cast %341 : vector<1x192x32xf32> to vector<192x32xf32>
    %cst_152 = arith.constant dense<0.000000e+00> : vector<16x32xf32>
    %343 = tpu.matmul %340, %342, %cst_152 {dimension_numbers = #tpu.dot_dimension_numbers<[1], [0], [0], [1], [0, 0, 1, 1], [], []>} : vector<16x192xf32>, vector<192x32xf32>, vector<16x32xf32> -> vector<16x32xf32>
    %c1_153 = arith.constant 1 : index
    %c0_154 = arith.constant 0 : index
    %c0_155 = arith.constant 0 : index
    %344 = vector.load %arg12[%c1_153, %c0_154, %c0_155] : memref<2x1x32xf32, #tpu.memory_space<vmem>>, vector<1x1x32xf32>
    %345 = vector.shape_cast %344 : vector<1x1x32xf32> to vector<1x32xf32>
    %346 = vector.broadcast %345 : vector<1x32xf32> to vector<16x32xf32>
    %347 = arith.addf %343, %346 : vector<16x32xf32>
    %348 = vector.broadcast %9 : vector<16x1xf32> to vector<16x32xf32>
    %349 = arith.mulf %347, %348 : vector<16x32xf32>
    %350 = arith.addf %317, %349 : vector<16x32xf32>
    %c1_156 = arith.constant 1 : index
    %c2_157 = arith.constant 2 : index
    %c0_158 = arith.constant 0 : index
    %c0_159 = arith.constant 0 : index
    %351 = vector.load %arg8[%c1_156, %c2_157, %c0_158, %c0_159] : memref<2x4x1x32xf32, #tpu.memory_space<vmem>>, vector<1x1x1x32xf32>
    %352 = vector.shape_cast %351 : vector<1x1x1x32xf32> to vector<1x32xf32>
    %c1_160 = arith.constant 1 : index
    %c3_161 = arith.constant 3 : index
    %c0_162 = arith.constant 0 : index
    %c0_163 = arith.constant 0 : index
    %353 = vector.load %arg8[%c1_160, %c3_161, %c0_162, %c0_163] : memref<2x4x1x32xf32, #tpu.memory_space<vmem>>, vector<1x1x1x32xf32>
    %354 = vector.shape_cast %353 : vector<1x1x1x32xf32> to vector<1x32xf32>
    %cst_164 = arith.constant dense<0.000000e+00> : vector<16xf32>
    %355 = vector.multi_reduction <add>, %350, %cst_164 [1] : vector<16x32xf32> to vector<16xf32>
    %356 = vector.shape_cast %355 : vector<16xf32> to vector<16x1xf32>
    %cst_165 = arith.constant 3.200000e+01 : f32
    %357 = vector.broadcast %cst_165 : f32 to vector<16x1xf32>
    %358 = arith.divf %356, %357 : vector<16x1xf32>
    %359 = vector.broadcast %358 : vector<16x1xf32> to vector<16x32xf32>
    %360 = arith.subf %350, %359 : vector<16x32xf32>
    %361 = arith.mulf %360, %360 : vector<16x32xf32>
    %cst_166 = arith.constant dense<0.000000e+00> : vector<16xf32>
    %362 = vector.multi_reduction <add>, %361, %cst_166 [1] : vector<16x32xf32> to vector<16xf32>
    %363 = vector.shape_cast %362 : vector<16xf32> to vector<16x1xf32>
    %cst_167 = arith.constant 3.200000e+01 : f32
    %364 = vector.broadcast %cst_167 : f32 to vector<16x1xf32>
    %365 = arith.divf %363, %364 : vector<16x1xf32>
    %366 = vector.broadcast %358 : vector<16x1xf32> to vector<16x32xf32>
    %367 = arith.subf %350, %366 : vector<16x32xf32>
    %cst_168 = arith.constant 9.99999974E-6 : f32
    %368 = vector.broadcast %cst_168 : f32 to vector<16x1xf32>
    %369 = arith.addf %365, %368 : vector<16x1xf32>
    %370 = math.rsqrt %369 : vector<16x1xf32>
    %371 = vector.broadcast %370 : vector<16x1xf32> to vector<16x32xf32>
    %372 = arith.mulf %367, %371 : vector<16x32xf32>
    %373 = vector.broadcast %352 : vector<1x32xf32> to vector<16x32xf32>
    %374 = arith.mulf %372, %373 : vector<16x32xf32>
    %375 = vector.broadcast %354 : vector<1x32xf32> to vector<16x32xf32>
    %376 = arith.addf %374, %375 : vector<16x32xf32>
    %377 = vector.broadcast %9 : vector<16x1xf32> to vector<16x32xf32>
    %378 = arith.mulf %376, %377 : vector<16x32xf32>
    %c0_169 = arith.constant 0 : index
    %c0_170 = arith.constant 0 : index
    %379 = vector.load %arg13[%c0_169, %c0_170] : memref<32x32xf32, #tpu.memory_space<vmem>>, vector<32x32xf32>
    %cst_171 = arith.constant dense<0.000000e+00> : vector<16x32xf32>
    %380 = tpu.matmul %378, %379, %cst_171 {dimension_numbers = #tpu.dot_dimension_numbers<[1], [0], [0], [1], [0, 0, 1, 1], [], []>} : vector<16x32xf32>, vector<32x32xf32>, vector<16x32xf32> -> vector<16x32xf32>
    %c0_172 = arith.constant 0 : index
    %c0_173 = arith.constant 0 : index
    %381 = vector.load %arg14[%c0_172, %c0_173] : memref<1x32xf32, #tpu.memory_space<vmem>>, vector<1x32xf32>
    %382 = vector.broadcast %381 : vector<1x32xf32> to vector<16x32xf32>
    %383 = arith.addf %380, %382 : vector<16x32xf32>
    %384 = vector.broadcast %9 : vector<16x1xf32> to vector<16x32xf32>
    %385 = arith.mulf %383, %384 : vector<16x32xf32>
    %386 = tpu.concatenate %378, %385 in 1 : vector<16x32xf32>, vector<16x32xf32> -> vector<16x64xf32>
    %c0_174 = arith.constant 0 : index
    %c0_175 = arith.constant 0 : index
    %c0_176 = arith.constant 0 : index
    %387 = vector.load %arg15[%c0_174, %c0_175, %c0_176] : memref<1x16x64xf32, #tpu.memory_space<vmem>>, vector<1x16x64xf32>
    %388 = vector.shape_cast %387 : vector<1x16x64xf32> to vector<16x64xf32>
    %389 = vector.shape_cast %386 : vector<16x64xf32> to vector<1x16x64xf32>
    tpu.vector_store %arg15[%c0_174, %c0_175, %c0_176], %389 {strides = array<i32>} : memref<1x16x64xf32, #tpu.memory_space<vmem>>, vector<1x16x64xf32>,
    return
  }
  func.func @transform_0(%arg0: i32, %arg1: memref<2xi32, #tpu.memory_space<smem>>) -> (i32, i32, i32) {
    %c0_i32 = arith.constant 0 : i32
    %c0_i32_0 = arith.constant 0 : i32
    %c0_i32_1 = arith.constant 0 : i32
    return %arg0, %c0_i32, %c0_i32_0 : i32, i32, i32
  }
  func.func @transform_1(%arg0: i32, %arg1: memref<2xi32, #tpu.memory_space<smem>>) -> (i32, i32, i32) {
    %c0_i32 = arith.constant 0 : i32
    %c0_i32_0 = arith.constant 0 : i32
    %c0_i32_1 = arith.constant 0 : i32
    %c0_i32_2 = arith.constant 0 : i32
    return %c0_i32, %c0_i32_0, %c0_i32_1 : i32, i32, i32
  }
  func.func @transform_2(%arg0: i32, %arg1: memref<2xi32, #tpu.memory_space<smem>>) -> (i32, i32, i32) {
    %c0_i32 = arith.constant 0 : i32
    %c0_i32_0 = arith.constant 0 : i32
    %c0_i32_1 = arith.constant 0 : i32
    %c0_i32_2 = arith.constant 0 : i32
    return %c0_i32, %c0_i32_0, %c0_i32_1 : i32, i32, i32
  }
  func.func @transform_3(%arg0: i32, %arg1: memref<2xi32, #tpu.memory_space<smem>>) -> (i32, i32, i32) {
    %c0_i32 = arith.constant 0 : i32
    %c0_i32_0 = arith.constant 0 : i32
    %c0_i32_1 = arith.constant 0 : i32
    %c0_i32_2 = arith.constant 0 : i32
    return %c0_i32, %c0_i32_0, %c0_i32_1 : i32, i32, i32
  }
  func.func @transform_4(%arg0: i32, %arg1: memref<2xi32, #tpu.memory_space<smem>>) -> (i32, i32, i32) {
    %c0_i32 = arith.constant 0 : i32
    %c0_i32_0 = arith.constant 0 : i32
    %c0_i32_1 = arith.constant 0 : i32
    %c0_i32_2 = arith.constant 0 : i32
    return %c0_i32, %c0_i32_0, %c0_i32_1 : i32, i32, i32
  }
  func.func @transform_5(%arg0: i32, %arg1: memref<2xi32, #tpu.memory_space<smem>>) -> (i32, i32, i32) {
    %c0_i32 = arith.constant 0 : i32
    %c0_i32_0 = arith.constant 0 : i32
    %c0_i32_1 = arith.constant 0 : i32
    %c0_i32_2 = arith.constant 0 : i32
    return %c0_i32, %c0_i32_0, %c0_i32_1 : i32, i32, i32
  }
  func.func @transform_6(%arg0: i32, %arg1: memref<2xi32, #tpu.memory_space<smem>>) -> (i32, i32, i32, i32) {
    %c0_i32 = arith.constant 0 : i32
    %c0_i32_0 = arith.constant 0 : i32
    %c0_i32_1 = arith.constant 0 : i32
    %c0_i32_2 = arith.constant 0 : i32
    %c0_i32_3 = arith.constant 0 : i32
    return %c0_i32, %c0_i32_0, %c0_i32_1, %c0_i32_2 : i32, i32, i32, i32
  }
  func.func @transform_7(%arg0: i32, %arg1: memref<2xi32, #tpu.memory_space<smem>>) -> (i32, i32, i32) {
    %c0_i32 = arith.constant 0 : i32
    %c0_i32_0 = arith.constant 0 : i32
    %c0_i32_1 = arith.constant 0 : i32
    %c0_i32_2 = arith.constant 0 : i32
    return %c0_i32, %c0_i32_0, %c0_i32_1 : i32, i32, i32
  }
  func.func @transform_8(%arg0: i32, %arg1: memref<2xi32, #tpu.memory_space<smem>>) -> (i32, i32, i32) {
    %c0_i32 = arith.constant 0 : i32
    %c0_i32_0 = arith.constant 0 : i32
    %c0_i32_1 = arith.constant 0 : i32
    %c0_i32_2 = arith.constant 0 : i32
    return %c0_i32, %c0_i32_0, %c0_i32_1 : i32, i32, i32
  }
  func.func @transform_9(%arg0: i32, %arg1: memref<2xi32, #tpu.memory_space<smem>>) -> (i32, i32, i32) {
    %c0_i32 = arith.constant 0 : i32
    %c0_i32_0 = arith.constant 0 : i32
    %c0_i32_1 = arith.constant 0 : i32
    %c0_i32_2 = arith.constant 0 : i32
    return %c0_i32, %c0_i32_0, %c0_i32_1 : i32, i32, i32
  }
  func.func @transform_10(%arg0: i32, %arg1: memref<2xi32, #tpu.memory_space<smem>>) -> (i32, i32, i32) {
    %c0_i32 = arith.constant 0 : i32
    %c0_i32_0 = arith.constant 0 : i32
    %c0_i32_1 = arith.constant 0 : i32
    %c0_i32_2 = arith.constant 0 : i32
    return %c0_i32, %c0_i32_0, %c0_i32_1 : i32, i32, i32
  }
  func.func @transform_11(%arg0: i32, %arg1: memref<2xi32, #tpu.memory_space<smem>>) -> (i32, i32) {
    %c0_i32 = arith.constant 0 : i32
    %c0_i32_0 = arith.constant 0 : i32
    %c0_i32_1 = arith.constant 0 : i32
    return %c0_i32, %c0_i32_0 : i32, i32
  }
  func.func @transform_12(%arg0: i32, %arg1: memref<2xi32, #tpu.memory_space<smem>>) -> (i32, i32) {
    %c0_i32 = arith.constant 0 : i32
    %c0_i32_0 = arith.constant 0 : i32
    %c0_i32_1 = arith.constant 0 : i32
    return %c0_i32, %c0_i32_0 : i32, i32
  }
  func.func @transform_13(%arg0: i32, %arg1: memref<2xi32, #tpu.memory_space<smem>>) -> (i32, i32, i32) {
    %c0_i32 = arith.constant 0 : i32
    %c0_i32_0 = arith.constant 0 : i32
    %c0_i32_1 = arith.constant 0 : i32
    return %arg0, %c0_i32, %c0_i32_0 : i32, i32, i32
  }
}

</mosaic_0001>

<llo_original>
// kernel: tpu_custom_call.1
$region0: #{tpu_custom_call.1}
  #allocation0 [shape = 'u32[]', space=smem, size = 0x4, offset = 0x4, fixed_abs, tag = 'smem constant byte address 0x4 - core index']
  #allocation1 [shape = 'u32[144,128]{1,0:T(1,128)}', space=vmem, size = 0x12000, scoped, tag = 'internal scratch']
  #allocation2 [shape = 's32[1]{0}', space=sflag, size = 0x4, scoped, tag = 'scoped memory for tpu_custom_call.1']
  #allocation3 [shape = 'u8[512]{0}', space=smem, size = 0x200, scoped, tag = 'prefetched SMEM operand 0']
  %s0 = inlined_call_operand.vmem [shape: s32[2], index: 0, kind: input, shape index: {}]
  %s1 = inlined_call_operand.vmem [shape: f32[2,16,32], index: 1, kind: input, shape index: {}]
  %s2 = inlined_call_operand.vmem [shape: f32[2,32,114], index: 2, kind: input, shape index: {}]
  %s3 = inlined_call_operand.vmem [shape: f32[2,1,114], index: 3, kind: input, shape index: {}]
  %s4 = inlined_call_operand.vmem [shape: f32[2,32,32], index: 4, kind: input, shape index: {}]
  %s5 = inlined_call_operand.vmem [shape: f32[2,1,32], index: 5, kind: input, shape index: {}]
  %s6 = inlined_call_operand.vmem [shape: f32[2,144,16], index: 6, kind: input, shape index: {}]
  %s7 = inlined_call_operand.vmem [shape: f32[2,4,1,32], index: 7, kind: input, shape index: {}]
  %s8 = inlined_call_operand.vmem [shape: f32[2,96,64], index: 8, kind: input, shape index: {}]
  %s9 = inlined_call_operand.vmem [shape: f32[2,1,64], index: 9, kind: input, shape index: {}]
  %s10 = inlined_call_operand.vmem [shape: f32[2,192,32], index: 10, kind: input, shape index: {}]
  %s11 = inlined_call_operand.vmem [shape: f32[2,1,32], index: 11, kind: input, shape index: {}]
  %s12 = inlined_call_operand.vmem [shape: f32[32,32], index: 12, kind: input, shape index: {}]
  %s13 = inlined_call_operand.vmem [shape: f32[1,32], index: 13, kind: input, shape index: {}]
  %s14 = inlined_call_operand.hbm [shape: f32[2,16,64], index: 14, kind: output, shape index: {}]
  %s15 = sld [smem:[#allocation0]]
  $region85: #{tpu_custom_call.1} parent=0
    _
  %s17 = ssub.s32 1, %s15
  %s18 = scalar_select 0, %s17, %s15
  %s19 = sshll.u32 %s0, 4
  %s20 = int_to_ptr.vmem [resolvable:$true] %s19
  %22 = dma.vmem_to_smem %s20, 16, [#allocation3], [#allocation2]
  %23 = dma.done [#allocation2], 16
  %24 = sfence
  $region1: #{tpu_custom_call.1} parent=0
    #allocation4 [shape = 'u8[16384]{0}', space=vmem, size = 0x4000, scoped, tag = 'output window, operand 0']
    #allocation5 [shape = 's32[2]{0}', space=sflag, size = 0x8, scoped, tag = 'scoped memory for tpu_custom_call.1']
    %25 = vsyncpa [#allocation5], 0
    %s26 = scalar_lea.sflag [#allocation5], 1
    %27 = vsyncpa %s26, 0
    loop: start=0, step=1, limit=4
    $region2: #{tpu_custom_call.1} parent=1 // loop_pre_header
      _
    $region3: #{tpu_custom_call.1} parent=1 // loop_header
      %s29 = sphi 0, %s33
      %p30 = scmp.ge.s32.totalorder %s29, 4
      %s39 = sphi 0, %s41
      %s42 = sphi 0, %s39
      %s43 = sphi 0, %s42
      %s59 = sphi 0, %s43
      %s63 = sphi 0, %s63
      %s65 = sphi 0, %s63
      %s66 = sphi 0, %s65
      %s80 = sphi 0, %s66
      %s84 = sphi 0, %s84
      %s86 = sphi 0, %s84
      %s87 = sphi 0, %s86
      %s101 = sphi 0, %s87
      %s105 = sphi 0, %s105
      %s107 = sphi 0, %s105
      %s108 = sphi 0, %s107
      %s122 = sphi 0, %s108
      %s126 = sphi 0, %s126
      %s128 = sphi 0, %s126
      %s129 = sphi 0, %s128
      %s143 = sphi 0, %s129
      %s147 = sphi 0, %s147
      %s149 = sphi 0, %s147
      %s150 = sphi 0, %s149
      %s164 = sphi 0, %s150
      %s168 = sphi 0, %s168
      %s170 = sphi 0, %s168
      %s171 = sphi 0, %s170
      %s185 = sphi 0, %s171
      %s189 = sphi 0, %s189
      %s191 = sphi 0, %s189
      %s192 = sphi 0, %s191
      %s206 = sphi 0, %s192
      %s210 = sphi 0, %s210
      %s212 = sphi 0, %s210
      %s213 = sphi 0, %s212
      %s227 = sphi 0, %s213
      %s231 = sphi 0, %s231
      %s233 = sphi 0, %s231
      %s234 = sphi 0, %s233
      %s248 = sphi 0, %s234
      %s252 = sphi 0, %s252
      %s254 = sphi 0, %s252
      %s255 = sphi 0, %s254
      %s269 = sphi 0, %s255
      %s273 = sphi 0, %s273
      %s275 = sphi 0, %s273
      %s276 = sphi 0, %s275
      %s290 = sphi 0, %s276
      %s294 = sphi 0, %s294
      %s296 = sphi 0, %s294
      %s297 = sphi 0, %s296
      %s311 = sphi 0, %s297
      %s317 = sphi 0, %s319
      %s320 = sphi 0, %s317
      %s321 = sphi 0, %s320
      %s337 = sphi 0, %s321
    $region4: #{tpu_custom_call.1} parent=1 // loop_header_branch
      %32 = sbr.rel (%p30) target = $region8
    $region5: #{tpu_custom_call.1} parent=1 // loop_body
      %s34 = ssub.s32 %s29, 1
      %s35 = ssub.s32 %s29, 2
      %s36 = sadd.s32 %s29, 1
      %s37 = ssub.s32 %s29, %s36
      %p38 = scmp.eq.s32.totalorder %s37, 0
      %s40 = sadd.s32 %s39, 1
      %s41 = scalar_select %p38, %s39, %s40
      %p44 = pneg %p38
      %p45 = scmp.eq.s32.totalorder %s29, 1
      %p46 = por %p44, %p45
      %p47 = scmp.ne.s32.totalorder %s39, %s42
      %p48 = scmp.eq.s32.totalorder %s29, 0
      %p49 = por %p47, %p48
      %p50 = scmp.ne.s32.totalorder %s39, %s42
      %p51 = scmp.eq.s32.totalorder %s34, 1
      %p52 = por %p50, %p51
      %p53 = scmp.ne.s32.totalorder %s42, %s43
      %p54 = scmp.eq.s32.totalorder %s34, 0
      %p55 = por %p53, %p54
      %p56 = scmp.ne.s32.totalorder %s42, %s43
      %p57 = scmp.eq.s32.totalorder %s35, 1
      %p58 = por %p56, %p57
      %p60 = scmp.ne.s32.totalorder %s43, %s59
      %p61 = scmp.eq.s32.totalorder %s35, 0
      %p62 = por %p60, %p61
      %s64 = sadd.s32 %s63, 1
      %p67 = scmp.eq.s32.totalorder %s29, 1
      %p68 = scmp.ne.s32.totalorder %s63, %s65
      %p69 = scmp.eq.s32.totalorder %s29, 0
      %p70 = por %p68, %p69
      %p71 = scmp.ne.s32.totalorder %s63, %s65
      %p72 = scmp.eq.s32.totalorder %s34, 1
      %p73 = por %p71, %p72
      %p74 = scmp.ne.s32.totalorder %s65, %s66
      %p75 = scmp.eq.s32.totalorder %s34, 0
      %p76 = por %p74, %p75
      %p77 = scmp.ne.s32.totalorder %s65, %s66
      %p78 = scmp.eq.s32.totalorder %s35, 1
      %p79 = por %p77, %p78
      %p81 = scmp.ne.s32.totalorder %s66, %s80
      %p82 = scmp.eq.s32.totalorder %s35, 0
      %p83 = por %p81, %p82
      %s85 = sadd.s32 %s84, 1
      %p88 = scmp.eq.s32.totalorder %s29, 1
      %p89 = scmp.ne.s32.totalorder %s84, %s86
      %p90 = scmp.eq.s32.totalorder %s29, 0
      %p91 = por %p89, %p90
      %p92 = scmp.ne.s32.totalorder %s84, %s86
      %p93 = scmp.eq.s32.totalorder %s34, 1
      %p94 = por %p92, %p93
      %p95 = scmp.ne.s32.totalorder %s86, %s87
      %p96 = scmp.eq.s32.totalorder %s34, 0
      %p97 = por %p95, %p96
      %p98 = scmp.ne.s32.totalorder %s86, %s87
      %p99 = scmp.eq.s32.totalorder %s35, 1
      %p100 = por %p98, %p99
      %p102 = scmp.ne.s32.totalorder %s87, %s101
      %p103 = scmp.eq.s32.totalorder %s35, 0
      %p104 = por %p102, %p103
      %s106 = sadd.s32 %s105, 1
      %p109 = scmp.eq.s32.totalorder %s29, 1
      %p110 = scmp.ne.s32.totalorder %s105, %s107
      %p111 = scmp.eq.s32.totalorder %s29, 0
      %p112 = por %p110, %p111
      %p113 = scmp.ne.s32.totalorder %s105, %s107
      %p114 = scmp.eq.s32.totalorder %s34, 1
      %p115 = por %p113, %p114
      %p116 = scmp.ne.s32.totalorder %s107, %s108
      %p117 = scmp.eq.s32.totalorder %s34, 0
      %p118 = por %p116, %p117
      %p119 = scmp.ne.s32.totalorder %s107, %s108
      %p120 = scmp.eq.s32.totalorder %s35, 1
      %p121 = por %p119, %p120
      %p123 = scmp.ne.s32.totalorder %s108, %s122
      %p124 = scmp.eq.s32.totalorder %s35, 0
      %p125 = por %p123, %p124
      %s127 = sadd.s32 %s126, 1
      %p130 = scmp.eq.s32.totalorder %s29, 1
      %p131 = scmp.ne.s32.totalorder %s126, %s128
      %p132 = scmp.eq.s32.totalorder %s29, 0
      %p133 = por %p131, %p132
      %p134 = scmp.ne.s32.totalorder %s126, %s128
      %p135 = scmp.eq.s32.totalorder %s34, 1
      %p136 = por %p134, %p135
      %p137 = scmp.ne.s32.totalorder %s128, %s129
      %p138 = scmp.eq.s32.totalorder %s34, 0
      %p139 = por %p137, %p138
      %p140 = scmp.ne.s32.totalorder %s128, %s129
      %p141 = scmp.eq.s32.totalorder %s35, 1
      %p142 = por %p140, %p141
      %p144 = scmp.ne.s32.totalorder %s129, %s143
      %p145 = scmp.eq.s32.totalorder %s35, 0
      %p146 = por %p144, %p145
      %s148 = sadd.s32 %s147, 1
      %p151 = scmp.eq.s32.totalorder %s29, 1
      %p152 = scmp.ne.s32.totalorder %s147, %s149
      %p153 = scmp.eq.s32.totalorder %s29, 0
      %p154 = por %p152, %p153
      %p155 = scmp.ne.s32.totalorder %s147, %s149
      %p156 = scmp.eq.s32.totalorder %s34, 1
      %p157 = por %p155, %p156
      %p158 = scmp.ne.s32.totalorder %s149, %s150
      %p159 = scmp.eq.s32.totalorder %s34, 0
      %p160 = por %p158, %p159
      %p161 = scmp.ne.s32.totalorder %s149, %s150
      %p162 = scmp.eq.s32.totalorder %s35, 1
      %p163 = por %p161, %p162
      %p165 = scmp.ne.s32.totalorder %s150, %s164
      %p166 = scmp.eq.s32.totalorder %s35, 0
      %p167 = por %p165, %p166
      %s169 = sadd.s32 %s168, 1
      %p172 = scmp.eq.s32.totalorder %s29, 1
      %p173 = scmp.ne.s32.totalorder %s168, %s170
      %p174 = scmp.eq.s32.totalorder %s29, 0
      %p175 = por %p173, %p174
      %p176 = scmp.ne.s32.totalorder %s168, %s170
      %p177 = scmp.eq.s32.totalorder %s34, 1
      %p178 = por %p176, %p177
      %p179 = scmp.ne.s32.totalorder %s170, %s171
      %p180 = scmp.eq.s32.totalorder %s34, 0
      %p181 = por %p179, %p180
      %p182 = scmp.ne.s32.totalorder %s170, %s171
      %p183 = scmp.eq.s32.totalorder %s35, 1
      %p184 = por %p182, %p183
      %p186 = scmp.ne.s32.totalorder %s171, %s185
      %p187 = scmp.eq.s32.totalorder %s35, 0
      %p188 = por %p186, %p187
      %s190 = sadd.s32 %s189, 1
      %p193 = scmp.eq.s32.totalorder %s29, 1
      %p194 = scmp.ne.s32.totalorder %s189, %s191
      %p195 = scmp.eq.s32.totalorder %s29, 0
      %p196 = por %p194, %p195
      %p197 = scmp.ne.s32.totalorder %s189, %s191
      %p198 = scmp.eq.s32.totalorder %s34, 1
      %p199 = por %p197, %p198
      %p200 = scmp.ne.s32.totalorder %s191, %s192
      %p201 = scmp.eq.s32.totalorder %s34, 0
      %p202 = por %p200, %p201
      %p203 = scmp.ne.s32.totalorder %s191, %s192
      %p204 = scmp.eq.s32.totalorder %s35, 1
      %p205 = por %p203, %p204
      %p207 = scmp.ne.s32.totalorder %s192, %s206
      %p208 = scmp.eq.s32.totalorder %s35, 0
      %p209 = por %p207, %p208
      %s211 = sadd.s32 %s210, 1
      %p214 = scmp.eq.s32.totalorder %s29, 1
      %p215 = scmp.ne.s32.totalorder %s210, %s212
      %p216 = scmp.eq.s32.totalorder %s29, 0
      %p217 = por %p215, %p216
      %p218 = scmp.ne.s32.totalorder %s210, %s212
      %p219 = scmp.eq.s32.totalorder %s34, 1
      %p220 = por %p218, %p219
      %p221 = scmp.ne.s32.totalorder %s212, %s213
      %p222 = scmp.eq.s32.totalorder %s34, 0
      %p223 = por %p221, %p222
      %p224 = scmp.ne.s32.totalorder %s212, %s213
      %p225 = scmp.eq.s32.totalorder %s35, 1
      %p226 = por %p224, %p225
      %p228 = scmp.ne.s32.totalorder %s213, %s227
      %p229 = scmp.eq.s32.totalorder %s35, 0
      %p230 = por %p228, %p229
      %s232 = sadd.s32 %s231, 1
      %p235 = scmp.eq.s32.totalorder %s29, 1
      %p236 = scmp.ne.s32.totalorder %s231, %s233
      %p237 = scmp.eq.s32.totalorder %s29, 0
      %p238 = por %p236, %p237
      %p239 = scmp.ne.s32.totalorder %s231, %s233
      %p240 = scmp.eq.s32.totalorder %s34, 1
      %p241 = por %p239, %p240
      %p242 = scmp.ne.s32.totalorder %s233, %s234
      %p243 = scmp.eq.s32.totalorder %s34, 0
      %p244 = por %p242, %p243
      %p245 = scmp.ne.s32.totalorder %s233, %s234
      %p246 = scmp.eq.s32.totalorder %s35, 1
      %p247 = por %p245, %p246
      %p249 = scmp.ne.s32.totalorder %s234, %s248
      %p250 = scmp.eq.s32.totalorder %s35, 0
      %p251 = por %p249, %p250
      %s253 = sadd.s32 %s252, 1
      %p256 = scmp.eq.s32.totalorder %s29, 1
      %p257 = scmp.ne.s32.totalorder %s252, %s254
      %p258 = scmp.eq.s32.totalorder %s29, 0
      %p259 = por %p257, %p258
      %p260 = scmp.ne.s32.totalorder %s252, %s254
      %p261 = scmp.eq.s32.totalorder %s34, 1
      %p262 = por %p260, %p261
      %p263 = scmp.ne.s32.totalorder %s254, %s255
      %p264 = scmp.eq.s32.totalorder %s34, 0
      %p265 = por %p263, %p264
      %p266 = scmp.ne.s32.totalorder %s254, %s255
      %p267 = scmp.eq.s32.totalorder %s35, 1
      %p268 = por %p266, %p267
      %p270 = scmp.ne.s32.totalorder %s255, %s269
      %p271 = scmp.eq.s32.totalorder %s35, 0
      %p272 = por %p270, %p271
      %s274 = sadd.s32 %s273, 1
      %p277 = scmp.eq.s32.totalorder %s29, 1
      %p278 = scmp.ne.s32.totalorder %s273, %s275
      %p279 = scmp.eq.s32.totalorder %s29, 0
      %p280 = por %p278, %p279
      %p281 = scmp.ne.s32.totalorder %s273, %s275
      %p282 = scmp.eq.s32.totalorder %s34, 1
      %p283 = por %p281, %p282
      %p284 = scmp.ne.s32.totalorder %s275, %s276
      %p285 = scmp.eq.s32.totalorder %s34, 0
      %p286 = por %p284, %p285
      %p287 = scmp.ne.s32.totalorder %s275, %s276
      %p288 = scmp.eq.s32.totalorder %s35, 1
      %p289 = por %p287, %p288
      %p291 = scmp.ne.s32.totalorder %s276, %s290
      %p292 = scmp.eq.s32.totalorder %s35, 0
      %p293 = por %p291, %p292
      %s295 = sadd.s32 %s294, 1
      %p298 = scmp.eq.s32.totalorder %s29, 1
      %p299 = scmp.ne.s32.totalorder %s294, %s296
      %p300 = scmp.eq.s32.totalorder %s29, 0
      %p301 = por %p299, %p300
      %p302 = scmp.ne.s32.totalorder %s294, %s296
      %p303 = scmp.eq.s32.totalorder %s34, 1
      %p304 = por %p302, %p303
      %p305 = scmp.ne.s32.totalorder %s296, %s297
      %p306 = scmp.eq.s32.totalorder %s34, 0
      %p307 = por %p305, %p306
      %p308 = scmp.ne.s32.totalorder %s296, %s297
      %p309 = scmp.eq.s32.totalorder %s35, 1
      %p310 = por %p308, %p309
      %p312 = scmp.ne.s32.totalorder %s297, %s311
      %p313 = scmp.eq.s32.totalorder %s35, 0
      %p314 = por %p312, %p313
      %s315 = ssub.s32 %s29, %s36
      %p316 = scmp.eq.s32.totalorder %s315, 0
      %s318 = sadd.s32 %s317, 1
      %s319 = scalar_select %p316, %s317, %s318
      %p322 = pneg %p316
      %p323 = scmp.eq.s32.totalorder %s29, 1
      %p324 = por %p322, %p323
      %p325 = scmp.ne.s32.totalorder %s317, %s320
      %p326 = scmp.eq.s32.totalorder %s29, 0
      %p327 = por %p325, %p326
      %p328 = scmp.ne.s32.totalorder %s317, %s320
      %p329 = scmp.eq.s32.totalorder %s34, 1
      %p330 = por %p328, %p329
      %p331 = scmp.ne.s32.totalorder %s320, %s321
      %p332 = scmp.eq.s32.totalorder %s34, 0
      %p333 = por %p331, %p332
      %p334 = scmp.ne.s32.totalorder %s320, %s321
      %p335 = scmp.eq.s32.totalorder %s35, 1
      %p336 = por %p334, %p335
      %p338 = scmp.ne.s32.totalorder %s321, %s337
      %p339 = scmp.eq.s32.totalorder %s35, 0
      %p340 = por %p338, %p339
      %p341 = scmp.le.s32.totalorder 1, %s29
      %p342 = scmp.lt.s32.totalorder %s29, 3
      %p343 = pnand %p341, %p342
      %p344 = pneg %p343
      // Predicated region
      $region9: #{tpu_custom_call.1} parent=5 // pred_check
        _
      $region10: #{tpu_custom_call.1} parent=5 // pred_check_branch
        %346 = sbr.rel (%p343) target = $region12
      $region11: #{tpu_custom_call.1} parent=5 // pred_region
        %s347 = ssub.s32 %s29, 1
        // Predicated region
        $region13: #{tpu_custom_call.1} parent=11 // pred_check
          %p348 = pneg %p76
        $region14: #{tpu_custom_call.1} parent=11 // pred_check_branch
          %350 = sbr.rel (%p348) target = $region16
        $region15: #{tpu_custom_call.1} parent=11 // pred_region
          _
        $region16: #{tpu_custom_call.1} parent=11 // pred_fallthru
          _
        // Predicated region
        $region17: #{tpu_custom_call.1} parent=11 // pred_check
          %p351 = pneg %p97
        $region18: #{tpu_custom_call.1} parent=11 // pred_check_branch
          %353 = sbr.rel (%p351) target = $region20
        $region19: #{tpu_custom_call.1} parent=11 // pred_region
          _
        $region20: #{tpu_custom_call.1} parent=11 // pred_fallthru
          _
        // Predicated region
        $region21: #{tpu_custom_call.1} parent=11 // pred_check
          %p354 = pneg %p118
        $region22: #{tpu_custom_call.1} parent=11 // pred_check_branch
          %356 = sbr.rel (%p354) target = $region24
        $region23: #{tpu_custom_call.1} parent=11 // pred_region
          _
        $region24: #{tpu_custom_call.1} parent=11 // pred_fallthru
          _
        // Predicated region
        $region25: #{tpu_custom_call.1} parent=11 // pred_check
          %p357 = pneg %p139
        $region26: #{tpu_custom_call.1} parent=11 // pred_check_branch
          %359 = sbr.rel (%p357) target = $region28
        $region27: #{tpu_custom_call.1} parent=11 // pred_region
          _
        $region28: #{tpu_custom_call.1} parent=11 // pred_fallthru
          _
        // Predicated region
        $region29: #{tpu_custom_call.1} parent=11 // pred_check
          %p360 = pneg %p160
        $region30: #{tpu_custom_call.1} parent=11 // pred_check_branch
          %362 = sbr.rel (%p360) target = $region32
        $region31: #{tpu_custom_call.1} parent=11 // pred_region
          _
        $region32: #{tpu_custom_call.1} parent=11 // pred_fallthru
          _
        // Predicated region
        $region33: #{tpu_custom_call.1} parent=11 // pred_check
          %p363 = pneg %p181
        $region34: #{tpu_custom_call.1} parent=11 // pred_check_branch
          %365 = sbr.rel (%p363) target = $region36
        $region35: #{tpu_custom_call.1} parent=11 // pred_region
          _
        $region36: #{tpu_custom_call.1} parent=11 // pred_fallthru
          _
        // Predicated region
        $region37: #{tpu_custom_call.1} parent=11 // pred_check
          %p366 = pneg %p202
        $region38: #{tpu_custom_call.1} parent=11 // pred_check_branch
          %368 = sbr.rel (%p366) target = $region40
        $region39: #{tpu_custom_call.1} parent=11 // pred_region
          _
        $region40: #{tpu_custom_call.1} parent=11 // pred_fallthru
          _
        // Predicated region
        $region41: #{tpu_custom_call.1} parent=11 // pred_check
          %p369 = pneg %p223
        $region42: #{tpu_custom_call.1} parent=11 // pred_check_branch
          %371 = sbr.rel (%p369) target = $region44
        $region43: #{tpu_custom_call.1} parent=11 // pred_region
          _
        $region44: #{tpu_custom_call.1} parent=11 // pred_fallthru
          _
        // Predicated region
        $region45: #{tpu_custom_call.1} parent=11 // pred_check
          %p372 = pneg %p244
        $region46: #{tpu_custom_call.1} parent=11 // pred_check_branch
          %374 = sbr.rel (%p372) target = $region48
        $region47: #{tpu_custom_call.1} parent=11 // pred_region
          _
        $region48: #{tpu_custom_call.1} parent=11 // pred_fallthru
          _
        // Predicated region
        $region49: #{tpu_custom_call.1} parent=11 // pred_check
          %p375 = pneg %p265
        $region50: #{tpu_custom_call.1} parent=11 // pred_check_branch
          %377 = sbr.rel (%p375) target = $region52
        $region51: #{tpu_custom_call.1} parent=11 // pred_region
          _
        $region52: #{tpu_custom_call.1} parent=11 // pred_fallthru
          _
        // Predicated region
        $region53: #{tpu_custom_call.1} parent=11 // pred_check
          %p378 = pneg %p286
        $region54: #{tpu_custom_call.1} parent=11 // pred_check_branch
          %380 = sbr.rel (%p378) target = $region56
        $region55: #{tpu_custom_call.1} parent=11 // pred_region
          _
        $region56: #{tpu_custom_call.1} parent=11 // pred_fallthru
          _
        // Predicated region
        $region57: #{tpu_custom_call.1} parent=11 // pred_check
          %p381 = pneg %p307
        $region58: #{tpu_custom_call.1} parent=11 // pred_check_branch
          %383 = sbr.rel (%p381) target = $region60
        $region59: #{tpu_custom_call.1} parent=11 // pred_region
          _
        $region60: #{tpu_custom_call.1} parent=11 // pred_fallthru
          _
      $region12: #{tpu_custom_call.1} parent=5 // pred_fallthru
        _
      %p384 = scmp.lt.s32.totalorder %s29, 2
      // Predicated region
      $region61: #{tpu_custom_call.1} parent=5 // pred_check
        %p385 = pneg %p384
      $region62: #{tpu_custom_call.1} parent=5 // pred_check_branch
        %387 = sbr.rel (%p385) target = $region64
      $region63: #{tpu_custom_call.1} parent=5 // pred_region
        // Predicated region
        $region65: #{tpu_custom_call.1} parent=63 // pred_check
          %p388 = pneg %p49
        $region66: #{tpu_custom_call.1} parent=63 // pred_check_branch
          %390 = sbr.rel (%p388) target = $region68
        $region67: #{tpu_custom_call.1} parent=63 // pred_region
          %p391 = scmp.lt.s32.totalorder %s29, 1
          %s392 = scalar_select %p391, %s29, 1
          %s393 = smul.addr %s392, 2
          %s394 = smul.addr %s393, 8
          %s395 = scalar_lea.vmem %s1, %s394
        $region68: #{tpu_custom_call.1} parent=63 // pred_fallthru
          _
      $region64: #{tpu_custom_call.1} parent=5 // pred_fallthru
        _
      %p396 = scmp.le.s32.totalorder 1, %s29
      %p397 = scmp.lt.s32.totalorder %s29, 3
      %p398 = pnand %p396, %p397
      %p399 = pneg %p398
      // Predicated region
      $region69: #{tpu_custom_call.1} parent=5 // pred_check
        _
      $region70: #{tpu_custom_call.1} parent=5 // pred_check_branch
        %401 = sbr.rel (%p398) target = $region72
      $region71: #{tpu_custom_call.1} parent=5 // pred_region
        %s402 = ssub.s32 %s29, 1
        %p403 = scmp.lt.s32.totalorder %s34, 1
        %s404 = scalar_select %p403, %s34, 1
        %s405 = smul.addr %s404, 2
        %s406 = smul.addr %s405, 8
        %s407 = scalar_lea.vmem %s1, %s406
        %p408 = pneg %p55
        %p409 = pneg %p52
        %p410 = pneg %p76
        %p411 = pneg %p73
        %p412 = pneg %p97
        %p413 = pneg %p94
        %p414 = pneg %p118
        %p415 = pneg %p115
        %p416 = pneg %p139
        %p417 = pneg %p136
        %p418 = pneg %p160
        %p419 = pneg %p157
        %p420 = pneg %p181
        %p421 = pneg %p178
        %p422 = pneg %p202
        %p423 = pneg %p199
        %p424 = pneg %p223
        %p425 = pneg %p220
        %p426 = pneg %p244
        %p427 = pneg %p241
        %p428 = pneg %p265
        %p429 = pneg %p262
        %p430 = pneg %p286
        %p431 = pneg %p283
        %p432 = pneg %p307
        %p433 = pneg %p304
        %p434 = pneg %p333
        %p435 = pneg %p330
        %s436 = sand.u32 %s320, 1
        %s437 = scalar_lea.sflag [#allocation5], %s436
        %s438 = sand.u32 %s320, 1
        %s439 = smul.addr %s438, 16
        %s440 = scalar_lea.vmem [#allocation4], %s439
        %p441 = scmp.lt.s32.totalorder %s34, 1
        %s442 = scalar_select %p441, %s34, 1
        %s443 = smul.addr %s442, 2
        %s444 = smul.addr %s443, 8
        %s445 = scalar_lea.vmem %s1, %s444
        %s446 = sld [smem:[#allocation3 + %s34]]
        %v447 = vld [vmem:[%s445] sm:$0xff]
        %v448 = vld [vmem:[%s445 + $0x8] sm:$0xff]
        %v449 = vlaneseq
        %v450 = vshrl.u32 %v449, 7
        %v451 = vadd.s32 %v450, 8
        %v452 = vlaneseq
        %v453 = vand.u32 %v452, 127
        %v454 = vstv %s446
        %vm455 = vcmp.lt.s32.totalorder %v450, %v454
        %vm456 = vcmp.lt.s32.totalorder %v451, %v454
        %v457 = vsel %vm455, 1, 0
        %v458 = vsel %vm456, 1, 0
        %v459 = vcvt.s32.f32 %v457
        %v460 = vcvt.s32.f32 %v458
        %vm461 = vcmp.lt.s32.totalorder %v453, %v454
        %v462 = vsel %vm461, 1, 0
        %v463 = vcvt.s32.f32 %v462
        %v464 = vmul.f32 %v459, %v463
        %v465 = vmul.f32 %v460, %v463
        %v466 = vadd.s32 %v453, 128
        %v467 = vand.u32 %v453, 15
        %v468 = vand.u32 %v466, 15
        %v469 = vshra.s32 %v453, 4
        %v470 = vshra.s32 %v466, 4
        %vm471 = vcmp.eq.s32.totalorder %v450, %v467
        %vm472 = vcmp.eq.s32.totalorder %v450, %v468
        %vm473 = vcmp.eq.s32.totalorder %v451, %v467
        %vm474 = vcmp.eq.s32.totalorder %v451, %v468
        %v475 = vsel %vm471, 1, 0
        %v476 = vsel %vm472, 1, 0
        %v477 = vsel %vm473, 1, 0
        %v478 = vsel %vm474, 1, 0
        %v479 = vcvt.s32.f32 %v475
        %v480 = vcvt.s32.f32 %v476
        %v481 = vcvt.s32.f32 %v477
        %v482 = vcvt.s32.f32 %v478
        %v483 = vsub.s32 %v467, %v450
        %v484 = vsub.s32 %v468, %v450
        %v485 = vsub.s32 %v467, %v451
        %v486 = vsub.s32 %v468, %v451
        %v487 = vsub.s32 %v469, 4
        %v488 = vsub.s32 %v470, 4
        %vm489 = vcmp.eq.s32.totalorder %v483, %v487
        %vm490 = vcmp.eq.s32.totalorder %v484, %v488
        %vm491 = vcmp.eq.s32.totalorder %v485, %v487
        %vm492 = vcmp.eq.s32.totalorder %v486, %v488
        %v493 = vsel %vm489, 1, 0
        %v494 = vsel %vm490, 1, 0
        %v495 = vsel %vm491, 1, 0
        %v496 = vsel %vm492, 1, 0
        %v497 = vcvt.s32.f32 %v493
        %v498 = vcvt.s32.f32 %v494
        %v499 = vcvt.s32.f32 %v495
        %v500 = vcvt.s32.f32 %v496
        %vm501 = vcmp.eq.s32.totalorder %v450, %v469
        %vm502 = vcmp.eq.s32.totalorder %v450, %v470
        %vm503 = vcmp.eq.s32.totalorder %v451, %v469
        %vm504 = vcmp.eq.s32.totalorder %v451, %v470
        %v505 = vsel %vm501, 1, 0
        %v506 = vsel %vm502, 1, 0
        %v507 = vsel %vm503, 1, 0
        %v508 = vsel %vm504, 1, 0
        %v509 = vcvt.s32.f32 %v505
        %v510 = vcvt.s32.f32 %v506
        %v511 = vcvt.s32.f32 %v507
        %v512 = vcvt.s32.f32 %v508
        %v513 = vadd.s32 %v450, 16
        %v514 = vadd.s32 %v450, 24
        %v515 = vadd.s32 %v450, 32
        %v516 = vadd.s32 %v450, 40
        %v517 = vadd.s32 %v450, 48
        %v518 = vadd.s32 %v450, 56
        %v519 = vadd.s32 %v450, 64
        %v520 = vadd.s32 %v450, 72
        %v521 = vadd.s32 %v450, 80
        %v522 = vadd.s32 %v450, 88
        %v523 = vadd.s32 %v450, 96
        %v524 = vadd.s32 %v450, 104
        %v525 = vadd.s32 %v450, 112
        %v526 = vadd.s32 %v450, 120
        %v527 = vadd.s32 %v450, 128
        %v528 = vadd.s32 %v450, 136
        %v529 = vand.u32 %v450, 15
        %v530 = vand.u32 %v451, 15
        %v531 = vand.u32 %v513, 15
        %v532 = vand.u32 %v514, 15
        %v533 = vand.u32 %v515, 15
        %v534 = vand.u32 %v516, 15
        %v535 = vand.u32 %v517, 15
        %v536 = vand.u32 %v518, 15
        %v537 = vand.u32 %v519, 15
        %v538 = vand.u32 %v520, 15
        %v539 = vand.u32 %v521, 15
        %v540 = vand.u32 %v522, 15
        %v541 = vand.u32 %v523, 15
        %v542 = vand.u32 %v524, 15
        %v543 = vand.u32 %v525, 15
        %v544 = vand.u32 %v526, 15
        %v545 = vand.u32 %v527, 15
        %v546 = vand.u32 %v528, 15
        %v547 = vshra.s32 %v450, 4
        %v548 = vshra.s32 %v451, 4
        %v549 = vshra.s32 %v513, 4
        %v550 = vshra.s32 %v514, 4
        %v551 = vshra.s32 %v515, 4
        %v552 = vshra.s32 %v516, 4
        %v553 = vshra.s32 %v517, 4
        %v554 = vshra.s32 %v518, 4
        %v555 = vshra.s32 %v519, 4
        %v556 = vshra.s32 %v520, 4
        %v557 = vshra.s32 %v521, 4
        %v558 = vshra.s32 %v522, 4
        %v559 = vshra.s32 %v523, 4
        %v560 = vshra.s32 %v524, 4
        %v561 = vshra.s32 %v525, 4
        %v562 = vshra.s32 %v526, 4
        %v563 = vshra.s32 %v527, 4
        %v564 = vshra.s32 %v528, 4
        %v565 = vadd.s32 %v529, %v547
        %v566 = vadd.s32 %v530, %v548
        %v567 = vadd.s32 %v531, %v549
        %v568 = vadd.s32 %v532, %v550
        %v569 = vadd.s32 %v533, %v551
        %v570 = vadd.s32 %v534, %v552
        %v571 = vadd.s32 %v535, %v553
        %v572 = vadd.s32 %v536, %v554
        %v573 = vadd.s32 %v537, %v555
        %v574 = vadd.s32 %v538, %v556
        %v575 = vadd.s32 %v539, %v557
        %v576 = vadd.s32 %v540, %v558
        %v577 = vadd.s32 %v541, %v559
        %v578 = vadd.s32 %v542, %v560
        %v579 = vadd.s32 %v543, %v561
        %v580 = vadd.s32 %v544, %v562
        %v581 = vadd.s32 %v545, %v563
        %v582 = vadd.s32 %v546, %v564
        %v583 = vsub.s32 %v565, 4
        %v584 = vsub.s32 %v566, 4
        %v585 = vsub.s32 %v567, 4
        %v586 = vsub.s32 %v568, 4
        %v587 = vsub.s32 %v569, 4
        %v588 = vsub.s32 %v570, 4
        %v589 = vsub.s32 %v571, 4
        %v590 = vsub.s32 %v572, 4
        %v591 = vsub.s32 %v573, 4
        %v592 = vsub.s32 %v574, 4
        %v593 = vsub.s32 %v575, 4
        %v594 = vsub.s32 %v576, 4
        %v595 = vsub.s32 %v577, 4
        %v596 = vsub.s32 %v578, 4
        %v597 = vsub.s32 %v579, 4
        %v598 = vsub.s32 %v580, 4
        %v599 = vsub.s32 %v581, 4
        %v600 = vsub.s32 %v582, 4
        %vm601 = vcmp.eq.s32.totalorder %v453, %v583
        %vm602 = vcmp.eq.s32.totalorder %v453, %v584
        %vm603 = vcmp.eq.s32.totalorder %v453, %v585
        %vm604 = vcmp.eq.s32.totalorder %v453, %v586
        %vm605 = vcmp.eq.s32.totalorder %v453, %v587
        %vm606 = vcmp.eq.s32.totalorder %v453, %v588
        %vm607 = vcmp.eq.s32.totalorder %v453, %v589
        %vm608 = vcmp.eq.s32.totalorder %v453, %v590
        %vm609 = vcmp.eq.s32.totalorder %v453, %v591
        %vm610 = vcmp.eq.s32.totalorder %v453, %v592
        %vm611 = vcmp.eq.s32.totalorder %v453, %v593
        %vm612 = vcmp.eq.s32.totalorder %v453, %v594
        %vm613 = vcmp.eq.s32.totalorder %v453, %v595
        %vm614 = vcmp.eq.s32.totalorder %v453, %v596
        %vm615 = vcmp.eq.s32.totalorder %v453, %v597
        %vm616 = vcmp.eq.s32.totalorder %v453, %v598
        %vm617 = vcmp.eq.s32.totalorder %v453, %v599
        %vm618 = vcmp.eq.s32.totalorder %v453, %v600
        %v619 = vsel %vm601, 1, 0
        %v620 = vsel %vm602, 1, 0
        %v621 = vsel %vm603, 1, 0
        %v622 = vsel %vm604, 1, 0
        %v623 = vsel %vm605, 1, 0
        %v624 = vsel %vm606, 1, 0
        %v625 = vsel %vm607, 1, 0
        %v626 = vsel %vm608, 1, 0
        %v627 = vsel %vm609, 1, 0
        %v628 = vsel %vm610, 1, 0
        %v629 = vsel %vm611, 1, 0
        %v630 = vsel %vm612, 1, 0
        %v631 = vsel %vm613, 1, 0
        %v632 = vsel %vm614, 1, 0
        %v633 = vsel %vm615, 1, 0
        %v634 = vsel %vm616, 1, 0
        %v635 = vsel %vm617, 1, 0
        %v636 = vsel %vm618, 1, 0
        %v637 = vcvt.s32.f32 %v619
        %v638 = vcvt.s32.f32 %v620
        %v639 = vcvt.s32.f32 %v621
        %v640 = vcvt.s32.f32 %v622
        %v641 = vcvt.s32.f32 %v623
        %v642 = vcvt.s32.f32 %v624
        %v643 = vcvt.s32.f32 %v625
        %v644 = vcvt.s32.f32 %v626
        %v645 = vcvt.s32.f32 %v627
        %v646 = vcvt.s32.f32 %v628
        %v647 = vcvt.s32.f32 %v629
        %v648 = vcvt.s32.f32 %v630
        %v649 = vcvt.s32.f32 %v631
        %v650 = vcvt.s32.f32 %v632
        %v651 = vcvt.s32.f32 %v633
        %v652 = vcvt.s32.f32 %v634
        %v653 = vcvt.s32.f32 %v635
        %v654 = vcvt.s32.f32 %v636
        %v655 = vmul.f32 %v447, %v459
        %v656 = vmul.f32 %v448, %v460
        %v657 = vld [vmem:[%s2] sm:$0xff]
        %v658 = vld [vmem:[%s2 + $0x8] sm:$0xff]
        %v659 = vld [vmem:[%s2 + $0x10] sm:$0xff]
        %v660 = vld [vmem:[%s2 + $0x18] sm:$0xff]
        %v661 = vld [vmem:[%s3] sm:$0x1]
        %v663 = vlaneseq
        %v664 = vshrl.u32 %v663, 7
        %v665 = vsub.s32 0, %v664
        %v666 = vrot.slane %v661, %v665
        %vm668 = vcmask 261120
        %v670 = vsel %vm668, %v655, 0
        %v673 = vsel %vm668, %v656, 0
        %675 = vmatprep.subr.mxu0 0.0
        %676 = vmatpush1.msra.mxu0 %v657
        %677 = vmatprep.subr.mxu0 0.0
        %678 = vmatpush1.msra.mxu0 %v658
        %679 = vmatprep.subr.mxu0 0.0
        %680 = vmatpush1.msra.mxu0 %v659
        %681 = vmatprep.subr.mxu0 0.0
        %682 = vmatpush1.msra.mxu0 %v660
        %683 = vmatprep.subr.mxu0 0.0
        %684 = vmatpush1.msra.mxu0 0.0
        %685 = vmatprep.subr.mxu0 0.0
        %686 = vmatpush1.msra.mxu0 0.0
        %687 = vmatprep.subr.mxu0 0.0
        %688 = vmatpush1.msra.mxu0 0.0
        %689 = vmatprep.subr.mxu0 0.0
        %690 = vmatpush1.msra.mxu0 0.0
        %691 = vmatprep.subr.mxu0 0.0
        %692 = vmatpush1.msra.mxu0 0.0
        %693 = vmatprep.subr.mxu0 0.0
        %694 = vmatpush1.msra.mxu0 0.0
        %695 = vmatprep.subr.mxu0 0.0
        %696 = vmatpush1.msra.mxu0 0.0
        %697 = vmatprep.subr.mxu0 0.0
        %698 = vmatpush1.msra.mxu0 0.0
        %699 = vmatprep.subr.mxu0 0.0
        %700 = vmatpush1.msra.mxu0 0.0
        %701 = vmatprep.subr.mxu0 0.0
        %702 = vmatpush1.msra.mxu0 0.0
        %703 = vmatprep.subr.mxu0 0.0
        %704 = vmatpush1.msra.mxu0 0.0
        %705 = vmatprep.subr.mxu0 0.0
        %706 = vmatpush1.msra.mxu0 0.0
        %707 = vmatprep.subr.mxu0 0.0
        %708 = vmatpush1.msra.mxu0 0.0
        %709 = vmatprep.subr.mxu0 0.0
        %710 = vmatpush1.msra.mxu0 0.0
        %711 = vmatprep.subr.mxu0 0.0
        %712 = vmatpush1.msra.mxu0 0.0
        %713 = vmatprep.subr.mxu0 0.0
        %714 = vmatpush1.msra.mxu0 0.0
        %715 = vmatprep.subr.mxu0 0.0
        %716 = vmatpush1.msra.mxu0 0.0
        %717 = vmatprep.subr.mxu0 0.0
        %718 = vmatpush1.msra.mxu0 0.0
        %719 = vmatprep.subr.mxu0 0.0
        %720 = vmatpush1.msra.mxu0 0.0
        %721 = vmatprep.subr.mxu0 0.0
        %722 = vmatpush1.msra.mxu0 0.0
        %723 = vmatprep.subr.mxu0 0.0
        %724 = vmatpush1.msra.mxu0 0.0
        %725 = vmatprep.subr.mxu0 0.0
        %726 = vmatpush1.msra.mxu0 0.0
        %727 = vmatprep.subr.mxu0 0.0
        %728 = vmatpush1.msra.mxu0 0.0
        %729 = vmatprep.subr.mxu0 0.0
        %730 = vmatpush1.msra.mxu0 0.0
        %731 = vmatprep.subr.mxu0 0.0
        %732 = vmatpush1.msra.mxu0 0.0
        %733 = vmatprep.subr.mxu0 0.0
        %734 = vmatpush1.msra.mxu0 0.0
        %735 = vmatprep.subr.mxu0 0.0
        %736 = vmatpush1.msra.mxu0 0.0
        %737 = vmatprep.subr.mxu0 0.0
        %738 = vmatpush1.msra.mxu0 0.0
        %739 = vmatprep.mubr.f32.mxu0 0.0
        %740 = vmatmul.mubr.f32.gmra.mrb[0].mxu0 %v670
        %v741 = vpop.f32.mrb[0].mxu0
        %v742 = vadd.f32 %v666, %v741
        %v743 = vpop.f32.mrb[0].mxu0
        %744 = vmatprep.mubr.f32.mxu0 0.0
        %745 = vmatmul.mubr.f32.gmra.mrb[0].mxu0 %v673
        %v746 = vpop.f32.mrb[0].mxu0
        %v747 = vadd.f32 %v666, %v746
        %v748 = vpop.f32.mrb[0].mxu0
        %749 = vdwg.mxu0
        %752 = vrot.lane.b32.xlu0 %v742, 32
        %v753 = vpop.permute.xlu0 %752
        %754 = vrot.lane.b32.xlu0 %v747, 32
        %v755 = vpop.permute.xlu0 %754
        %vm756 = vcmask 72704
        %v757 = vsel %vm756, %v753, 0
        %v759 = vsel %vm756, %v755, 0
        %vm761 = vcmask 1040384
        %v763 = vsel %vm761, %v511, 0
        %v766 = vsel %vm761, %v512, 0
        %768 = vmatprep.subr.mxu0 %v510
        %769 = vmatpush1.msra.mxu0 %v509
        %770 = vmatprep.subr.mxu0 %v766
        %771 = vmatpush1.msra.mxu0 %v763
        %772 = vmatprep.subr.mxu0 0.0
        %773 = vmatpush1.msra.mxu0 0.0
        %774 = vmatprep.subr.mxu0 0.0
        %775 = vmatpush1.msra.mxu0 0.0
        %776 = vmatprep.subr.mxu0 0.0
        %777 = vmatpush1.msra.mxu0 0.0
        %778 = vmatprep.subr.mxu0 0.0
        %779 = vmatpush1.msra.mxu0 0.0
        %780 = vmatprep.subr.mxu0 0.0
        %781 = vmatpush1.msra.mxu0 0.0
        %782 = vmatprep.subr.mxu0 0.0
        %783 = vmatpush1.msra.mxu0 0.0
        %784 = vmatprep.subr.mxu0 0.0
        %785 = vmatpush1.msra.mxu0 0.0
        %786 = vmatprep.subr.mxu0 0.0
        %787 = vmatpush1.msra.mxu0 0.0
        %788 = vmatprep.subr.mxu0 0.0
        %789 = vmatpush1.msra.mxu0 0.0
        %790 = vmatprep.subr.mxu0 0.0
        %791 = vmatpush1.msra.mxu0 0.0
        %792 = vmatprep.subr.mxu0 0.0
        %793 = vmatpush1.msra.mxu0 0.0
        %794 = vmatprep.subr.mxu0 0.0
        %795 = vmatpush1.msra.mxu0 0.0
        %796 = vmatprep.subr.mxu0 0.0
        %797 = vmatpush1.msra.mxu0 0.0
        %798 = vmatprep.subr.mxu0 0.0
        %799 = vmatpush1.msra.mxu0 0.0
        %800 = vmatprep.subr.mxu0 0.0
        %801 = vmatpush1.msra.mxu0 0.0
        %802 = vmatprep.subr.mxu0 0.0
        %803 = vmatpush1.msra.mxu0 0.0
        %804 = vmatprep.subr.mxu0 0.0
        %805 = vmatpush1.msra.mxu0 0.0
        %806 = vmatprep.subr.mxu0 0.0
        %807 = vmatpush1.msra.mxu0 0.0
        %808 = vmatprep.subr.mxu0 0.0
        %809 = vmatpush1.msra.mxu0 0.0
        %810 = vmatprep.subr.mxu0 0.0
        %811 = vmatpush1.msra.mxu0 0.0
        %812 = vmatprep.subr.mxu0 0.0
        %813 = vmatpush1.msra.mxu0 0.0
        %814 = vmatprep.subr.mxu0 0.0
        %815 = vmatpush1.msra.mxu0 0.0
        %816 = vmatprep.subr.mxu0 0.0
        %817 = vmatpush1.msra.mxu0 0.0
        %818 = vmatprep.subr.mxu0 0.0
        %819 = vmatpush1.msra.mxu0 0.0
        %820 = vmatprep.subr.mxu0 0.0
        %821 = vmatpush1.msra.mxu0 0.0
        %822 = vmatprep.subr.mxu0 0.0
        %823 = vmatpush1.msra.mxu0 0.0
        %824 = vmatprep.subr.mxu0 0.0
        %825 = vmatpush1.msra.mxu0 0.0
        %826 = vmatprep.subr.mxu0 0.0
        %827 = vmatpush1.msra.mxu0 0.0
        %828 = vmatprep.subr.mxu0 0.0
        %829 = vmatpush1.msra.mxu0 0.0
        %830 = vmatprep.subr.mxu0 0.0
        %831 = vmatpush1.msra.mxu0 0.0
        %832 = vmatprep.mubr.f32.mxu0 0.0
        %833 = vmatmul.mubr.f32.gmra.mrb[0].mxu0 %v757
        %v834 = vpop.f32.mrb[0].mxu0
        %v835 = vadd.f32 0.0, %v834
        %v836 = vpop.f32.mrb[0].mxu0
        %v837 = vadd.f32 0.0, %v836
        %838 = vmatprep.mubr.f32.mxu0 0.0
        %839 = vmatmul.mubr.f32.gmra.mrb[0].mxu0 %v759
        %v840 = vpop.f32.mrb[0].mxu0
        %v841 = vadd.f32 0.0, %v840
        %v842 = vpop.f32.mrb[0].mxu0
        %v843 = vadd.f32 0.0, %v842
        %844 = vdwg.mxu0
        %v845 = vmul.f32 %v835, %v479
        %v846 = vmul.f32 %v837, %v480
        %v847 = vmul.f32 %v841, %v481
        %v848 = vmul.f32 %v843, %v482
        %vm849 = vcmask 130048
        %v851 = vsel %vm849, %v846, 0
        %v854 = vsel %vm849, %v848, 0
        %856 = vmatprep.subr.mxu0 0.0
        %857 = vmatpush1.msra.mxu0 %v637
        %858 = vmatprep.subr.mxu0 0.0
        %859 = vmatpush1.msra.mxu0 %v638
        %860 = vmatprep.subr.mxu0 0.0
        %861 = vmatpush1.msra.mxu0 %v639
        %862 = vmatprep.subr.mxu0 0.0
        %863 = vmatpush1.msra.mxu0 %v640
        %864 = vmatprep.subr.mxu0 0.0
        %865 = vmatpush1.msra.mxu0 %v641
        %866 = vmatprep.subr.mxu0 0.0
        %867 = vmatpush1.msra.mxu0 %v642
        %868 = vmatprep.subr.mxu0 0.0
        %869 = vmatpush1.msra.mxu0 %v643
        %870 = vmatprep.subr.mxu0 0.0
        %871 = vmatpush1.msra.mxu0 %v644
        %872 = vmatprep.subr.mxu0 0.0
        %873 = vmatpush1.msra.mxu0 %v645
        %874 = vmatprep.subr.mxu0 0.0
        %875 = vmatpush1.msra.mxu0 %v646
        %876 = vmatprep.subr.mxu0 0.0
        %877 = vmatpush1.msra.mxu0 %v647
        %878 = vmatprep.subr.mxu0 0.0
        %879 = vmatpush1.msra.mxu0 %v648
        %880 = vmatprep.subr.mxu0 0.0
        %881 = vmatpush1.msra.mxu0 %v649
        %882 = vmatprep.subr.mxu0 0.0
        %883 = vmatpush1.msra.mxu0 %v650
        %884 = vmatprep.subr.mxu0 0.0
        %885 = vmatpush1.msra.mxu0 %v651
        %886 = vmatprep.subr.mxu0 0.0
        %887 = vmatpush1.msra.mxu0 %v652
        %888 = vmatprep.subr.mxu0 0.0
        %889 = vmatpush1.msra.mxu0 %v653
        %890 = vmatprep.subr.mxu0 0.0
        %891 = vmatpush1.msra.mxu0 %v654
        %892 = vmatprep.subr.mxu0 0.0
        %893 = vmatpush1.msra.mxu0 0.0
        %894 = vmatprep.subr.mxu0 0.0
        %895 = vmatpush1.msra.mxu0 0.0
        %896 = vmatprep.subr.mxu0 0.0
        %897 = vmatpush1.msra.mxu0 0.0
        %898 = vmatprep.subr.mxu0 0.0
        %899 = vmatpush1.msra.mxu0 0.0
        %900 = vmatprep.subr.mxu0 0.0
        %901 = vmatpush1.msra.mxu0 0.0
        %902 = vmatprep.subr.mxu0 0.0
        %903 = vmatpush1.msra.mxu0 0.0
        %904 = vmatprep.subr.mxu0 0.0
        %905 = vmatpush1.msra.mxu0 0.0
        %906 = vmatprep.subr.mxu0 0.0
        %907 = vmatpush1.msra.mxu0 0.0
        %908 = vmatprep.subr.mxu0 0.0
        %909 = vmatpush1.msra.mxu0 0.0
        %910 = vmatprep.subr.mxu0 0.0
        %911 = vmatpush1.msra.mxu0 0.0
        %912 = vmatprep.subr.mxu0 0.0
        %913 = vmatpush1.msra.mxu0 0.0
        %914 = vmatprep.subr.mxu0 0.0
        %915 = vmatpush1.msra.mxu0 0.0
        %916 = vmatprep.subr.mxu0 0.0
        %917 = vmatpush1.msra.mxu0 0.0
        %918 = vmatprep.subr.mxu0 0.0
        %919 = vmatpush1.msra.mxu0 0.0
        %920 = vmatprep.mubr.f32.mxu0 %v851
        %921 = vmatmul.mubr.f32.gmra.mrb[0].mxu0 %v845
        %v922 = vpop.f32.mrb[0].mxu0
        %v923 = vadd.f32 0.0, %v922
        %v924 = vpop.f32.mrb[0].mxu0
        %925 = vmatprep.mubr.f32.mxu0 %v854
        %926 = vmatmul.mubr.f32.gmra.mrb[0].mxu0 %v847
        %v927 = vpop.f32.mrb[0].mxu0
        %v928 = vadd.f32 0.0, %v927
        %v929 = vpop.f32.mrb[0].mxu0
        %930 = vdwg.mxu0
        %931 = vrot.lane.b32.xlu0 %v742, 96
        %v932 = vpop.permute.xlu0 %931
        %933 = vrot.lane.b32.xlu0 %v747, 96
        %v934 = vpop.permute.xlu0 %933
        %v935 = vsel %vm849, %v742, 0
        %v937 = vsel %vm849, %v747, 0
        %v939 = vsel %vm849, %v932, 0
        %v941 = vsel %vm849, %v934, 0
        %943 = vmatprep.subr.mxu0 0.0
        %944 = vmatpush1.xpose.msra.mxu0 %v939
        %945 = vmatprep.subr.mxu0 0.0
        %946 = vmatpush1.xpose.msra.mxu0 %v941
        %947 = vmatprep.subr.mxu0 0.0
        %948 = vmatpush1.xpose.msra.mxu0 0.0
        %949 = vmatprep.subr.mxu0 0.0
        %950 = vmatpush1.xpose.msra.mxu0 0.0
        %951 = vmatprep.subr.mxu0 0.0
        %952 = vmatpush1.xpose.msra.mxu0 0.0
        %953 = vmatprep.subr.mxu0 0.0
        %954 = vmatpush1.xpose.msra.mxu0 0.0
        %955 = vmatprep.subr.mxu0 0.0
        %956 = vmatpush1.xpose.msra.mxu0 0.0
        %957 = vmatprep.subr.mxu0 0.0
        %958 = vmatpush1.xpose.msra.mxu0 0.0
        %959 = vmatprep.subr.mxu0 0.0
        %960 = vmatpush1.xpose.msra.mxu0 0.0
        %961 = vmatprep.subr.mxu0 0.0
        %962 = vmatpush1.xpose.msra.mxu0 0.0
        %963 = vmatprep.subr.mxu0 0.0
        %964 = vmatpush1.xpose.msra.mxu0 0.0
        %965 = vmatprep.subr.mxu0 0.0
        %966 = vmatpush1.xpose.msra.mxu0 0.0
        %967 = vmatprep.subr.mxu0 0.0
        %968 = vmatpush1.xpose.msra.mxu0 0.0
        %969 = vmatprep.subr.mxu0 0.0
        %970 = vmatpush1.xpose.msra.mxu0 0.0
        %971 = vmatprep.subr.mxu0 0.0
        %972 = vmatpush1.xpose.msra.mxu0 0.0
        %973 = vmatprep.subr.mxu0 0.0
        %974 = vmatpush1.xpose.msra.mxu0 0.0
        %975 = vmatprep.subr.mxu0 0.0
        %976 = vmatpush1.xpose.msra.mxu0 0.0
        %977 = vmatprep.subr.mxu0 0.0
        %978 = vmatpush1.xpose.msra.mxu0 0.0
        %979 = vmatprep.subr.mxu0 0.0
        %980 = vmatpush1.xpose.msra.mxu0 0.0
        %981 = vmatprep.subr.mxu0 0.0
        %982 = vmatpush1.xpose.msra.mxu0 0.0
        %983 = vmatprep.subr.mxu0 0.0
        %984 = vmatpush1.xpose.msra.mxu0 0.0
        %985 = vmatprep.subr.mxu0 0.0
        %986 = vmatpush1.xpose.msra.mxu0 0.0
        %987 = vmatprep.subr.mxu0 0.0
        %988 = vmatpush1.xpose.msra.mxu0 0.0
        %989 = vmatprep.subr.mxu0 0.0
        %990 = vmatpush1.xpose.msra.mxu0 0.0
        %991 = vmatprep.subr.mxu0 0.0
        %992 = vmatpush1.xpose.msra.mxu0 0.0
        %993 = vmatprep.subr.mxu0 0.0
        %994 = vmatpush1.xpose.msra.mxu0 0.0
        %995 = vmatprep.subr.mxu0 0.0
        %996 = vmatpush1.xpose.msra.mxu0 0.0
        %997 = vmatprep.subr.mxu0 0.0
        %998 = vmatpush1.xpose.msra.mxu0 0.0
        %999 = vmatprep.subr.mxu0 0.0
        %1000 = vmatpush1.xpose.msra.mxu0 0.0
        %1001 = vmatprep.subr.mxu0 0.0
        %1002 = vmatpush1.xpose.msra.mxu0 0.0
        %1003 = vmatprep.subr.mxu0 0.0
        %1004 = vmatpush1.xpose.msra.mxu0 0.0
        %1005 = vmatprep.subr.mxu0 0.0
        %1006 = vmatpush1.xpose.msra.mxu0 0.0
        %1007 = vmatprep.mubr.f32.mxu0 0.0
        %1008 = vmatmul.mubr.f32.gmra.mrb[0].mxu0 %v935
        %v1009 = vpop.f32.mrb[0].mxu0
        %v1010 = vadd.f32 %v923, %v1009
        %v1011 = vpop.f32.mrb[0].mxu0
        %1012 = vmatprep.mubr.f32.mxu0 0.0
        %1013 = vmatmul.mubr.f32.gmra.mrb[0].mxu0 %v937
        %v1014 = vpop.f32.mrb[0].mxu0
        %v1015 = vadd.f32 %v928, %v1014
        %v1016 = vpop.f32.mrb[0].mxu0
        %1017 = vdwg.mxu0
        %vm1018 = vcmp.gt.f32.partialorder %v464, 0.0
        %vm1019 = vcmp.gt.f32.partialorder %v465, 0.0
        %v1020 = vsel %vm1018, %v1010, -10000.0
        %v1021 = vsel %vm1019, %v1015, -10000.0
        %v1022 = vsel %vm849, %v1020, -inf
        %1023 = vmax.xlane.f32.xlu0 %v1022
        %v1024 = vpop.xlane.xlu0 %1023
        %v1025 = vsel %vm849, %v1021, -inf
        %1026 = vmax.xlane.f32.xlu0 %v1025
        %v1027 = vpop.xlane.xlu0 %1026
        %v1028 = vsub.f32 %v1020, %v1024
        %v1029 = vsub.f32 %v1021, %v1027
        %v1030 = vmul.f32 %v1028, 1.442695
        %v1031 = vpow.pop %v1030
        %v1032 = vmul.f32 %v1029, 1.442695
        %v1033 = vpow.pop %v1032
        %v1034 = vsel %vm849, %v1031, 0.0
        %1035 = vadd.xlane.f32.xlu0 %v1034
        %v1036 = vpop.xlane.xlu0 %1035
        %v1037 = vsel %vm849, %v1033, 0.0
        %1038 = vadd.xlane.f32.xlu0 %v1037
        %v1039 = vpop.xlane.xlu0 %1038
        %v1040 = vrcp.pop %v1036
        %v1041 = vrcp.pop %v1039
        %v1042 = vmul.f32 %v1031, %v1040
        %v1043 = vmul.f32 %v1033, %v1041
        %v1045 = vsel %vm849, %v1042, 0
        %v1048 = vsel %vm849, %v1043, 0
        %1050 = vmatprep.subr.mxu0 %v480
        %1051 = vmatpush1.msra.mxu0 %v479
        %1052 = vmatprep.subr.mxu0 %v482
        %1053 = vmatpush1.msra.mxu0 %v481
        %1054 = vmatprep.subr.mxu0 0.0
        %1055 = vmatpush1.msra.mxu0 0.0
        %1056 = vmatprep.subr.mxu0 0.0
        %1057 = vmatpush1.msra.mxu0 0.0
        %1058 = vmatprep.subr.mxu0 0.0
        %1059 = vmatpush1.msra.mxu0 0.0
        %1060 = vmatprep.subr.mxu0 0.0
        %1061 = vmatpush1.msra.mxu0 0.0
        %1062 = vmatprep.subr.mxu0 0.0
        %1063 = vmatpush1.msra.mxu0 0.0
        %1064 = vmatprep.subr.mxu0 0.0
        %1065 = vmatpush1.msra.mxu0 0.0
        %1066 = vmatprep.subr.mxu0 0.0
        %1067 = vmatpush1.msra.mxu0 0.0
        %1068 = vmatprep.subr.mxu0 0.0
        %1069 = vmatpush1.msra.mxu0 0.0
        %1070 = vmatprep.subr.mxu0 0.0
        %1071 = vmatpush1.msra.mxu0 0.0
        %1072 = vmatprep.subr.mxu0 0.0
        %1073 = vmatpush1.msra.mxu0 0.0
        %1074 = vmatprep.subr.mxu0 0.0
        %1075 = vmatpush1.msra.mxu0 0.0
        %1076 = vmatprep.subr.mxu0 0.0
        %1077 = vmatpush1.msra.mxu0 0.0
        %1078 = vmatprep.subr.mxu0 0.0
        %1079 = vmatpush1.msra.mxu0 0.0
        %1080 = vmatprep.subr.mxu0 0.0
        %1081 = vmatpush1.msra.mxu0 0.0
        %1082 = vmatprep.subr.mxu0 0.0
        %1083 = vmatpush1.msra.mxu0 0.0
        %1084 = vmatprep.subr.mxu0 0.0
        %1085 = vmatpush1.msra.mxu0 0.0
        %1086 = vmatprep.subr.mxu0 0.0
        %1087 = vmatpush1.msra.mxu0 0.0
        %1088 = vmatprep.subr.mxu0 0.0
        %1089 = vmatpush1.msra.mxu0 0.0
        %1090 = vmatprep.subr.mxu0 0.0
        %1091 = vmatpush1.msra.mxu0 0.0
        %1092 = vmatprep.subr.mxu0 0.0
        %1093 = vmatpush1.msra.mxu0 0.0
        %1094 = vmatprep.subr.mxu0 0.0
        %1095 = vmatpush1.msra.mxu0 0.0
        %1096 = vmatprep.subr.mxu0 0.0
        %1097 = vmatpush1.msra.mxu0 0.0
        %1098 = vmatprep.subr.mxu0 0.0
        %1099 = vmatpush1.msra.mxu0 0.0
        %1100 = vmatprep.subr.mxu0 0.0
        %1101 = vmatpush1.msra.mxu0 0.0
        %1102 = vmatprep.subr.mxu0 0.0
        %1103 = vmatpush1.msra.mxu0 0.0
        %1104 = vmatprep.subr.mxu0 0.0
        %1105 = vmatpush1.msra.mxu0 0.0
        %1106 = vmatprep.subr.mxu0 0.0
        %1107 = vmatpush1.msra.mxu0 0.0
        %1108 = vmatprep.subr.mxu0 0.0
        %1109 = vmatpush1.msra.mxu0 0.0
        %1110 = vmatprep.subr.mxu0 0.0
        %1111 = vmatpush1.msra.mxu0 0.0
        %1112 = vmatprep.subr.mxu0 0.0
        %1113 = vmatpush1.msra.mxu0 0.0
        %1114 = vmatprep.mubr.f32.mxu0 0.0
        %1115 = vmatmul.mubr.f32.gmra.mrb[0].mxu0 %v1045
        %v1116 = vpop.f32.mrb[0].mxu0
        %v1117 = vadd.f32 0.0, %v1116
        %v1118 = vpop.f32.mrb[0].mxu0
        %v1119 = vadd.f32 0.0, %v1118
        %1120 = vmatprep.mubr.f32.mxu0 0.0
        %1121 = vmatmul.mubr.f32.gmra.mrb[0].mxu0 %v1048
        %v1122 = vpop.f32.mrb[0].mxu0
        %v1123 = vadd.f32 0.0, %v1122
        %v1124 = vpop.f32.mrb[0].mxu0
        %v1125 = vadd.f32 0.0, %v1124
        %1126 = vdwg.mxu0
        %v1127 = vmul.f32 %v1117, %v497
        %v1128 = vmul.f32 %v1119, %v498
        %v1129 = vmul.f32 %v1123, %v499
        %v1130 = vmul.f32 %v1125, %v500
        %v1131 = vld [vmem:[%s6] sm:$0xff]
        %v1132 = vld [vmem:[%s6 + $0x8] sm:$0xff]
        %v1133 = vld [vmem:[%s6 + $0x10] sm:$0xff]
        %v1134 = vld [vmem:[%s6 + $0x18] sm:$0xff]
        %v1135 = vld [vmem:[%s6 + $0x20] sm:$0xff]
        %v1136 = vld [vmem:[%s6 + $0x28] sm:$0xff]
        %v1137 = vld [vmem:[%s6 + $0x30] sm:$0xff]
        %v1138 = vld [vmem:[%s6 + $0x38] sm:$0xff]
        %v1139 = vld [vmem:[%s6 + $0x40] sm:$0xff]
        %v1140 = vld [vmem:[%s6 + $0x48] sm:$0xff]
        %v1141 = vld [vmem:[%s6 + $0x50] sm:$0xff]
        %v1142 = vld [vmem:[%s6 + $0x58] sm:$0xff]
        %v1143 = vld [vmem:[%s6 + $0x60] sm:$0xff]
        %v1144 = vld [vmem:[%s6 + $0x68] sm:$0xff]
        %v1145 = vld [vmem:[%s6 + $0x70] sm:$0xff]
        %v1146 = vld [vmem:[%s6 + $0x78] sm:$0xff]
        %v1147 = vld [vmem:[%s6 + $0x80] sm:$0xff]
        %v1148 = vld [vmem:[%s6 + $0x88] sm:$0xff]
        %v1150 = vsel %vm849, %v1128, 0
        %v1153 = vsel %vm849, %v1130, 0
        %1155 = vmatprep.subr.mxu0 0.0
        %1156 = vmatpush1.msra.mxu0 %v1131
        %1157 = vmatprep.subr.mxu0 0.0
        %1158 = vmatpush1.msra.mxu0 %v1132
        %1159 = vmatprep.subr.mxu0 0.0
        %1160 = vmatpush1.msra.mxu0 %v1133
        %1161 = vmatprep.subr.mxu0 0.0
        %1162 = vmatpush1.msra.mxu0 %v1134
        %1163 = vmatprep.subr.mxu0 0.0
        %1164 = vmatpush1.msra.mxu0 %v1135
        %1165 = vmatprep.subr.mxu0 0.0
        %1166 = vmatpush1.msra.mxu0 %v1136
        %1167 = vmatprep.subr.mxu0 0.0
        %1168 = vmatpush1.msra.mxu0 %v1137
        %1169 = vmatprep.subr.mxu0 0.0
        %1170 = vmatpush1.msra.mxu0 %v1138
        %1171 = vmatprep.subr.mxu0 0.0
        %1172 = vmatpush1.msra.mxu0 %v1139
        %1173 = vmatprep.subr.mxu0 0.0
        %1174 = vmatpush1.msra.mxu0 %v1140
        %1175 = vmatprep.subr.mxu0 0.0
        %1176 = vmatpush1.msra.mxu0 %v1141
        %1177 = vmatprep.subr.mxu0 0.0
        %1178 = vmatpush1.msra.mxu0 %v1142
        %1179 = vmatprep.subr.mxu0 0.0
        %1180 = vmatpush1.msra.mxu0 %v1143
        %1181 = vmatprep.subr.mxu0 0.0
        %1182 = vmatpush1.msra.mxu0 %v1144
        %1183 = vmatprep.subr.mxu0 0.0
        %1184 = vmatpush1.msra.mxu0 %v1145
        %1185 = vmatprep.subr.mxu0 0.0
        %1186 = vmatpush1.msra.mxu0 %v1146
        %1187 = vmatprep.subr.mxu0 0.0
        %1188 = vmatpush1.msra.mxu0 %v1147
        %1189 = vmatprep.subr.mxu0 0.0
        %1190 = vmatpush1.msra.mxu0 %v1148
        %1191 = vmatprep.subr.mxu0 0.0
        %1192 = vmatpush1.msra.mxu0 0.0
        %1193 = vmatprep.subr.mxu0 0.0
        %1194 = vmatpush1.msra.mxu0 0.0
        %1195 = vmatprep.subr.mxu0 0.0
        %1196 = vmatpush1.msra.mxu0 0.0
        %1197 = vmatprep.subr.mxu0 0.0
        %1198 = vmatpush1.msra.mxu0 0.0
        %1199 = vmatprep.subr.mxu0 0.0
        %1200 = vmatpush1.msra.mxu0 0.0
        %1201 = vmatprep.subr.mxu0 0.0
        %1202 = vmatpush1.msra.mxu0 0.0
        %1203 = vmatprep.subr.mxu0 0.0
        %1204 = vmatpush1.msra.mxu0 0.0
        %1205 = vmatprep.subr.mxu0 0.0
        %1206 = vmatpush1.msra.mxu0 0.0
        %1207 = vmatprep.subr.mxu0 0.0
        %1208 = vmatpush1.msra.mxu0 0.0
        %1209 = vmatprep.subr.mxu0 0.0
        %1210 = vmatpush1.msra.mxu0 0.0
        %1211 = vmatprep.subr.mxu0 0.0
        %1212 = vmatpush1.msra.mxu0 0.0
        %1213 = vmatprep.subr.mxu0 0.0
        %1214 = vmatpush1.msra.mxu0 0.0
        %1215 = vmatprep.subr.mxu0 0.0
        %1216 = vmatpush1.msra.mxu0 0.0
        %1217 = vmatprep.subr.mxu0 0.0
        %1218 = vmatpush1.msra.mxu0 0.0
        %1219 = vmatprep.mubr.f32.mxu0 %v1150
        %1220 = vmatmul.mubr.f32.gmra.mrb[0].mxu0 %v1127
        %v1221 = vpop.f32.mrb[0].mxu0
        %v1222 = vadd.f32 0.0, %v1221
        %v1223 = vpop.f32.mrb[0].mxu0
        %1224 = vmatprep.mubr.f32.mxu0 %v1153
        %1225 = vmatmul.mubr.f32.gmra.mrb[0].mxu0 %v1129
        %v1226 = vpop.f32.mrb[0].mxu0
        %v1227 = vadd.f32 0.0, %v1226
        %v1228 = vpop.f32.mrb[0].mxu0
        %1229 = vdwg.mxu0
        %1230 = vrot.lane.b32.xlu0 %v742, 64
        %v1231 = vpop.permute.xlu0 %1230
        %1232 = vrot.lane.b32.xlu0 %v747, 64
        %v1233 = vpop.permute.xlu0 %1232
        %1236 = vmatprep.subr.mxu0 0.0
        %1237 = vmatpush1.msra.mxu0 %v1231
        %1238 = vmatprep.subr.mxu0 0.0
        %1239 = vmatpush1.msra.mxu0 %v1233
        %1240 = vmatprep.subr.mxu0 0.0
        %1241 = vmatpush1.msra.mxu0 0.0
        %1242 = vmatprep.subr.mxu0 0.0
        %1243 = vmatpush1.msra.mxu0 0.0
        %1244 = vmatprep.subr.mxu0 0.0
        %1245 = vmatpush1.msra.mxu0 0.0
        %1246 = vmatprep.subr.mxu0 0.0
        %1247 = vmatpush1.msra.mxu0 0.0
        %1248 = vmatprep.subr.mxu0 0.0
        %1249 = vmatpush1.msra.mxu0 0.0
        %1250 = vmatprep.subr.mxu0 0.0
        %1251 = vmatpush1.msra.mxu0 0.0
        %1252 = vmatprep.subr.mxu0 0.0
        %1253 = vmatpush1.msra.mxu0 0.0
        %1254 = vmatprep.subr.mxu0 0.0
        %1255 = vmatpush1.msra.mxu0 0.0
        %1256 = vmatprep.subr.mxu0 0.0
        %1257 = vmatpush1.msra.mxu0 0.0
        %1258 = vmatprep.subr.mxu0 0.0
        %1259 = vmatpush1.msra.mxu0 0.0
        %1260 = vmatprep.subr.mxu0 0.0
        %1261 = vmatpush1.msra.mxu0 0.0
        %1262 = vmatprep.subr.mxu0 0.0
        %1263 = vmatpush1.msra.mxu0 0.0
        %1264 = vmatprep.subr.mxu0 0.0
        %1265 = vmatpush1.msra.mxu0 0.0
        %1266 = vmatprep.subr.mxu0 0.0
        %1267 = vmatpush1.msra.mxu0 0.0
        %1268 = vmatprep.subr.mxu0 0.0
        %1269 = vmatpush1.msra.mxu0 0.0
        %1270 = vmatprep.subr.mxu0 0.0
        %1271 = vmatpush1.msra.mxu0 0.0
        %1272 = vmatprep.subr.mxu0 0.0
        %1273 = vmatpush1.msra.mxu0 0.0
        %1274 = vmatprep.subr.mxu0 0.0
        %1275 = vmatpush1.msra.mxu0 0.0
        %1276 = vmatprep.subr.mxu0 0.0
        %1277 = vmatpush1.msra.mxu0 0.0
        %1278 = vmatprep.subr.mxu0 0.0
        %1279 = vmatpush1.msra.mxu0 0.0
        %1280 = vmatprep.subr.mxu0 0.0
        %1281 = vmatpush1.msra.mxu0 0.0
        %1282 = vmatprep.subr.mxu0 0.0
        %1283 = vmatpush1.msra.mxu0 0.0
        %1284 = vmatprep.subr.mxu0 0.0
        %1285 = vmatpush1.msra.mxu0 0.0
        %1286 = vmatprep.subr.mxu0 0.0
        %1287 = vmatpush1.msra.mxu0 0.0
        %1288 = vmatprep.subr.mxu0 0.0
        %1289 = vmatpush1.msra.mxu0 0.0
        %1290 = vmatprep.subr.mxu0 0.0
        %1291 = vmatpush1.msra.mxu0 0.0
        %1292 = vmatprep.subr.mxu0 0.0
        %1293 = vmatpush1.msra.mxu0 0.0
        %1294 = vmatprep.subr.mxu0 0.0
        %1295 = vmatpush1.msra.mxu0 0.0
        %1296 = vmatprep.subr.mxu0 0.0
        %1297 = vmatpush1.msra.mxu0 0.0
        %1298 = vmatprep.subr.mxu0 0.0
        %1299 = vmatpush1.msra.mxu0 0.0
        %1300 = vmatprep.mubr.f32.mxu0 0.0
        %1301 = vmatmul.mubr.f32.gmra.mrb[0].mxu0 %v1045
        %v1302 = vpop.f32.mrb[0].mxu0
        %v1303 = vadd.f32 %v1222, %v1302
        %v1304 = vpop.f32.mrb[0].mxu0
        %1305 = vmatprep.mubr.f32.mxu0 0.0
        %1306 = vmatmul.mubr.f32.gmra.mrb[0].mxu0 %v1048
        %v1307 = vpop.f32.mrb[0].mxu0
        %v1308 = vadd.f32 %v1227, %v1307
        %v1309 = vpop.f32.mrb[0].mxu0
        %1310 = vdwg.mxu0
        %1311 = vrot.lane.b32.xlu0 %v742, 23
        %v1312 = vpop.permute.xlu0 %1311
        %1313 = vrot.lane.b32.xlu0 %v747, 23
        %v1314 = vpop.permute.xlu0 %1313
        %v1315 = vsel %vm756, %v1312, 0
        %v1317 = vsel %vm756, %v1314, 0
        %1319 = vmatprep.subr.mxu0 %v510
        %1320 = vmatpush1.msra.mxu0 %v509
        %1321 = vmatprep.subr.mxu0 %v766
        %1322 = vmatpush1.msra.mxu0 %v763
        %1323 = vmatprep.subr.mxu0 0.0
        %1324 = vmatpush1.msra.mxu0 0.0
        %1325 = vmatprep.subr.mxu0 0.0
        %1326 = vmatpush1.msra.mxu0 0.0
        %1327 = vmatprep.subr.mxu0 0.0
        %1328 = vmatpush1.msra.mxu0 0.0
        %1329 = vmatprep.subr.mxu0 0.0
        %1330 = vmatpush1.msra.mxu0 0.0
        %1331 = vmatprep.subr.mxu0 0.0
        %1332 = vmatpush1.msra.mxu0 0.0
        %1333 = vmatprep.subr.mxu0 0.0
        %1334 = vmatpush1.msra.mxu0 0.0
        %1335 = vmatprep.subr.mxu0 0.0
        %1336 = vmatpush1.msra.mxu0 0.0
        %1337 = vmatprep.subr.mxu0 0.0
        %1338 = vmatpush1.msra.mxu0 0.0
        %1339 = vmatprep.subr.mxu0 0.0
        %1340 = vmatpush1.msra.mxu0 0.0
        %1341 = vmatprep.subr.mxu0 0.0
        %1342 = vmatpush1.msra.mxu0 0.0
        %1343 = vmatprep.subr.mxu0 0.0
        %1344 = vmatpush1.msra.mxu0 0.0
        %1345 = vmatprep.subr.mxu0 0.0
        %1346 = vmatpush1.msra.mxu0 0.0
        %1347 = vmatprep.subr.mxu0 0.0
        %1348 = vmatpush1.msra.mxu0 0.0
        %1349 = vmatprep.subr.mxu0 0.0
        %1350 = vmatpush1.msra.mxu0 0.0
        %1351 = vmatprep.subr.mxu0 0.0
        %1352 = vmatpush1.msra.mxu0 0.0
        %1353 = vmatprep.subr.mxu0 0.0
        %1354 = vmatpush1.msra.mxu0 0.0
        %1355 = vmatprep.subr.mxu0 0.0
        %1356 = vmatpush1.msra.mxu0 0.0
        %1357 = vmatprep.subr.mxu0 0.0
        %1358 = vmatpush1.msra.mxu0 0.0
        %1359 = vmatprep.subr.mxu0 0.0
        %1360 = vmatpush1.msra.mxu0 0.0
        %1361 = vmatprep.subr.mxu0 0.0
        %1362 = vmatpush1.msra.mxu0 0.0
        %1363 = vmatprep.subr.mxu0 0.0
        %1364 = vmatpush1.msra.mxu0 0.0
        %1365 = vmatprep.subr.mxu0 0.0
        %1366 = vmatpush1.msra.mxu0 0.0
        %1367 = vmatprep.subr.mxu0 0.0
        %1368 = vmatpush1.msra.mxu0 0.0
        %1369 = vmatprep.subr.mxu0 0.0
        %1370 = vmatpush1.msra.mxu0 0.0
        %1371 = vmatprep.subr.mxu0 0.0
        %1372 = vmatpush1.msra.mxu0 0.0
        %1373 = vmatprep.subr.mxu0 0.0
        %1374 = vmatpush1.msra.mxu0 0.0
        %1375 = vmatprep.subr.mxu0 0.0
        %1376 = vmatpush1.msra.mxu0 0.0
        %1377 = vmatprep.subr.mxu0 0.0
        %1378 = vmatpush1.msra.mxu0 0.0
        %1379 = vmatprep.subr.mxu0 0.0
        %1380 = vmatpush1.msra.mxu0 0.0
        %1381 = vmatprep.subr.mxu0 0.0
        %1382 = vmatpush1.msra.mxu0 0.0
        %1383 = vmatprep.mubr.f32.mxu0 0.0
        %1384 = vmatmul.mubr.f32.gmra.mrb[0].mxu0 %v1315
        %v1385 = vpop.f32.mrb[0].mxu0
        %v1386 = vadd.f32 0.0, %v1385
        %v1387 = vpop.f32.mrb[0].mxu0
        %v1388 = vadd.f32 0.0, %v1387
        %1389 = vmatprep.mubr.f32.mxu0 0.0
        %1390 = vmatmul.mubr.f32.gmra.mrb[0].mxu0 %v1317
        %v1391 = vpop.f32.mrb[0].mxu0
        %v1392 = vadd.f32 0.0, %v1391
        %v1393 = vpop.f32.mrb[0].mxu0
        %v1394 = vadd.f32 0.0, %v1393
        %1395 = vdwg.mxu0
        %v1396 = vmul.f32 %v1386, %v479
        %v1397 = vmul.f32 %v1388, %v480
        %v1398 = vmul.f32 %v1392, %v481
        %v1399 = vmul.f32 %v1394, %v482
        %v1401 = vsel %vm849, %v1397, 0
        %v1404 = vsel %vm849, %v1399, 0
        %1406 = vmatprep.subr.mxu0 0.0
        %1407 = vmatpush1.msra.mxu0 %v637
        %1408 = vmatprep.subr.mxu0 0.0
        %1409 = vmatpush1.msra.mxu0 %v638
        %1410 = vmatprep.subr.mxu0 0.0
        %1411 = vmatpush1.msra.mxu0 %v639
        %1412 = vmatprep.subr.mxu0 0.0
        %1413 = vmatpush1.msra.mxu0 %v640
        %1414 = vmatprep.subr.mxu0 0.0
        %1415 = vmatpush1.msra.mxu0 %v641
        %1416 = vmatprep.subr.mxu0 0.0
        %1417 = vmatpush1.msra.mxu0 %v642
        %1418 = vmatprep.subr.mxu0 0.0
        %1419 = vmatpush1.msra.mxu0 %v643
        %1420 = vmatprep.subr.mxu0 0.0
        %1421 = vmatpush1.msra.mxu0 %v644
        %1422 = vmatprep.subr.mxu0 0.0
        %1423 = vmatpush1.msra.mxu0 %v645
        %1424 = vmatprep.subr.mxu0 0.0
        %1425 = vmatpush1.msra.mxu0 %v646
        %1426 = vmatprep.subr.mxu0 0.0
        %1427 = vmatpush1.msra.mxu0 %v647
        %1428 = vmatprep.subr.mxu0 0.0
        %1429 = vmatpush1.msra.mxu0 %v648
        %1430 = vmatprep.subr.mxu0 0.0
        %1431 = vmatpush1.msra.mxu0 %v649
        %1432 = vmatprep.subr.mxu0 0.0
        %1433 = vmatpush1.msra.mxu0 %v650
        %1434 = vmatprep.subr.mxu0 0.0
        %1435 = vmatpush1.msra.mxu0 %v651
        %1436 = vmatprep.subr.mxu0 0.0
        %1437 = vmatpush1.msra.mxu0 %v652
        %1438 = vmatprep.subr.mxu0 0.0
        %1439 = vmatpush1.msra.mxu0 %v653
        %1440 = vmatprep.subr.mxu0 0.0
        %1441 = vmatpush1.msra.mxu0 %v654
        %1442 = vmatprep.subr.mxu0 0.0
        %1443 = vmatpush1.msra.mxu0 0.0
        %1444 = vmatprep.subr.mxu0 0.0
        %1445 = vmatpush1.msra.mxu0 0.0
        %1446 = vmatprep.subr.mxu0 0.0
        %1447 = vmatpush1.msra.mxu0 0.0
        %1448 = vmatprep.subr.mxu0 0.0
        %1449 = vmatpush1.msra.mxu0 0.0
        %1450 = vmatprep.subr.mxu0 0.0
        %1451 = vmatpush1.msra.mxu0 0.0
        %1452 = vmatprep.subr.mxu0 0.0
        %1453 = vmatpush1.msra.mxu0 0.0
        %1454 = vmatprep.subr.mxu0 0.0
        %1455 = vmatpush1.msra.mxu0 0.0
        %1456 = vmatprep.subr.mxu0 0.0
        %1457 = vmatpush1.msra.mxu0 0.0
        %1458 = vmatprep.subr.mxu0 0.0
        %1459 = vmatpush1.msra.mxu0 0.0
        %1460 = vmatprep.subr.mxu0 0.0
        %1461 = vmatpush1.msra.mxu0 0.0
        %1462 = vmatprep.subr.mxu0 0.0
        %1463 = vmatpush1.msra.mxu0 0.0
        %1464 = vmatprep.subr.mxu0 0.0
        %1465 = vmatpush1.msra.mxu0 0.0
        %1466 = vmatprep.subr.mxu0 0.0
        %1467 = vmatpush1.msra.mxu0 0.0
        %1468 = vmatprep.subr.mxu0 0.0
        %1469 = vmatpush1.msra.mxu0 0.0
        %1470 = vmatprep.mubr.f32.mxu0 %v1401
        %1471 = vmatmul.mubr.f32.gmra.mrb[0].mxu0 %v1396
        %v1472 = vpop.f32.mrb[0].mxu0
        %v1473 = vadd.f32 0.0, %v1472
        %v1474 = vpop.f32.mrb[0].mxu0
        %1475 = vmatprep.mubr.f32.mxu0 %v1404
        %1476 = vmatmul.mubr.f32.gmra.mrb[0].mxu0 %v1398
        %v1477 = vpop.f32.mrb[0].mxu0
        %v1478 = vadd.f32 0.0, %v1477
        %v1479 = vpop.f32.mrb[0].mxu0
        %1480 = vdwg.mxu0
        %1481 = vrot.lane.b32.xlu0 %v742, 112
        %v1482 = vpop.permute.xlu0 %1481
        %1483 = vrot.lane.b32.xlu0 %v747, 112
        %v1484 = vpop.permute.xlu0 %1483
        %1485 = vrot.lane.b32.xlu0 %v742, 80
        %v1486 = vpop.permute.xlu0 %1485
        %1487 = vrot.lane.b32.xlu0 %v747, 80
        %v1488 = vpop.permute.xlu0 %1487
        %v1489 = vsel %vm849, %v1482, 0
        %v1491 = vsel %vm849, %v1484, 0
        %v1493 = vsel %vm849, %v1486, 0
        %v1495 = vsel %vm849, %v1488, 0
        %1497 = vmatprep.subr.mxu0 0.0
        %1498 = vmatpush1.xpose.msra.mxu0 %v1493
        %1499 = vmatprep.subr.mxu0 0.0
        %1500 = vmatpush1.xpose.msra.mxu0 %v1495
        %1501 = vmatprep.subr.mxu0 0.0
        %1502 = vmatpush1.xpose.msra.mxu0 0.0
        %1503 = vmatprep.subr.mxu0 0.0
        %1504 = vmatpush1.xpose.msra.mxu0 0.0
        %1505 = vmatprep.subr.mxu0 0.0
        %1506 = vmatpush1.xpose.msra.mxu0 0.0
        %1507 = vmatprep.subr.mxu0 0.0
        %1508 = vmatpush1.xpose.msra.mxu0 0.0
        %1509 = vmatprep.subr.mxu0 0.0
        %1510 = vmatpush1.xpose.msra.mxu0 0.0
        %1511 = vmatprep.subr.mxu0 0.0
        %1512 = vmatpush1.xpose.msra.mxu0 0.0
        %1513 = vmatprep.subr.mxu0 0.0
        %1514 = vmatpush1.xpose.msra.mxu0 0.0
        %1515 = vmatprep.subr.mxu0 0.0
        %1516 = vmatpush1.xpose.msra.mxu0 0.0
        %1517 = vmatprep.subr.mxu0 0.0
        %1518 = vmatpush1.xpose.msra.mxu0 0.0
        %1519 = vmatprep.subr.mxu0 0.0
        %1520 = vmatpush1.xpose.msra.mxu0 0.0
        %1521 = vmatprep.subr.mxu0 0.0
        %1522 = vmatpush1.xpose.msra.mxu0 0.0
        %1523 = vmatprep.subr.mxu0 0.0
        %1524 = vmatpush1.xpose.msra.mxu0 0.0
        %1525 = vmatprep.subr.mxu0 0.0
        %1526 = vmatpush1.xpose.msra.mxu0 0.0
        %1527 = vmatprep.subr.mxu0 0.0
        %1528 = vmatpush1.xpose.msra.mxu0 0.0
        %1529 = vmatprep.subr.mxu0 0.0
        %1530 = vmatpush1.xpose.msra.mxu0 0.0
        %1531 = vmatprep.subr.mxu0 0.0
        %1532 = vmatpush1.xpose.msra.mxu0 0.0
        %1533 = vmatprep.subr.mxu0 0.0
        %1534 = vmatpush1.xpose.msra.mxu0 0.0
        %1535 = vmatprep.subr.mxu0 0.0
        %1536 = vmatpush1.xpose.msra.mxu0 0.0
        %1537 = vmatprep.subr.mxu0 0.0
        %1538 = vmatpush1.xpose.msra.mxu0 0.0
        %1539 = vmatprep.subr.mxu0 0.0
        %1540 = vmatpush1.xpose.msra.mxu0 0.0
        %1541 = vmatprep.subr.mxu0 0.0
        %1542 = vmatpush1.xpose.msra.mxu0 0.0
        %1543 = vmatprep.subr.mxu0 0.0
        %1544 = vmatpush1.xpose.msra.mxu0 0.0
        %1545 = vmatprep.subr.mxu0 0.0
        %1546 = vmatpush1.xpose.msra.mxu0 0.0
        %1547 = vmatprep.subr.mxu0 0.0
        %1548 = vmatpush1.xpose.msra.mxu0 0.0
        %1549 = vmatprep.subr.mxu0 0.0
        %1550 = vmatpush1.xpose.msra.mxu0 0.0
        %1551 = vmatprep.subr.mxu0 0.0
        %1552 = vmatpush1.xpose.msra.mxu0 0.0
        %1553 = vmatprep.subr.mxu0 0.0
        %1554 = vmatpush1.xpose.msra.mxu0 0.0
        %1555 = vmatprep.subr.mxu0 0.0
        %1556 = vmatpush1.xpose.msra.mxu0 0.0
        %1557 = vmatprep.subr.mxu0 0.0
        %1558 = vmatpush1.xpose.msra.mxu0 0.0
        %1559 = vmatprep.subr.mxu0 0.0
        %1560 = vmatpush1.xpose.msra.mxu0 0.0
        %1561 = vmatprep.mubr.f32.mxu0 0.0
        %1562 = vmatmul.mubr.f32.gmra.mrb[0].mxu0 %v1489
        %v1563 = vpop.f32.mrb[0].mxu0
        %v1564 = vadd.f32 %v1473, %v1563
        %v1565 = vpop.f32.mrb[0].mxu0
        %1566 = vmatprep.mubr.f32.mxu0 0.0
        %1567 = vmatmul.mubr.f32.gmra.mrb[0].mxu0 %v1491
        %v1568 = vpop.f32.mrb[0].mxu0
        %v1569 = vadd.f32 %v1478, %v1568
        %v1570 = vpop.f32.mrb[0].mxu0
        %1571 = vdwg.mxu0
        %v1572 = vsel %vm1018, %v1564, -10000.0
        %v1573 = vsel %vm1019, %v1569, -10000.0
        %v1574 = vsel %vm849, %v1572, -inf
        %1575 = vmax.xlane.f32.xlu0 %v1574
        %v1576 = vpop.xlane.xlu0 %1575
        %v1577 = vsel %vm849, %v1573, -inf
        %1578 = vmax.xlane.f32.xlu0 %v1577
        %v1579 = vpop.xlane.xlu0 %1578
        %v1580 = vsub.f32 %v1572, %v1576
        %v1581 = vsub.f32 %v1573, %v1579
        %v1582 = vmul.f32 %v1580, 1.442695
        %v1583 = vpow.pop %v1582
        %v1584 = vmul.f32 %v1581, 1.442695
        %v1585 = vpow.pop %v1584
        %v1586 = vsel %vm849, %v1583, 0.0
        %1587 = vadd.xlane.f32.xlu0 %v1586
        %v1588 = vpop.xlane.xlu0 %1587
        %v1589 = vsel %vm849, %v1585, 0.0
        %1590 = vadd.xlane.f32.xlu0 %v1589
        %v1591 = vpop.xlane.xlu0 %1590
        %v1592 = vrcp.pop %v1588
        %v1593 = vrcp.pop %v1591
        %v1594 = vmul.f32 %v1583, %v1592
        %v1595 = vmul.f32 %v1585, %v1593
        %v1597 = vsel %vm849, %v1594, 0
        %v1600 = vsel %vm849, %v1595, 0
        %1602 = vmatprep.subr.mxu0 %v480
        %1603 = vmatpush1.msra.mxu0 %v479
        %1604 = vmatprep.subr.mxu0 %v482
        %1605 = vmatpush1.msra.mxu0 %v481
        %1606 = vmatprep.subr.mxu0 0.0
        %1607 = vmatpush1.msra.mxu0 0.0
        %1608 = vmatprep.subr.mxu0 0.0
        %1609 = vmatpush1.msra.mxu0 0.0
        %1610 = vmatprep.subr.mxu0 0.0
        %1611 = vmatpush1.msra.mxu0 0.0
        %1612 = vmatprep.subr.mxu0 0.0
        %1613 = vmatpush1.msra.mxu0 0.0
        %1614 = vmatprep.subr.mxu0 0.0
        %1615 = vmatpush1.msra.mxu0 0.0
        %1616 = vmatprep.subr.mxu0 0.0
        %1617 = vmatpush1.msra.mxu0 0.0
        %1618 = vmatprep.subr.mxu0 0.0
        %1619 = vmatpush1.msra.mxu0 0.0
        %1620 = vmatprep.subr.mxu0 0.0
        %1621 = vmatpush1.msra.mxu0 0.0
        %1622 = vmatprep.subr.mxu0 0.0
        %1623 = vmatpush1.msra.mxu0 0.0
        %1624 = vmatprep.subr.mxu0 0.0
        %1625 = vmatpush1.msra.mxu0 0.0
        %1626 = vmatprep.subr.mxu0 0.0
        %1627 = vmatpush1.msra.mxu0 0.0
        %1628 = vmatprep.subr.mxu0 0.0
        %1629 = vmatpush1.msra.mxu0 0.0
        %1630 = vmatprep.subr.mxu0 0.0
        %1631 = vmatpush1.msra.mxu0 0.0
        %1632 = vmatprep.subr.mxu0 0.0
        %1633 = vmatpush1.msra.mxu0 0.0
        %1634 = vmatprep.subr.mxu0 0.0
        %1635 = vmatpush1.msra.mxu0 0.0
        %1636 = vmatprep.subr.mxu0 0.0
        %1637 = vmatpush1.msra.mxu0 0.0
        %1638 = vmatprep.subr.mxu0 0.0
        %1639 = vmatpush1.msra.mxu0 0.0
        %1640 = vmatprep.subr.mxu0 0.0
        %1641 = vmatpush1.msra.mxu0 0.0
        %1642 = vmatprep.subr.mxu0 0.0
        %1643 = vmatpush1.msra.mxu0 0.0
        %1644 = vmatprep.subr.mxu0 0.0
        %1645 = vmatpush1.msra.mxu0 0.0
        %1646 = vmatprep.subr.mxu0 0.0
        %1647 = vmatpush1.msra.mxu0 0.0
        %1648 = vmatprep.subr.mxu0 0.0
        %1649 = vmatpush1.msra.mxu0 0.0
        %1650 = vmatprep.subr.mxu0 0.0
        %1651 = vmatpush1.msra.mxu0 0.0
        %1652 = vmatprep.subr.mxu0 0.0
        %1653 = vmatpush1.msra.mxu0 0.0
        %1654 = vmatprep.subr.mxu0 0.0
        %1655 = vmatpush1.msra.mxu0 0.0
        %1656 = vmatprep.subr.mxu0 0.0
        %1657 = vmatpush1.msra.mxu0 0.0
        %1658 = vmatprep.subr.mxu0 0.0
        %1659 = vmatpush1.msra.mxu0 0.0
        %1660 = vmatprep.subr.mxu0 0.0
        %1661 = vmatpush1.msra.mxu0 0.0
        %1662 = vmatprep.subr.mxu0 0.0
        %1663 = vmatpush1.msra.mxu0 0.0
        %1664 = vmatprep.subr.mxu0 0.0
        %1665 = vmatpush1.msra.mxu0 0.0
        %1666 = vmatprep.mubr.f32.mxu0 0.0
        %1667 = vmatmul.mubr.f32.gmra.mrb[0].mxu0 %v1597
        %v1668 = vpop.f32.mrb[0].mxu0
        %v1669 = vadd.f32 0.0, %v1668
        %v1670 = vpop.f32.mrb[0].mxu0
        %v1671 = vadd.f32 0.0, %v1670
        %1672 = vmatprep.mubr.f32.mxu0 0.0
        %1673 = vmatmul.mubr.f32.gmra.mrb[0].mxu0 %v1600
        %v1674 = vpop.f32.mrb[0].mxu0
        %v1675 = vadd.f32 0.0, %v1674
        %v1676 = vpop.f32.mrb[0].mxu0
        %v1677 = vadd.f32 0.0, %v1676
        %1678 = vdwg.mxu0
        %v1679 = vmul.f32 %v1669, %v497
        %v1680 = vmul.f32 %v1671, %v498
        %v1681 = vmul.f32 %v1675, %v499
        %v1682 = vmul.f32 %v1677, %v500
        %v1684 = vsel %vm849, %v1680, 0
        %v1687 = vsel %vm849, %v1682, 0
        %1689 = vmatprep.subr.mxu0 0.0
        %1690 = vmatpush1.msra.mxu0 %v1131
        %1691 = vmatprep.subr.mxu0 0.0
        %1692 = vmatpush1.msra.mxu0 %v1132
        %1693 = vmatprep.subr.mxu0 0.0
        %1694 = vmatpush1.msra.mxu0 %v1133
        %1695 = vmatprep.subr.mxu0 0.0
        %1696 = vmatpush1.msra.mxu0 %v1134
        %1697 = vmatprep.subr.mxu0 0.0
        %1698 = vmatpush1.msra.mxu0 %v1135
        %1699 = vmatprep.subr.mxu0 0.0
        %1700 = vmatpush1.msra.mxu0 %v1136
        %1701 = vmatprep.subr.mxu0 0.0
        %1702 = vmatpush1.msra.mxu0 %v1137
        %1703 = vmatprep.subr.mxu0 0.0
        %1704 = vmatpush1.msra.mxu0 %v1138
        %1705 = vmatprep.subr.mxu0 0.0
        %1706 = vmatpush1.msra.mxu0 %v1139
        %1707 = vmatprep.subr.mxu0 0.0
        %1708 = vmatpush1.msra.mxu0 %v1140
        %1709 = vmatprep.subr.mxu0 0.0
        %1710 = vmatpush1.msra.mxu0 %v1141
        %1711 = vmatprep.subr.mxu0 0.0
        %1712 = vmatpush1.msra.mxu0 %v1142
        %1713 = vmatprep.subr.mxu0 0.0
        %1714 = vmatpush1.msra.mxu0 %v1143
        %1715 = vmatprep.subr.mxu0 0.0
        %1716 = vmatpush1.msra.mxu0 %v1144
        %1717 = vmatprep.subr.mxu0 0.0
        %1718 = vmatpush1.msra.mxu0 %v1145
        %1719 = vmatprep.subr.mxu0 0.0
        %1720 = vmatpush1.msra.mxu0 %v1146
        %1721 = vmatprep.subr.mxu0 0.0
        %1722 = vmatpush1.msra.mxu0 %v1147
        %1723 = vmatprep.subr.mxu0 0.0
        %1724 = vmatpush1.msra.mxu0 %v1148
        %1725 = vmatprep.subr.mxu0 0.0
        %1726 = vmatpush1.msra.mxu0 0.0
        %1727 = vmatprep.subr.mxu0 0.0
        %1728 = vmatpush1.msra.mxu0 0.0
        %1729 = vmatprep.subr.mxu0 0.0
        %1730 = vmatpush1.msra.mxu0 0.0
        %1731 = vmatprep.subr.mxu0 0.0
        %1732 = vmatpush1.msra.mxu0 0.0
        %1733 = vmatprep.subr.mxu0 0.0
        %1734 = vmatpush1.msra.mxu0 0.0
        %1735 = vmatprep.subr.mxu0 0.0
        %1736 = vmatpush1.msra.mxu0 0.0
        %1737 = vmatprep.subr.mxu0 0.0
        %1738 = vmatpush1.msra.mxu0 0.0
        %1739 = vmatprep.subr.mxu0 0.0
        %1740 = vmatpush1.msra.mxu0 0.0
        %1741 = vmatprep.subr.mxu0 0.0
        %1742 = vmatpush1.msra.mxu0 0.0
        %1743 = vmatprep.subr.mxu0 0.0
        %1744 = vmatpush1.msra.mxu0 0.0
        %1745 = vmatprep.subr.mxu0 0.0
        %1746 = vmatpush1.msra.mxu0 0.0
        %1747 = vmatprep.subr.mxu0 0.0
        %1748 = vmatpush1.msra.mxu0 0.0
        %1749 = vmatprep.subr.mxu0 0.0
        %1750 = vmatpush1.msra.mxu0 0.0
        %1751 = vmatprep.subr.mxu0 0.0
        %1752 = vmatpush1.msra.mxu0 0.0
        %1753 = vmatprep.mubr.f32.mxu0 %v1684
        %1754 = vmatmul.mubr.f32.gmra.mrb[0].mxu0 %v1679
        %v1755 = vpop.f32.mrb[0].mxu0
        %v1756 = vadd.f32 0.0, %v1755
        %v1757 = vpop.f32.mrb[0].mxu0
        %1758 = vmatprep.mubr.f32.mxu0 %v1687
        %1759 = vmatmul.mubr.f32.gmra.mrb[0].mxu0 %v1681
        %v1760 = vpop.f32.mrb[0].mxu0
        %v1761 = vadd.f32 0.0, %v1760
        %v1762 = vpop.f32.mrb[0].mxu0
        %1763 = vdwg.mxu0
        %1764 = vrot.lane.b32.xlu0 %v742, 48
        %v1765 = vpop.permute.xlu0 %1764
        %1766 = vrot.lane.b32.xlu0 %v747, 48
        %v1767 = vpop.permute.xlu0 %1766
        %1770 = vmatprep.subr.mxu0 0.0
        %1771 = vmatpush1.msra.mxu0 %v1765
        %1772 = vmatprep.subr.mxu0 0.0
        %1773 = vmatpush1.msra.mxu0 %v1767
        %1774 = vmatprep.subr.mxu0 0.0
        %1775 = vmatpush1.msra.mxu0 0.0
        %1776 = vmatprep.subr.mxu0 0.0
        %1777 = vmatpush1.msra.mxu0 0.0
        %1778 = vmatprep.subr.mxu0 0.0
        %1779 = vmatpush1.msra.mxu0 0.0
        %1780 = vmatprep.subr.mxu0 0.0
        %1781 = vmatpush1.msra.mxu0 0.0
        %1782 = vmatprep.subr.mxu0 0.0
        %1783 = vmatpush1.msra.mxu0 0.0
        %1784 = vmatprep.subr.mxu0 0.0
        %1785 = vmatpush1.msra.mxu0 0.0
        %1786 = vmatprep.subr.mxu0 0.0
        %1787 = vmatpush1.msra.mxu0 0.0
        %1788 = vmatprep.subr.mxu0 0.0
        %1789 = vmatpush1.msra.mxu0 0.0
        %1790 = vmatprep.subr.mxu0 0.0
        %1791 = vmatpush1.msra.mxu0 0.0
        %1792 = vmatprep.subr.mxu0 0.0
        %1793 = vmatpush1.msra.mxu0 0.0
        %1794 = vmatprep.subr.mxu0 0.0
        %1795 = vmatpush1.msra.mxu0 0.0
        %1796 = vmatprep.subr.mxu0 0.0
        %1797 = vmatpush1.msra.mxu0 0.0
        %1798 = vmatprep.subr.mxu0 0.0
        %1799 = vmatpush1.msra.mxu0 0.0
        %1800 = vmatprep.subr.mxu0 0.0
        %1801 = vmatpush1.msra.mxu0 0.0
        %1802 = vmatprep.subr.mxu0 0.0
        %1803 = vmatpush1.msra.mxu0 0.0
        %1804 = vmatprep.subr.mxu0 0.0
        %1805 = vmatpush1.msra.mxu0 0.0
        %1806 = vmatprep.subr.mxu0 0.0
        %1807 = vmatpush1.msra.mxu0 0.0
        %1808 = vmatprep.subr.mxu0 0.0
        %1809 = vmatpush1.msra.mxu0 0.0
        %1810 = vmatprep.subr.mxu0 0.0
        %1811 = vmatpush1.msra.mxu0 0.0
        %1812 = vmatprep.subr.mxu0 0.0
        %1813 = vmatpush1.msra.mxu0 0.0
        %1814 = vmatprep.subr.mxu0 0.0
        %1815 = vmatpush1.msra.mxu0 0.0
        %1816 = vmatprep.subr.mxu0 0.0
        %1817 = vmatpush1.msra.mxu0 0.0
        %1818 = vmatprep.subr.mxu0 0.0
        %1819 = vmatpush1.msra.mxu0 0.0
        %1820 = vmatprep.subr.mxu0 0.0
        %1821 = vmatpush1.msra.mxu0 0.0
        %1822 = vmatprep.subr.mxu0 0.0
        %1823 = vmatpush1.msra.mxu0 0.0
        %1824 = vmatprep.subr.mxu0 0.0
        %1825 = vmatpush1.msra.mxu0 0.0
        %1826 = vmatprep.subr.mxu0 0.0
        %1827 = vmatpush1.msra.mxu0 0.0
        %1828 = vmatprep.subr.mxu0 0.0
        %1829 = vmatpush1.msra.mxu0 0.0
        %1830 = vmatprep.subr.mxu0 0.0
        %1831 = vmatpush1.msra.mxu0 0.0
        %1832 = vmatprep.subr.mxu0 0.0
        %1833 = vmatpush1.msra.mxu0 0.0
        %1834 = vmatprep.mubr.f32.mxu0 0.0
        %1835 = vmatmul.mubr.f32.gmra.mrb[0].mxu0 %v1597
        %v1836 = vpop.f32.mrb[0].mxu0
        %v1837 = vadd.f32 %v1756, %v1836
        %v1838 = vpop.f32.mrb[0].mxu0
        %1839 = vmatprep.mubr.f32.mxu0 0.0
        %1840 = vmatmul.mubr.f32.gmra.mrb[0].mxu0 %v1600
        %v1841 = vpop.f32.mrb[0].mxu0
        %v1842 = vadd.f32 %v1761, %v1841
        %v1843 = vpop.f32.mrb[0].mxu0
        %1844 = vdwg.mxu0
        %1847 = vrot.lane.b32.xlu0 %v1837, 16
        %v1848 = vpop.permute.xlu0 %1847
        %1849 = vrot.lane.b32.xlu0 %v1842, 16
        %v1850 = vpop.permute.xlu0 %1849
        %v1853 = vsel %vm849, %v1303, %v1848
        %v1854 = vsel %vm849, %v1308, %v1850
        %v1855 = vld [vmem:[%s4] sm:$0xff]
        %v1856 = vld [vmem:[%s4 + $0x8] sm:$0xff]
        %v1857 = vld [vmem:[%s4 + $0x10] sm:$0xff]
        %v1858 = vld [vmem:[%s4 + $0x18] sm:$0xff]
        %v1859 = vld [vmem:[%s5] sm:$0x1]
        %v1861 = vlaneseq
        %v1862 = vshrl.u32 %v1861, 7
        %v1863 = vsub.s32 0, %v1862
        %v1864 = vrot.slane %v1859, %v1863
        %v1867 = vsel %vm668, %v1853, 0
        %v1870 = vsel %vm668, %v1854, 0
        %1872 = vmatprep.subr.mxu0 0.0
        %1873 = vmatpush1.msra.mxu0 %v1855
        %1874 = vmatprep.subr.mxu0 0.0
        %1875 = vmatpush1.msra.mxu0 %v1856
        %1876 = vmatprep.subr.mxu0 0.0
        %1877 = vmatpush1.msra.mxu0 %v1857
        %1878 = vmatprep.subr.mxu0 0.0
        %1879 = vmatpush1.msra.mxu0 %v1858
        %1880 = vmatprep.subr.mxu0 0.0
        %1881 = vmatpush1.msra.mxu0 0.0
        %1882 = vmatprep.subr.mxu0 0.0
        %1883 = vmatpush1.msra.mxu0 0.0
        %1884 = vmatprep.subr.mxu0 0.0
        %1885 = vmatpush1.msra.mxu0 0.0
        %1886 = vmatprep.subr.mxu0 0.0
        %1887 = vmatpush1.msra.mxu0 0.0
        %1888 = vmatprep.subr.mxu0 0.0
        %1889 = vmatpush1.msra.mxu0 0.0
        %1890 = vmatprep.subr.mxu0 0.0
        %1891 = vmatpush1.msra.mxu0 0.0
        %1892 = vmatprep.subr.mxu0 0.0
        %1893 = vmatpush1.msra.mxu0 0.0
        %1894 = vmatprep.subr.mxu0 0.0
        %1895 = vmatpush1.msra.mxu0 0.0
        %1896 = vmatprep.subr.mxu0 0.0
        %1897 = vmatpush1.msra.mxu0 0.0
        %1898 = vmatprep.subr.mxu0 0.0
        %1899 = vmatpush1.msra.mxu0 0.0
        %1900 = vmatprep.subr.mxu0 0.0
        %1901 = vmatpush1.msra.mxu0 0.0
        %1902 = vmatprep.subr.mxu0 0.0
        %1903 = vmatpush1.msra.mxu0 0.0
        %1904 = vmatprep.subr.mxu0 0.0
        %1905 = vmatpush1.msra.mxu0 0.0
        %1906 = vmatprep.subr.mxu0 0.0
        %1907 = vmatpush1.msra.mxu0 0.0
        %1908 = vmatprep.subr.mxu0 0.0
        %1909 = vmatpush1.msra.mxu0 0.0
        %1910 = vmatprep.subr.mxu0 0.0
        %1911 = vmatpush1.msra.mxu0 0.0
        %1912 = vmatprep.subr.mxu0 0.0
        %1913 = vmatpush1.msra.mxu0 0.0
        %1914 = vmatprep.subr.mxu0 0.0
        %1915 = vmatpush1.msra.mxu0 0.0
        %1916 = vmatprep.subr.mxu0 0.0
        %1917 = vmatpush1.msra.mxu0 0.0
        %1918 = vmatprep.subr.mxu0 0.0
        %1919 = vmatpush1.msra.mxu0 0.0
        %1920 = vmatprep.subr.mxu0 0.0
        %1921 = vmatpush1.msra.mxu0 0.0
        %1922 = vmatprep.subr.mxu0 0.0
        %1923 = vmatpush1.msra.mxu0 0.0
        %1924 = vmatprep.subr.mxu0 0.0
        %1925 = vmatpush1.msra.mxu0 0.0
        %1926 = vmatprep.subr.mxu0 0.0
        %1927 = vmatpush1.msra.mxu0 0.0
        %1928 = vmatprep.subr.mxu0 0.0
        %1929 = vmatpush1.msra.mxu0 0.0
        %1930 = vmatprep.subr.mxu0 0.0
        %1931 = vmatpush1.msra.mxu0 0.0
        %1932 = vmatprep.subr.mxu0 0.0
        %1933 = vmatpush1.msra.mxu0 0.0
        %1934 = vmatprep.subr.mxu0 0.0
        %1935 = vmatpush1.msra.mxu0 0.0
        %1936 = vmatprep.mubr.f32.mxu0 0.0
        %1937 = vmatmul.mubr.f32.gmra.mrb[0].mxu0 %v1867
        %v1938 = vpop.f32.mrb[0].mxu0
        %v1939 = vadd.f32 %v1864, %v1938
        %v1940 = vpop.f32.mrb[0].mxu0
        %1941 = vmatprep.mubr.f32.mxu0 0.0
        %1942 = vmatmul.mubr.f32.gmra.mrb[0].mxu0 %v1870
        %v1943 = vpop.f32.mrb[0].mxu0
        %v1944 = vadd.f32 %v1864, %v1943
        %v1945 = vpop.f32.mrb[0].mxu0
        %1946 = vdwg.mxu0
        %v1947 = vadd.f32 %v655, %v1939
        %v1948 = vadd.f32 %v656, %v1944
        %v1949 = vld [vmem:[%s7] sm:$0x1]
        %s1950 = scalar_lea.vmem %s7, 1
        %v1951 = vld [vmem:[%s1950] sm:$0x1]
        %v1952 = vsel %vm668, %v1947, 0.0
        %1953 = vadd.xlane.f32.xlu0 %v1952
        %v1954 = vpop.xlane.xlu0 %1953
        %v1955 = vsel %vm668, %v1948, 0.0
        %1956 = vadd.xlane.f32.xlu0 %v1955
        %v1957 = vpop.xlane.xlu0 %1956
        %v1958 = vrcp.pop 32.0
        %v1959 = vmul.f32 %v1954, %v1958
        %v1960 = vmul.f32 %v1957, %v1958
        %v1961 = vsub.f32 %v1947, %v1959
        %v1962 = vsub.f32 %v1948, %v1960
        %v1963 = vmul.f32 %v1961, %v1961
        %v1964 = vmul.f32 %v1962, %v1962
        %v1965 = vsel %vm668, %v1963, 0.0
        %1966 = vadd.xlane.f32.xlu0 %v1965
        %v1967 = vpop.xlane.xlu0 %1966
        %v1968 = vsel %vm668, %v1964, 0.0
        %1969 = vadd.xlane.f32.xlu0 %v1968
        %v1970 = vpop.xlane.xlu0 %1969
        %v1971 = vmul.f32 %v1967, %v1958
        %v1972 = vmul.f32 %v1970, %v1958
        %v1973 = vadd.f32 %v1971, 1e-05
        %v1974 = vadd.f32 %v1972, 1e-05
        %v1975 = vrsqrt.pop %v1973
        %v1976 = vrsqrt.pop %v1974
        %v1977 = vmul.f32 %v1961, %v1975
        %v1978 = vmul.f32 %v1962, %v1976
        %v1980 = vlaneseq
        %v1981 = vshrl.u32 %v1980, 7
        %v1982 = vsub.s32 0, %v1981
        %v1983 = vrot.slane %v1949, %v1982
        %v1985 = vmul.f32 %v1977, %v1983
        %v1986 = vmul.f32 %v1978, %v1983
        %v1988 = vlaneseq
        %v1989 = vshrl.u32 %v1988, 7
        %v1990 = vsub.s32 0, %v1989
        %v1991 = vrot.slane %v1951, %v1990
        %v1993 = vadd.f32 %v1985, %v1991
        %v1994 = vadd.f32 %v1986, %v1991
        %v1995 = vmul.f32 %v1993, %v459
        %v1996 = vmul.f32 %v1994, %v460
        %vm1999 = vcmask 1046528
        %v2000 = vrot.slane %v1995, 1
        %v2001 = vrot.slane %v1996, 1
        %v2002 = vsel %vm1999, %v2000, %v2001
        %2003 = vrot.lane.b32.xlu0 %v2000, 32
        %v2004 = vpop.permute.xlu0 %2003
        %2005 = vrot.lane.b32.xlu0 %v2002, 32
        %v2006 = vpop.permute.xlu0 %2005
        %2007 = vrot.lane.b32.xlu0 %v2001, 32
        %v2008 = vpop.permute.xlu0 %2007
        %vm2013 = vcmask 1045504
        %v2014 = vrot.slane %v1995, 2
        %v2015 = vrot.slane %v1996, 2
        %v2016 = vsel %vm2013, %v2014, %v2015
        %v2017 = vrot.slane 0.0, 2
        %v2018 = vsel %vm2013, %v2015, %v2017
        %2019 = vrot.lane.b32.xlu0 %v2014, 64
        %v2020 = vpop.permute.xlu0 %2019
        %2021 = vrot.lane.b32.xlu0 %v2016, 64
        %v2022 = vpop.permute.xlu0 %2021
        %2023 = vrot.lane.b32.xlu0 %v2018, 64
        %v2024 = vpop.permute.xlu0 %2023
        %v2028 = vsel %vm668, 0.0, %v2004
        %v2029 = vsel %vm668, %v1995, %v2006
        %v2030 = vsel %vm668, %v1996, %v2008
        %vm2031 = vcmask 523264
        %v2032 = vsel %vm2031, %v2028, %v2020
        %v2033 = vsel %vm2031, %v2029, %v2022
        %v2034 = vsel %vm2031, %v2030, %v2024
        %v2035 = vld [vmem:[%s8] sm:$0xff]
        %v2036 = vld [vmem:[%s8 + $0x8] sm:$0xff]
        %v2037 = vld [vmem:[%s8 + $0x10] sm:$0xff]
        %v2038 = vld [vmem:[%s8 + $0x18] sm:$0xff]
        %v2039 = vld [vmem:[%s8 + $0x20] sm:$0xff]
        %v2040 = vld [vmem:[%s8 + $0x28] sm:$0xff]
        %v2041 = vld [vmem:[%s8 + $0x30] sm:$0xff]
        %v2042 = vld [vmem:[%s8 + $0x38] sm:$0xff]
        %v2043 = vld [vmem:[%s8 + $0x40] sm:$0xff]
        %v2044 = vld [vmem:[%s8 + $0x48] sm:$0xff]
        %v2045 = vld [vmem:[%s8 + $0x50] sm:$0xff]
        %v2046 = vld [vmem:[%s8 + $0x58] sm:$0xff]
        %v2047 = vld [vmem:[%s9] sm:$0x1]
        %v2049 = vlaneseq
        %v2050 = vshrl.u32 %v2049, 7
        %v2051 = vsub.s32 0, %v2050
        %v2052 = vrot.slane %v2047, %v2051
        %v2057 = vrot.slane %v2032, 7
        %v2058 = vrot.slane %v2033, 7
        %v2059 = vsel %vm761, %v2057, %v2058
        %v2060 = vrot.slane %v2034, 7
        %v2061 = vsel %vm761, %v2058, %v2060
        %vm2062 = vcmask 785408
        %v2063 = vsel %vm2062, %v2059, 0
        %v2065 = vsel %vm2062, %v2061, 0
        %2067 = vmatprep.subr.mxu0 0.0
        %2068 = vmatpush1.msra.mxu0 %v2035
        %2069 = vmatprep.subr.mxu0 0.0
        %2070 = vmatpush1.msra.mxu0 %v2036
        %2071 = vmatprep.subr.mxu0 0.0
        %2072 = vmatpush1.msra.mxu0 %v2037
        %2073 = vmatprep.subr.mxu0 0.0
        %2074 = vmatpush1.msra.mxu0 %v2038
        %2075 = vmatprep.subr.mxu0 0.0
        %2076 = vmatpush1.msra.mxu0 %v2039
        %2077 = vmatprep.subr.mxu0 0.0
        %2078 = vmatpush1.msra.mxu0 %v2040
        %2079 = vmatprep.subr.mxu0 0.0
        %2080 = vmatpush1.msra.mxu0 %v2041
        %2081 = vmatprep.subr.mxu0 0.0
        %2082 = vmatpush1.msra.mxu0 %v2042
        %2083 = vmatprep.subr.mxu0 0.0
        %2084 = vmatpush1.msra.mxu0 %v2043
        %2085 = vmatprep.subr.mxu0 0.0
        %2086 = vmatpush1.msra.mxu0 %v2044
        %2087 = vmatprep.subr.mxu0 0.0
        %2088 = vmatpush1.msra.mxu0 %v2045
        %2089 = vmatprep.subr.mxu0 0.0
        %2090 = vmatpush1.msra.mxu0 %v2046
        %2091 = vmatprep.subr.mxu0 0.0
        %2092 = vmatpush1.msra.mxu0 0.0
        %2093 = vmatprep.subr.mxu0 0.0
        %2094 = vmatpush1.msra.mxu0 0.0
        %2095 = vmatprep.subr.mxu0 0.0
        %2096 = vmatpush1.msra.mxu0 0.0
        %2097 = vmatprep.subr.mxu0 0.0
        %2098 = vmatpush1.msra.mxu0 0.0
        %2099 = vmatprep.subr.mxu0 0.0
        %2100 = vmatpush1.msra.mxu0 0.0
        %2101 = vmatprep.subr.mxu0 0.0
        %2102 = vmatpush1.msra.mxu0 0.0
        %2103 = vmatprep.subr.mxu0 0.0
        %2104 = vmatpush1.msra.mxu0 0.0
        %2105 = vmatprep.subr.mxu0 0.0
        %2106 = vmatpush1.msra.mxu0 0.0
        %2107 = vmatprep.subr.mxu0 0.0
        %2108 = vmatpush1.msra.mxu0 0.0
        %2109 = vmatprep.subr.mxu0 0.0
        %2110 = vmatpush1.msra.mxu0 0.0
        %2111 = vmatprep.subr.mxu0 0.0
        %2112 = vmatpush1.msra.mxu0 0.0
        %2113 = vmatprep.subr.mxu0 0.0
        %2114 = vmatpush1.msra.mxu0 0.0
        %2115 = vmatprep.subr.mxu0 0.0
        %2116 = vmatpush1.msra.mxu0 0.0
        %2117 = vmatprep.subr.mxu0 0.0
        %2118 = vmatpush1.msra.mxu0 0.0
        %2119 = vmatprep.subr.mxu0 0.0
        %2120 = vmatpush1.msra.mxu0 0.0
        %2121 = vmatprep.subr.mxu0 0.0
        %2122 = vmatpush1.msra.mxu0 0.0
        %2123 = vmatprep.subr.mxu0 0.0
        %2124 = vmatpush1.msra.mxu0 0.0
        %2125 = vmatprep.subr.mxu0 0.0
        %2126 = vmatpush1.msra.mxu0 0.0
        %2127 = vmatprep.subr.mxu0 0.0
        %2128 = vmatpush1.msra.mxu0 0.0
        %2129 = vmatprep.subr.mxu0 0.0
        %2130 = vmatpush1.msra.mxu0 0.0
        %2131 = vmatprep.mubr.f32.mxu0 0.0
        %2132 = vmatmul.mubr.f32.gmra.mrb[0].mxu0 %v2063
        %v2133 = vpop.f32.mrb[0].mxu0
        %v2134 = vadd.f32 %v2052, %v2133
        %v2135 = vpop.f32.mrb[0].mxu0
        %2136 = vmatprep.mubr.f32.mxu0 0.0
        %2137 = vmatmul.mubr.f32.gmra.mrb[0].mxu0 %v2065
        %v2138 = vpop.f32.mrb[0].mxu0
        %v2139 = vadd.f32 %v2052, %v2138
        %v2140 = vpop.f32.mrb[0].mxu0
        %2141 = vdwg.mxu0
        %v2142 = vmax.f32 %v2134, 0.0
        %v2143 = vmax.f32 %v2139, 0.0
        %v2144 = vmul.f32 %v2142, %v459
        %v2145 = vmul.f32 %v2143, %v460
        %v2148 = vrot.slane %v2144, 1
        %v2149 = vrot.slane %v2145, 1
        %v2150 = vsel %vm1999, %v2148, %v2149
        %2151 = vrot.lane.b32.xlu0 %v2148, 64
        %v2152 = vpop.permute.xlu0 %2151
        %2153 = vrot.lane.b32.xlu0 %v2150, 64
        %v2154 = vpop.permute.xlu0 %2153
        %2155 = vrot.lane.b32.xlu0 %v2149, 64
        %v2156 = vpop.permute.xlu0 %2155
        %v2160 = vrot.slane %v2144, 2
        %v2161 = vrot.slane %v2145, 2
        %v2162 = vsel %vm2013, %v2160, %v2161
        %v2163 = vsel %vm2013, %v2161, %v2017
        %v2164 = vsel %vm2031, 0.0, %v2152
        %v2165 = vsel %vm2031, %v2144, %v2154
        %v2166 = vsel %vm2031, %v2145, %v2156
        %v2167 = vld [vmem:[%s10] sm:$0xff]
        %v2168 = vld [vmem:[%s10 + $0x8] sm:$0xff]
        %v2169 = vld [vmem:[%s10 + $0x10] sm:$0xff]
        %v2170 = vld [vmem:[%s10 + $0x18] sm:$0xff]
        %v2171 = vld [vmem:[%s10 + $0x20] sm:$0xff]
        %v2172 = vld [vmem:[%s10 + $0x28] sm:$0xff]
        %v2173 = vld [vmem:[%s10 + $0x30] sm:$0xff]
        %v2174 = vld [vmem:[%s10 + $0x38] sm:$0xff]
        %v2175 = vld [vmem:[%s10 + $0x40] sm:$0xff]
        %v2176 = vld [vmem:[%s10 + $0x48] sm:$0xff]
        %v2177 = vld [vmem:[%s10 + $0x50] sm:$0xff]
        %v2178 = vld [vmem:[%s10 + $0x58] sm:$0xff]
        %v2179 = vld [vmem:[%s10 + $0x60] sm:$0xff]
        %v2180 = vld [vmem:[%s10 + $0x68] sm:$0xff]
        %v2181 = vld [vmem:[%s10 + $0x70] sm:$0xff]
        %v2182 = vld [vmem:[%s10 + $0x78] sm:$0xff]
        %v2183 = vld [vmem:[%s10 + $0x80] sm:$0xff]
        %v2184 = vld [vmem:[%s10 + $0x88] sm:$0xff]
        %v2185 = vld [vmem:[%s10 + $0x90] sm:$0xff]
        %v2186 = vld [vmem:[%s10 + $0x98] sm:$0xff]
        %v2187 = vld [vmem:[%s10 + $0xa0] sm:$0xff]
        %v2188 = vld [vmem:[%s10 + $0xa8] sm:$0xff]
        %v2189 = vld [vmem:[%s10 + $0xb0] sm:$0xff]
        %v2190 = vld [vmem:[%s10 + $0xb8] sm:$0xff]
        %v2191 = vld [vmem:[%s11] sm:$0x1]
        %v2193 = vlaneseq
        %v2194 = vshrl.u32 %v2193, 7
        %v2195 = vsub.s32 0, %v2194
        %v2196 = vrot.slane %v2191, %v2195
        %v2201 = vrot.slane %v2164, 7
        %v2202 = vrot.slane %v2165, 7
        %v2203 = vsel %vm761, %v2201, %v2202
        %v2204 = vrot.slane %v2160, 7
        %v2205 = vrot.slane %v2162, 7
        %v2206 = vsel %vm761, %v2204, %v2205
        %v2207 = vrot.slane %v2166, 7
        %v2208 = vsel %vm761, %v2202, %v2207
        %v2209 = vrot.slane %v2163, 7
        %v2210 = vsel %vm761, %v2205, %v2209
        %v2213 = vsel %vm2031, %v2206, 0
        %v2215 = vsel %vm2031, %v2210, 0
        %2217 = vmatprep.subr.mxu0 0.0
        %2218 = vmatpush1.msra.mxu0 %v2167
        %2219 = vmatprep.subr.mxu0 0.0
        %2220 = vmatpush1.msra.mxu0 %v2168
        %2221 = vmatprep.subr.mxu0 0.0
        %2222 = vmatpush1.msra.mxu0 %v2169
        %2223 = vmatprep.subr.mxu0 0.0
        %2224 = vmatpush1.msra.mxu0 %v2170
        %2225 = vmatprep.subr.mxu0 0.0
        %2226 = vmatpush1.msra.mxu0 %v2171
        %2227 = vmatprep.subr.mxu0 0.0
        %2228 = vmatpush1.msra.mxu0 %v2172
        %2229 = vmatprep.subr.mxu0 0.0
        %2230 = vmatpush1.msra.mxu0 %v2173
        %2231 = vmatprep.subr.mxu0 0.0
        %2232 = vmatpush1.msra.mxu0 %v2174
        %2233 = vmatprep.subr.mxu0 0.0
        %2234 = vmatpush1.msra.mxu0 %v2175
        %2235 = vmatprep.subr.mxu0 0.0
        %2236 = vmatpush1.msra.mxu0 %v2176
        %2237 = vmatprep.subr.mxu0 0.0
        %2238 = vmatpush1.msra.mxu0 %v2177
        %2239 = vmatprep.subr.mxu0 0.0
        %2240 = vmatpush1.msra.mxu0 %v2178
        %2241 = vmatprep.subr.mxu0 0.0
        %2242 = vmatpush1.msra.mxu0 %v2179
        %2243 = vmatprep.subr.mxu0 0.0
        %2244 = vmatpush1.msra.mxu0 %v2180
        %2245 = vmatprep.subr.mxu0 0.0
        %2246 = vmatpush1.msra.mxu0 %v2181
        %2247 = vmatprep.subr.mxu0 0.0
        %2248 = vmatpush1.msra.mxu0 %v2182
        %2249 = vmatprep.subr.mxu0 0.0
        %2250 = vmatpush1.msra.mxu0 %v2183
        %2251 = vmatprep.subr.mxu0 0.0
        %2252 = vmatpush1.msra.mxu0 %v2184
        %2253 = vmatprep.subr.mxu0 0.0
        %2254 = vmatpush1.msra.mxu0 %v2185
        %2255 = vmatprep.subr.mxu0 0.0
        %2256 = vmatpush1.msra.mxu0 %v2186
        %2257 = vmatprep.subr.mxu0 0.0
        %2258 = vmatpush1.msra.mxu0 %v2187
        %2259 = vmatprep.subr.mxu0 0.0
        %2260 = vmatpush1.msra.mxu0 %v2188
        %2261 = vmatprep.subr.mxu0 0.0
        %2262 = vmatpush1.msra.mxu0 %v2189
        %2263 = vmatprep.subr.mxu0 0.0
        %2264 = vmatpush1.msra.mxu0 %v2190
        %2265 = vmatprep.subr.mxu0 0.0
        %2266 = vmatpush1.msra.mxu0 0.0
        %2267 = vmatprep.subr.mxu0 0.0
        %2268 = vmatpush1.msra.mxu0 0.0
        %2269 = vmatprep.subr.mxu0 0.0
        %2270 = vmatpush1.msra.mxu0 0.0
        %2271 = vmatprep.subr.mxu0 0.0
        %2272 = vmatpush1.msra.mxu0 0.0
        %2273 = vmatprep.subr.mxu0 0.0
        %2274 = vmatpush1.msra.mxu0 0.0
        %2275 = vmatprep.subr.mxu0 0.0
        %2276 = vmatpush1.msra.mxu0 0.0
        %2277 = vmatprep.subr.mxu0 0.0
        %2278 = vmatpush1.msra.mxu0 0.0
        %2279 = vmatprep.subr.mxu0 0.0
        %2280 = vmatpush1.msra.mxu0 0.0
        %2281 = vmatprep.mubr.f32.mxu0 %v2213
        %2282 = vmatmul.mubr.f32.gmra.mrb[0].mxu0 %v2203
        %v2283 = vpop.f32.mrb[0].mxu0
        %v2284 = vadd.f32 %v2196, %v2283
        %v2285 = vpop.f32.mrb[0].mxu0
        %2286 = vmatprep.mubr.f32.mxu0 %v2215
        %2287 = vmatmul.mubr.f32.gmra.mrb[0].mxu0 %v2208
        %v2288 = vpop.f32.mrb[0].mxu0
        %v2289 = vadd.f32 %v2196, %v2288
        %v2290 = vpop.f32.mrb[0].mxu0
        %2291 = vdwg.mxu0
        %v2292 = vmul.f32 %v2284, %v459
        %v2293 = vmul.f32 %v2289, %v460
        %v2294 = vadd.f32 %v1993, %v2292
        %v2295 = vadd.f32 %v1994, %v2293
        %s2296 = scalar_lea.vmem %s7, 2
        %v2297 = vld [vmem:[%s2296] sm:$0x1]
        %s2298 = scalar_lea.vmem %s7, 3
        %v2299 = vld [vmem:[%s2298] sm:$0x1]
        %v2300 = vsel %vm668, %v2294, 0.0
        %2301 = vadd.xlane.f32.xlu0 %v2300
        %v2302 = vpop.xlane.xlu0 %2301
        %v2303 = vsel %vm668, %v2295, 0.0
        %2304 = vadd.xlane.f32.xlu0 %v2303
        %v2305 = vpop.xlane.xlu0 %2304
        %v2306 = vmul.f32 %v2302, %v1958
        %v2307 = vmul.f32 %v2305, %v1958
        %v2308 = vsub.f32 %v2294, %v2306
        %v2309 = vsub.f32 %v2295, %v2307
        %v2310 = vmul.f32 %v2308, %v2308
        %v2311 = vmul.f32 %v2309, %v2309
        %v2312 = vsel %vm668, %v2310, 0.0
        %2313 = vadd.xlane.f32.xlu0 %v2312
        %v2314 = vpop.xlane.xlu0 %2313
        %v2315 = vsel %vm668, %v2311, 0.0
        %2316 = vadd.xlane.f32.xlu0 %v2315
        %v2317 = vpop.xlane.xlu0 %2316
        %v2318 = vmul.f32 %v2314, %v1958
        %v2319 = vmul.f32 %v2317, %v1958
        %v2320 = vadd.f32 %v2318, 1e-05
        %v2321 = vadd.f32 %v2319, 1e-05
        %v2322 = vrsqrt.pop %v2320
        %v2323 = vrsqrt.pop %v2321
        %v2324 = vmul.f32 %v2308, %v2322
        %v2325 = vmul.f32 %v2309, %v2323
        %v2327 = vlaneseq
        %v2328 = vshrl.u32 %v2327, 7
        %v2329 = vsub.s32 0, %v2328
        %v2330 = vrot.slane %v2297, %v2329
        %v2332 = vmul.f32 %v2324, %v2330
        %v2333 = vmul.f32 %v2325, %v2330
        %v2335 = vlaneseq
        %v2336 = vshrl.u32 %v2335, 7
        %v2337 = vsub.s32 0, %v2336
        %v2338 = vrot.slane %v2299, %v2337
        %v2340 = vadd.f32 %v2332, %v2338
        %v2341 = vadd.f32 %v2333, %v2338
        %v2342 = vmul.f32 %v2340, %v459
        %v2343 = vmul.f32 %v2341, %v460
        %s2344 = scalar_lea.vmem %s2, 32
        %v2345 = vld [vmem:[%s2344] sm:$0xff]
        %v2346 = vld [vmem:[%s2344 + $0x8] sm:$0xff]
        %v2347 = vld [vmem:[%s2344 + $0x10] sm:$0xff]
        %v2348 = vld [vmem:[%s2344 + $0x18] sm:$0xff]
        %s2349 = scalar_lea.vmem %s3, 1
        %v2350 = vld [vmem:[%s2349] sm:$0x1]
        %v2352 = vlaneseq
        %v2353 = vshrl.u32 %v2352, 7
        %v2354 = vsub.s32 0, %v2353
        %v2355 = vrot.slane %v2350, %v2354
        %v2358 = vsel %vm668, %v2342, 0
        %v2361 = vsel %vm668, %v2343, 0
        %2363 = vmatprep.subr.mxu0 0.0
        %2364 = vmatpush1.msra.mxu0 %v2345
        %2365 = vmatprep.subr.mxu0 0.0
        %2366 = vmatpush1.msra.mxu0 %v2346
        %2367 = vmatprep.subr.mxu0 0.0
        %2368 = vmatpush1.msra.mxu0 %v2347
        %2369 = vmatprep.subr.mxu0 0.0
        %2370 = vmatpush1.msra.mxu0 %v2348
        %2371 = vmatprep.subr.mxu0 0.0
        %2372 = vmatpush1.msra.mxu0 0.0
        %2373 = vmatprep.subr.mxu0 0.0
        %2374 = vmatpush1.msra.mxu0 0.0
        %2375 = vmatprep.subr.mxu0 0.0
        %2376 = vmatpush1.msra.mxu0 0.0
        %2377 = vmatprep.subr.mxu0 0.0
        %2378 = vmatpush1.msra.mxu0 0.0
        %2379 = vmatprep.subr.mxu0 0.0
        %2380 = vmatpush1.msra.mxu0 0.0
        %2381 = vmatprep.subr.mxu0 0.0
        %2382 = vmatpush1.msra.mxu0 0.0
        %2383 = vmatprep.subr.mxu0 0.0
        %2384 = vmatpush1.msra.mxu0 0.0
        %2385 = vmatprep.subr.mxu0 0.0
        %2386 = vmatpush1.msra.mxu0 0.0
        %2387 = vmatprep.subr.mxu0 0.0
        %2388 = vmatpush1.msra.mxu0 0.0
        %2389 = vmatprep.subr.mxu0 0.0
        %2390 = vmatpush1.msra.mxu0 0.0
        %2391 = vmatprep.subr.mxu0 0.0
        %2392 = vmatpush1.msra.mxu0 0.0
        %2393 = vmatprep.subr.mxu0 0.0
        %2394 = vmatpush1.msra.mxu0 0.0
        %2395 = vmatprep.subr.mxu0 0.0
        %2396 = vmatpush1.msra.mxu0 0.0
        %2397 = vmatprep.subr.mxu0 0.0
        %2398 = vmatpush1.msra.mxu0 0.0
        %2399 = vmatprep.subr.mxu0 0.0
        %2400 = vmatpush1.msra.mxu0 0.0
        %2401 = vmatprep.subr.mxu0 0.0
        %2402 = vmatpush1.msra.mxu0 0.0
        %2403 = vmatprep.subr.mxu0 0.0
        %2404 = vmatpush1.msra.mxu0 0.0
        %2405 = vmatprep.subr.mxu0 0.0
        %2406 = vmatpush1.msra.mxu0 0.0
        %2407 = vmatprep.subr.mxu0 0.0
        %2408 = vmatpush1.msra.mxu0 0.0
        %2409 = vmatprep.subr.mxu0 0.0
        %2410 = vmatpush1.msra.mxu0 0.0
        %2411 = vmatprep.subr.mxu0 0.0
        %2412 = vmatpush1.msra.mxu0 0.0
        %2413 = vmatprep.subr.mxu0 0.0
        %2414 = vmatpush1.msra.mxu0 0.0
        %2415 = vmatprep.subr.mxu0 0.0
        %2416 = vmatpush1.msra.mxu0 0.0
        %2417 = vmatprep.subr.mxu0 0.0
        %2418 = vmatpush1.msra.mxu0 0.0
        %2419 = vmatprep.subr.mxu0 0.0
        %2420 = vmatpush1.msra.mxu0 0.0
        %2421 = vmatprep.subr.mxu0 0.0
        %2422 = vmatpush1.msra.mxu0 0.0
        %2423 = vmatprep.subr.mxu0 0.0
        %2424 = vmatpush1.msra.mxu0 0.0
        %2425 = vmatprep.subr.mxu0 0.0
        %2426 = vmatpush1.msra.mxu0 0.0
        %2427 = vmatprep.mubr.f32.mxu0 0.0
        %2428 = vmatmul.mubr.f32.gmra.mrb[0].mxu0 %v2358
        %v2429 = vpop.f32.mrb[0].mxu0
        %v2430 = vadd.f32 %v2355, %v2429
        %v2431 = vpop.f32.mrb[0].mxu0
        %2432 = vmatprep.mubr.f32.mxu0 0.0
        %2433 = vmatmul.mubr.f32.gmra.mrb[0].mxu0 %v2361
        %v2434 = vpop.f32.mrb[0].mxu0
        %v2435 = vadd.f32 %v2355, %v2434
        %v2436 = vpop.f32.mrb[0].mxu0
        %2437 = vdwg.mxu0
        %2440 = vrot.lane.b32.xlu0 %v2430, 32
        %v2441 = vpop.permute.xlu0 %2440
        %2442 = vrot.lane.b32.xlu0 %v2435, 32
        %v2443 = vpop.permute.xlu0 %2442
        %v2444 = vsel %vm756, %v2441, 0
        %v2446 = vsel %vm756, %v2443, 0
        %2448 = vmatprep.subr.mxu0 %v510
        %2449 = vmatpush1.msra.mxu0 %v509
        %2450 = vmatprep.subr.mxu0 %v766
        %2451 = vmatpush1.msra.mxu0 %v763
        %2452 = vmatprep.subr.mxu0 0.0
        %2453 = vmatpush1.msra.mxu0 0.0
        %2454 = vmatprep.subr.mxu0 0.0
        %2455 = vmatpush1.msra.mxu0 0.0
        %2456 = vmatprep.subr.mxu0 0.0
        %2457 = vmatpush1.msra.mxu0 0.0
        %2458 = vmatprep.subr.mxu0 0.0
        %2459 = vmatpush1.msra.mxu0 0.0
        %2460 = vmatprep.subr.mxu0 0.0
        %2461 = vmatpush1.msra.mxu0 0.0
        %2462 = vmatprep.subr.mxu0 0.0
        %2463 = vmatpush1.msra.mxu0 0.0
        %2464 = vmatprep.subr.mxu0 0.0
        %2465 = vmatpush1.msra.mxu0 0.0
        %2466 = vmatprep.subr.mxu0 0.0
        %2467 = vmatpush1.msra.mxu0 0.0
        %2468 = vmatprep.subr.mxu0 0.0
        %2469 = vmatpush1.msra.mxu0 0.0
        %2470 = vmatprep.subr.mxu0 0.0
        %2471 = vmatpush1.msra.mxu0 0.0
        %2472 = vmatprep.subr.mxu0 0.0
        %2473 = vmatpush1.msra.mxu0 0.0
        %2474 = vmatprep.subr.mxu0 0.0
        %2475 = vmatpush1.msra.mxu0 0.0
        %2476 = vmatprep.subr.mxu0 0.0
        %2477 = vmatpush1.msra.mxu0 0.0
        %2478 = vmatprep.subr.mxu0 0.0
        %2479 = vmatpush1.msra.mxu0 0.0
        %2480 = vmatprep.subr.mxu0 0.0
        %2481 = vmatpush1.msra.mxu0 0.0
        %2482 = vmatprep.subr.mxu0 0.0
        %2483 = vmatpush1.msra.mxu0 0.0
        %2484 = vmatprep.subr.mxu0 0.0
        %2485 = vmatpush1.msra.mxu0 0.0
        %2486 = vmatprep.subr.mxu0 0.0
        %2487 = vmatpush1.msra.mxu0 0.0
        %2488 = vmatprep.subr.mxu0 0.0
        %2489 = vmatpush1.msra.mxu0 0.0
        %2490 = vmatprep.subr.mxu0 0.0
        %2491 = vmatpush1.msra.mxu0 0.0
        %2492 = vmatprep.subr.mxu0 0.0
        %2493 = vmatpush1.msra.mxu0 0.0
        %2494 = vmatprep.subr.mxu0 0.0
        %2495 = vmatpush1.msra.mxu0 0.0
        %2496 = vmatprep.subr.mxu0 0.0
        %2497 = vmatpush1.msra.mxu0 0.0
        %2498 = vmatprep.subr.mxu0 0.0
        %2499 = vmatpush1.msra.mxu0 0.0
        %2500 = vmatprep.subr.mxu0 0.0
        %2501 = vmatpush1.msra.mxu0 0.0
        %2502 = vmatprep.subr.mxu0 0.0
        %2503 = vmatpush1.msra.mxu0 0.0
        %2504 = vmatprep.subr.mxu0 0.0
        %2505 = vmatpush1.msra.mxu0 0.0
        %2506 = vmatprep.subr.mxu0 0.0
        %2507 = vmatpush1.msra.mxu0 0.0
        %2508 = vmatprep.subr.mxu0 0.0
        %2509 = vmatpush1.msra.mxu0 0.0
        %2510 = vmatprep.subr.mxu0 0.0
        %2511 = vmatpush1.msra.mxu0 0.0
        %2512 = vmatprep.mubr.f32.mxu0 0.0
        %2513 = vmatmul.mubr.f32.gmra.mrb[0].mxu0 %v2444
        %v2514 = vpop.f32.mrb[0].mxu0
        %v2515 = vadd.f32 0.0, %v2514
        %v2516 = vpop.f32.mrb[0].mxu0
        %v2517 = vadd.f32 0.0, %v2516
        %2518 = vmatprep.mubr.f32.mxu0 0.0
        %2519 = vmatmul.mubr.f32.gmra.mrb[0].mxu0 %v2446
        %v2520 = vpop.f32.mrb[0].mxu0
        %v2521 = vadd.f32 0.0, %v2520
        %v2522 = vpop.f32.mrb[0].mxu0
        %v2523 = vadd.f32 0.0, %v2522
        %2524 = vdwg.mxu0
        %v2525 = vmul.f32 %v2515, %v479
        %v2526 = vmul.f32 %v2517, %v480
        %v2527 = vmul.f32 %v2521, %v481
        %v2528 = vmul.f32 %v2523, %v482
        %v2530 = vsel %vm849, %v2526, 0
        %v2533 = vsel %vm849, %v2528, 0
        %2535 = vmatprep.subr.mxu0 0.0
        %2536 = vmatpush1.msra.mxu0 %v637
        %2537 = vmatprep.subr.mxu0 0.0
        %2538 = vmatpush1.msra.mxu0 %v638
        %2539 = vmatprep.subr.mxu0 0.0
        %2540 = vmatpush1.msra.mxu0 %v639
        %2541 = vmatprep.subr.mxu0 0.0
        %2542 = vmatpush1.msra.mxu0 %v640
        %2543 = vmatprep.subr.mxu0 0.0
        %2544 = vmatpush1.msra.mxu0 %v641
        %2545 = vmatprep.subr.mxu0 0.0
        %2546 = vmatpush1.msra.mxu0 %v642
        %2547 = vmatprep.subr.mxu0 0.0
        %2548 = vmatpush1.msra.mxu0 %v643
        %2549 = vmatprep.subr.mxu0 0.0
        %2550 = vmatpush1.msra.mxu0 %v644
        %2551 = vmatprep.subr.mxu0 0.0
        %2552 = vmatpush1.msra.mxu0 %v645
        %2553 = vmatprep.subr.mxu0 0.0
        %2554 = vmatpush1.msra.mxu0 %v646
        %2555 = vmatprep.subr.mxu0 0.0
        %2556 = vmatpush1.msra.mxu0 %v647
        %2557 = vmatprep.subr.mxu0 0.0
        %2558 = vmatpush1.msra.mxu0 %v648
        %2559 = vmatprep.subr.mxu0 0.0
        %2560 = vmatpush1.msra.mxu0 %v649
        %2561 = vmatprep.subr.mxu0 0.0
        %2562 = vmatpush1.msra.mxu0 %v650
        %2563 = vmatprep.subr.mxu0 0.0
        %2564 = vmatpush1.msra.mxu0 %v651
        %2565 = vmatprep.subr.mxu0 0.0
        %2566 = vmatpush1.msra.mxu0 %v652
        %2567 = vmatprep.subr.mxu0 0.0
        %2568 = vmatpush1.msra.mxu0 %v653
        %2569 = vmatprep.subr.mxu0 0.0
        %2570 = vmatpush1.msra.mxu0 %v654
        %2571 = vmatprep.subr.mxu0 0.0
        %2572 = vmatpush1.msra.mxu0 0.0
        %2573 = vmatprep.subr.mxu0 0.0
        %2574 = vmatpush1.msra.mxu0 0.0
        %2575 = vmatprep.subr.mxu0 0.0
        %2576 = vmatpush1.msra.mxu0 0.0
        %2577 = vmatprep.subr.mxu0 0.0
        %2578 = vmatpush1.msra.mxu0 0.0
        %2579 = vmatprep.subr.mxu0 0.0
        %2580 = vmatpush1.msra.mxu0 0.0
        %2581 = vmatprep.subr.mxu0 0.0
        %2582 = vmatpush1.msra.mxu0 0.0
        %2583 = vmatprep.subr.mxu0 0.0
        %2584 = vmatpush1.msra.mxu0 0.0
        %2585 = vmatprep.subr.mxu0 0.0
        %2586 = vmatpush1.msra.mxu0 0.0
        %2587 = vmatprep.subr.mxu0 0.0
        %2588 = vmatpush1.msra.mxu0 0.0
        %2589 = vmatprep.subr.mxu0 0.0
        %2590 = vmatpush1.msra.mxu0 0.0
        %2591 = vmatprep.subr.mxu0 0.0
        %2592 = vmatpush1.msra.mxu0 0.0
        %2593 = vmatprep.subr.mxu0 0.0
        %2594 = vmatpush1.msra.mxu0 0.0
        %2595 = vmatprep.subr.mxu0 0.0
        %2596 = vmatpush1.msra.mxu0 0.0
        %2597 = vmatprep.subr.mxu0 0.0
        %2598 = vmatpush1.msra.mxu0 0.0
        %2599 = vmatprep.mubr.f32.mxu0 %v2530
        %2600 = vmatmul.mubr.f32.gmra.mrb[0].mxu0 %v2525
        %v2601 = vpop.f32.mrb[0].mxu0
        %v2602 = vadd.f32 0.0, %v2601
        %v2603 = vpop.f32.mrb[0].mxu0
        %2604 = vmatprep.mubr.f32.mxu0 %v2533
        %2605 = vmatmul.mubr.f32.gmra.mrb[0].mxu0 %v2527
        %v2606 = vpop.f32.mrb[0].mxu0
        %v2607 = vadd.f32 0.0, %v2606
        %v2608 = vpop.f32.mrb[0].mxu0
        %2609 = vdwg.mxu0
        %2610 = vrot.lane.b32.xlu0 %v2430, 96
        %v2611 = vpop.permute.xlu0 %2610
        %2612 = vrot.lane.b32.xlu0 %v2435, 96
        %v2613 = vpop.permute.xlu0 %2612
        %v2614 = vsel %vm849, %v2430, 0
        %v2616 = vsel %vm849, %v2435, 0
        %v2618 = vsel %vm849, %v2611, 0
        %v2620 = vsel %vm849, %v2613, 0
        %2622 = vmatprep.subr.mxu0 0.0
        %2623 = vmatpush1.xpose.msra.mxu0 %v2618
        %2624 = vmatprep.subr.mxu0 0.0
        %2625 = vmatpush1.xpose.msra.mxu0 %v2620
        %2626 = vmatprep.subr.mxu0 0.0
        %2627 = vmatpush1.xpose.msra.mxu0 0.0
        %2628 = vmatprep.subr.mxu0 0.0
        %2629 = vmatpush1.xpose.msra.mxu0 0.0
        %2630 = vmatprep.subr.mxu0 0.0
        %2631 = vmatpush1.xpose.msra.mxu0 0.0
        %2632 = vmatprep.subr.mxu0 0.0
        %2633 = vmatpush1.xpose.msra.mxu0 0.0
        %2634 = vmatprep.subr.mxu0 0.0
        %2635 = vmatpush1.xpose.msra.mxu0 0.0
        %2636 = vmatprep.subr.mxu0 0.0
        %2637 = vmatpush1.xpose.msra.mxu0 0.0
        %2638 = vmatprep.subr.mxu0 0.0
        %2639 = vmatpush1.xpose.msra.mxu0 0.0
        %2640 = vmatprep.subr.mxu0 0.0
        %2641 = vmatpush1.xpose.msra.mxu0 0.0
        %2642 = vmatprep.subr.mxu0 0.0
        %2643 = vmatpush1.xpose.msra.mxu0 0.0
        %2644 = vmatprep.subr.mxu0 0.0
        %2645 = vmatpush1.xpose.msra.mxu0 0.0
        %2646 = vmatprep.subr.mxu0 0.0
        %2647 = vmatpush1.xpose.msra.mxu0 0.0
        %2648 = vmatprep.subr.mxu0 0.0
        %2649 = vmatpush1.xpose.msra.mxu0 0.0
        %2650 = vmatprep.subr.mxu0 0.0
        %2651 = vmatpush1.xpose.msra.mxu0 0.0
        %2652 = vmatprep.subr.mxu0 0.0
        %2653 = vmatpush1.xpose.msra.mxu0 0.0
        %2654 = vmatprep.subr.mxu0 0.0
        %2655 = vmatpush1.xpose.msra.mxu0 0.0
        %2656 = vmatprep.subr.mxu0 0.0
        %2657 = vmatpush1.xpose.msra.mxu0 0.0
        %2658 = vmatprep.subr.mxu0 0.0
        %2659 = vmatpush1.xpose.msra.mxu0 0.0
        %2660 = vmatprep.subr.mxu0 0.0
        %2661 = vmatpush1.xpose.msra.mxu0 0.0
        %2662 = vmatprep.subr.mxu0 0.0
        %2663 = vmatpush1.xpose.msra.mxu0 0.0
        %2664 = vmatprep.subr.mxu0 0.0
        %2665 = vmatpush1.xpose.msra.mxu0 0.0
        %2666 = vmatprep.subr.mxu0 0.0
        %2667 = vmatpush1.xpose.msra.mxu0 0.0
        %2668 = vmatprep.subr.mxu0 0.0
        %2669 = vmatpush1.xpose.msra.mxu0 0.0
        %2670 = vmatprep.subr.mxu0 0.0
        %2671 = vmatpush1.xpose.msra.mxu0 0.0
        %2672 = vmatprep.subr.mxu0 0.0
        %2673 = vmatpush1.xpose.msra.mxu0 0.0
        %2674 = vmatprep.subr.mxu0 0.0
        %2675 = vmatpush1.xpose.msra.mxu0 0.0
        %2676 = vmatprep.subr.mxu0 0.0
        %2677 = vmatpush1.xpose.msra.mxu0 0.0
        %2678 = vmatprep.subr.mxu0 0.0
        %2679 = vmatpush1.xpose.msra.mxu0 0.0
        %2680 = vmatprep.subr.mxu0 0.0
        %2681 = vmatpush1.xpose.msra.mxu0 0.0
        %2682 = vmatprep.subr.mxu0 0.0
        %2683 = vmatpush1.xpose.msra.mxu0 0.0
        %2684 = vmatprep.subr.mxu0 0.0
        %2685 = vmatpush1.xpose.msra.mxu0 0.0
        %2686 = vmatprep.mubr.f32.mxu0 0.0
        %2687 = vmatmul.mubr.f32.gmra.mrb[0].mxu0 %v2614
        %v2688 = vpop.f32.mrb[0].mxu0
        %v2689 = vadd.f32 %v2602, %v2688
        %v2690 = vpop.f32.mrb[0].mxu0
        %2691 = vmatprep.mubr.f32.mxu0 0.0
        %2692 = vmatmul.mubr.f32.gmra.mrb[0].mxu0 %v2616
        %v2693 = vpop.f32.mrb[0].mxu0
        %v2694 = vadd.f32 %v2607, %v2693
        %v2695 = vpop.f32.mrb[0].mxu0
        %2696 = vdwg.mxu0
        %v2697 = vsel %vm1018, %v2689, -10000.0
        %v2698 = vsel %vm1019, %v2694, -10000.0
        %v2699 = vsel %vm849, %v2697, -inf
        %2700 = vmax.xlane.f32.xlu0 %v2699
        %v2701 = vpop.xlane.xlu0 %2700
        %v2702 = vsel %vm849, %v2698, -inf
        %2703 = vmax.xlane.f32.xlu0 %v2702
        %v2704 = vpop.xlane.xlu0 %2703
        %v2705 = vsub.f32 %v2697, %v2701
        %v2706 = vsub.f32 %v2698, %v2704
        %v2707 = vmul.f32 %v2705, 1.442695
        %v2708 = vpow.pop %v2707
        %v2709 = vmul.f32 %v2706, 1.442695
        %v2710 = vpow.pop %v2709
        %v2711 = vsel %vm849, %v2708, 0.0
        %2712 = vadd.xlane.f32.xlu0 %v2711
        %v2713 = vpop.xlane.xlu0 %2712
        %v2714 = vsel %vm849, %v2710, 0.0
        %2715 = vadd.xlane.f32.xlu0 %v2714
        %v2716 = vpop.xlane.xlu0 %2715
        %v2717 = vrcp.pop %v2713
        %v2718 = vrcp.pop %v2716
        %v2719 = vmul.f32 %v2708, %v2717
        %v2720 = vmul.f32 %v2710, %v2718
        %v2722 = vsel %vm849, %v2719, 0
        %v2725 = vsel %vm849, %v2720, 0
        %2727 = vmatprep.subr.mxu0 %v480
        %2728 = vmatpush1.msra.mxu0 %v479
        %2729 = vmatprep.subr.mxu0 %v482
        %2730 = vmatpush1.msra.mxu0 %v481
        %2731 = vmatprep.subr.mxu0 0.0
        %2732 = vmatpush1.msra.mxu0 0.0
        %2733 = vmatprep.subr.mxu0 0.0
        %2734 = vmatpush1.msra.mxu0 0.0
        %2735 = vmatprep.subr.mxu0 0.0
        %2736 = vmatpush1.msra.mxu0 0.0
        %2737 = vmatprep.subr.mxu0 0.0
        %2738 = vmatpush1.msra.mxu0 0.0
        %2739 = vmatprep.subr.mxu0 0.0
        %2740 = vmatpush1.msra.mxu0 0.0
        %2741 = vmatprep.subr.mxu0 0.0
        %2742 = vmatpush1.msra.mxu0 0.0
        %2743 = vmatprep.subr.mxu0 0.0
        %2744 = vmatpush1.msra.mxu0 0.0
        %2745 = vmatprep.subr.mxu0 0.0
        %2746 = vmatpush1.msra.mxu0 0.0
        %2747 = vmatprep.subr.mxu0 0.0
        %2748 = vmatpush1.msra.mxu0 0.0
        %2749 = vmatprep.subr.mxu0 0.0
        %2750 = vmatpush1.msra.mxu0 0.0
        %2751 = vmatprep.subr.mxu0 0.0
        %2752 = vmatpush1.msra.mxu0 0.0
        %2753 = vmatprep.subr.mxu0 0.0
        %2754 = vmatpush1.msra.mxu0 0.0
        %2755 = vmatprep.subr.mxu0 0.0
        %2756 = vmatpush1.msra.mxu0 0.0
        %2757 = vmatprep.subr.mxu0 0.0
        %2758 = vmatpush1.msra.mxu0 0.0
        %2759 = vmatprep.subr.mxu0 0.0
        %2760 = vmatpush1.msra.mxu0 0.0
        %2761 = vmatprep.subr.mxu0 0.0
        %2762 = vmatpush1.msra.mxu0 0.0
        %2763 = vmatprep.subr.mxu0 0.0
        %2764 = vmatpush1.msra.mxu0 0.0
        %2765 = vmatprep.subr.mxu0 0.0
        %2766 = vmatpush1.msra.mxu0 0.0
        %2767 = vmatprep.subr.mxu0 0.0
        %2768 = vmatpush1.msra.mxu0 0.0
        %2769 = vmatprep.subr.mxu0 0.0
        %2770 = vmatpush1.msra.mxu0 0.0
        %2771 = vmatprep.subr.mxu0 0.0
        %2772 = vmatpush1.msra.mxu0 0.0
        %2773 = vmatprep.subr.mxu0 0.0
        %2774 = vmatpush1.msra.mxu0 0.0
        %2775 = vmatprep.subr.mxu0 0.0
        %2776 = vmatpush1.msra.mxu0 0.0
        %2777 = vmatprep.subr.mxu0 0.0
        %2778 = vmatpush1.msra.mxu0 0.0
        %2779 = vmatprep.subr.mxu0 0.0
        %2780 = vmatpush1.msra.mxu0 0.0
        %2781 = vmatprep.subr.mxu0 0.0
        %2782 = vmatpush1.msra.mxu0 0.0
        %2783 = vmatprep.subr.mxu0 0.0
        %2784 = vmatpush1.msra.mxu0 0.0
        %2785 = vmatprep.subr.mxu0 0.0
        %2786 = vmatpush1.msra.mxu0 0.0
        %2787 = vmatprep.subr.mxu0 0.0
        %2788 = vmatpush1.msra.mxu0 0.0
        %2789 = vmatprep.subr.mxu0 0.0
        %2790 = vmatpush1.msra.mxu0 0.0
        %2791 = vmatprep.mubr.f32.mxu0 0.0
        %2792 = vmatmul.mubr.f32.gmra.mrb[0].mxu0 %v2722
        %v2793 = vpop.f32.mrb[0].mxu0
        %v2794 = vadd.f32 0.0, %v2793
        %v2795 = vpop.f32.mrb[0].mxu0
        %v2796 = vadd.f32 0.0, %v2795
        %2797 = vmatprep.mubr.f32.mxu0 0.0
        %2798 = vmatmul.mubr.f32.gmra.mrb[0].mxu0 %v2725
        %v2799 = vpop.f32.mrb[0].mxu0
        %v2800 = vadd.f32 0.0, %v2799
        %v2801 = vpop.f32.mrb[0].mxu0
        %v2802 = vadd.f32 0.0, %v2801
        %2803 = vdwg.mxu0
        %v2804 = vmul.f32 %v2794, %v497
        %v2805 = vmul.f32 %v2796, %v498
        %v2806 = vmul.f32 %v2800, %v499
        %v2807 = vmul.f32 %v2802, %v500
        %s2808 = scalar_lea.vmem %s6, 144
        %v2809 = vld [vmem:[%s2808] sm:$0xff]
        %v2810 = vld [vmem:[%s2808 + $0x8] sm:$0xff]
        %v2811 = vld [vmem:[%s2808 + $0x10] sm:$0xff]
        %v2812 = vld [vmem:[%s2808 + $0x18] sm:$0xff]
        %v2813 = vld [vmem:[%s2808 + $0x20] sm:$0xff]
        %v2814 = vld [vmem:[%s2808 + $0x28] sm:$0xff]
        %v2815 = vld [vmem:[%s2808 + $0x30] sm:$0xff]
        %v2816 = vld [vmem:[%s2808 + $0x38] sm:$0xff]
        %v2817 = vld [vmem:[%s2808 + $0x40] sm:$0xff]
        %v2818 = vld [vmem:[%s2808 + $0x48] sm:$0xff]
        %v2819 = vld [vmem:[%s2808 + $0x50] sm:$0xff]
        %v2820 = vld [vmem:[%s2808 + $0x58] sm:$0xff]
        %v2821 = vld [vmem:[%s2808 + $0x60] sm:$0xff]
        %v2822 = vld [vmem:[%s2808 + $0x68] sm:$0xff]
        %v2823 = vld [vmem:[%s2808 + $0x70] sm:$0xff]
        %v2824 = vld [vmem:[%s2808 + $0x78] sm:$0xff]
        %v2825 = vld [vmem:[%s2808 + $0x80] sm:$0xff]
        %v2826 = vld [vmem:[%s2808 + $0x88] sm:$0xff]
        %v2828 = vsel %vm849, %v2805, 0
        %v2831 = vsel %vm849, %v2807, 0
        %2833 = vmatprep.subr.mxu0 0.0
        %2834 = vmatpush1.msra.mxu0 %v2809
        %2835 = vmatprep.subr.mxu0 0.0
        %2836 = vmatpush1.msra.mxu0 %v2810
        %2837 = vmatprep.subr.mxu0 0.0
        %2838 = vmatpush1.msra.mxu0 %v2811
        %2839 = vmatprep.subr.mxu0 0.0
        %2840 = vmatpush1.msra.mxu0 %v2812
        %2841 = vmatprep.subr.mxu0 0.0
        %2842 = vmatpush1.msra.mxu0 %v2813
        %2843 = vmatprep.subr.mxu0 0.0
        %2844 = vmatpush1.msra.mxu0 %v2814
        %2845 = vmatprep.subr.mxu0 0.0
        %2846 = vmatpush1.msra.mxu0 %v2815
        %2847 = vmatprep.subr.mxu0 0.0
        %2848 = vmatpush1.msra.mxu0 %v2816
        %2849 = vmatprep.subr.mxu0 0.0
        %2850 = vmatpush1.msra.mxu0 %v2817
        %2851 = vmatprep.subr.mxu0 0.0
        %2852 = vmatpush1.msra.mxu0 %v2818
        %2853 = vmatprep.subr.mxu0 0.0
        %2854 = vmatpush1.msra.mxu0 %v2819
        %2855 = vmatprep.subr.mxu0 0.0
        %2856 = vmatpush1.msra.mxu0 %v2820
        %2857 = vmatprep.subr.mxu0 0.0
        %2858 = vmatpush1.msra.mxu0 %v2821
        %2859 = vmatprep.subr.mxu0 0.0
        %2860 = vmatpush1.msra.mxu0 %v2822
        %2861 = vmatprep.subr.mxu0 0.0
        %2862 = vmatpush1.msra.mxu0 %v2823
        %2863 = vmatprep.subr.mxu0 0.0
        %2864 = vmatpush1.msra.mxu0 %v2824
        %2865 = vmatprep.subr.mxu0 0.0
        %2866 = vmatpush1.msra.mxu0 %v2825
        %2867 = vmatprep.subr.mxu0 0.0
        %2868 = vmatpush1.msra.mxu0 %v2826
        %2869 = vmatprep.subr.mxu0 0.0
        %2870 = vmatpush1.msra.mxu0 0.0
        %2871 = vmatprep.subr.mxu0 0.0
        %2872 = vmatpush1.msra.mxu0 0.0
        %2873 = vmatprep.subr.mxu0 0.0
        %2874 = vmatpush1.msra.mxu0 0.0
        %2875 = vmatprep.subr.mxu0 0.0
        %2876 = vmatpush1.msra.mxu0 0.0
        %2877 = vmatprep.subr.mxu0 0.0
        %2878 = vmatpush1.msra.mxu0 0.0
        %2879 = vmatprep.subr.mxu0 0.0
        %2880 = vmatpush1.msra.mxu0 0.0
        %2881 = vmatprep.subr.mxu0 0.0
        %2882 = vmatpush1.msra.mxu0 0.0
        %2883 = vmatprep.subr.mxu0 0.0
        %2884 = vmatpush1.msra.mxu0 0.0
        %2885 = vmatprep.subr.mxu0 0.0
        %2886 = vmatpush1.msra.mxu0 0.0
        %2887 = vmatprep.subr.mxu0 0.0
        %2888 = vmatpush1.msra.mxu0 0.0
        %2889 = vmatprep.subr.mxu0 0.0
        %2890 = vmatpush1.msra.mxu0 0.0
        %2891 = vmatprep.subr.mxu0 0.0
        %2892 = vmatpush1.msra.mxu0 0.0
        %2893 = vmatprep.subr.mxu0 0.0
        %2894 = vmatpush1.msra.mxu0 0.0
        %2895 = vmatprep.subr.mxu0 0.0
        %2896 = vmatpush1.msra.mxu0 0.0
        %2897 = vmatprep.mubr.f32.mxu0 %v2828
        %2898 = vmatmul.mubr.f32.gmra.mrb[0].mxu0 %v2804
        %v2899 = vpop.f32.mrb[0].mxu0
        %v2900 = vadd.f32 0.0, %v2899
        %v2901 = vpop.f32.mrb[0].mxu0
        %2902 = vmatprep.mubr.f32.mxu0 %v2831
        %2903 = vmatmul.mubr.f32.gmra.mrb[0].mxu0 %v2806
        %v2904 = vpop.f32.mrb[0].mxu0
        %v2905 = vadd.f32 0.0, %v2904
        %v2906 = vpop.f32.mrb[0].mxu0
        %2907 = vdwg.mxu0
        %2908 = vrot.lane.b32.xlu0 %v2430, 64
        %v2909 = vpop.permute.xlu0 %2908
        %2910 = vrot.lane.b32.xlu0 %v2435, 64
        %v2911 = vpop.permute.xlu0 %2910
        %2914 = vmatprep.subr.mxu0 0.0
        %2915 = vmatpush1.msra.mxu0 %v2909
        %2916 = vmatprep.subr.mxu0 0.0
        %2917 = vmatpush1.msra.mxu0 %v2911
        %2918 = vmatprep.subr.mxu0 0.0
        %2919 = vmatpush1.msra.mxu0 0.0
        %2920 = vmatprep.subr.mxu0 0.0
        %2921 = vmatpush1.msra.mxu0 0.0
        %2922 = vmatprep.subr.mxu0 0.0
        %2923 = vmatpush1.msra.mxu0 0.0
        %2924 = vmatprep.subr.mxu0 0.0
        %2925 = vmatpush1.msra.mxu0 0.0
        %2926 = vmatprep.subr.mxu0 0.0
        %2927 = vmatpush1.msra.mxu0 0.0
        %2928 = vmatprep.subr.mxu0 0.0
        %2929 = vmatpush1.msra.mxu0 0.0
        %2930 = vmatprep.subr.mxu0 0.0
        %2931 = vmatpush1.msra.mxu0 0.0
        %2932 = vmatprep.subr.mxu0 0.0
        %2933 = vmatpush1.msra.mxu0 0.0
        %2934 = vmatprep.subr.mxu0 0.0
        %2935 = vmatpush1.msra.mxu0 0.0
        %2936 = vmatprep.subr.mxu0 0.0
        %2937 = vmatpush1.msra.mxu0 0.0
        %2938 = vmatprep.subr.mxu0 0.0
        %2939 = vmatpush1.msra.mxu0 0.0
        %2940 = vmatprep.subr.mxu0 0.0
        %2941 = vmatpush1.msra.mxu0 0.0
        %2942 = vmatprep.subr.mxu0 0.0
        %2943 = vmatpush1.msra.mxu0 0.0
        %2944 = vmatprep.subr.mxu0 0.0
        %2945 = vmatpush1.msra.mxu0 0.0
        %2946 = vmatprep.subr.mxu0 0.0
        %2947 = vmatpush1.msra.mxu0 0.0
        %2948 = vmatprep.subr.mxu0 0.0
        %2949 = vmatpush1.msra.mxu0 0.0
        %2950 = vmatprep.subr.mxu0 0.0
        %2951 = vmatpush1.msra.mxu0 0.0
        %2952 = vmatprep.subr.mxu0 0.0
        %2953 = vmatpush1.msra.mxu0 0.0
        %2954 = vmatprep.subr.mxu0 0.0
        %2955 = vmatpush1.msra.mxu0 0.0
        %2956 = vmatprep.subr.mxu0 0.0
        %2957 = vmatpush1.msra.mxu0 0.0
        %2958 = vmatprep.subr.mxu0 0.0
        %2959 = vmatpush1.msra.mxu0 0.0
        %2960 = vmatprep.subr.mxu0 0.0
        %2961 = vmatpush1.msra.mxu0 0.0
        %2962 = vmatprep.subr.mxu0 0.0
        %2963 = vmatpush1.msra.mxu0 0.0
        %2964 = vmatprep.subr.mxu0 0.0
        %2965 = vmatpush1.msra.mxu0 0.0
        %2966 = vmatprep.subr.mxu0 0.0
        %2967 = vmatpush1.msra.mxu0 0.0
        %2968 = vmatprep.subr.mxu0 0.0
        %2969 = vmatpush1.msra.mxu0 0.0
        %2970 = vmatprep.subr.mxu0 0.0
        %2971 = vmatpush1.msra.mxu0 0.0
        %2972 = vmatprep.subr.mxu0 0.0
        %2973 = vmatpush1.msra.mxu0 0.0
        %2974 = vmatprep.subr.mxu0 0.0
        %2975 = vmatpush1.msra.mxu0 0.0
        %2976 = vmatprep.subr.mxu0 0.0
        %2977 = vmatpush1.msra.mxu0 0.0
        %2978 = vmatprep.mubr.f32.mxu0 0.0
        %2979 = vmatmul.mubr.f32.gmra.mrb[0].mxu0 %v2722
        %v2980 = vpop.f32.mrb[0].mxu0
        %v2981 = vadd.f32 %v2900, %v2980
        %v2982 = vpop.f32.mrb[0].mxu0
        %2983 = vmatprep.mubr.f32.mxu0 0.0
        %2984 = vmatmul.mubr.f32.gmra.mrb[0].mxu0 %v2725
        %v2985 = vpop.f32.mrb[0].mxu0
        %v2986 = vadd.f32 %v2905, %v2985
        %v2987 = vpop.f32.mrb[0].mxu0
        %2988 = vdwg.mxu0
        %2989 = vrot.lane.b32.xlu0 %v2430, 23
        %v2990 = vpop.permute.xlu0 %2989
        %2991 = vrot.lane.b32.xlu0 %v2435, 23
        %v2992 = vpop.permute.xlu0 %2991
        %v2993 = vsel %vm756, %v2990, 0
        %v2995 = vsel %vm756, %v2992, 0
        %2997 = vmatprep.subr.mxu0 %v510
        %2998 = vmatpush1.msra.mxu0 %v509
        %2999 = vmatprep.subr.mxu0 %v766
        %3000 = vmatpush1.msra.mxu0 %v763
        %3001 = vmatprep.subr.mxu0 0.0
        %3002 = vmatpush1.msra.mxu0 0.0
        %3003 = vmatprep.subr.mxu0 0.0
        %3004 = vmatpush1.msra.mxu0 0.0
        %3005 = vmatprep.subr.mxu0 0.0
        %3006 = vmatpush1.msra.mxu0 0.0
        %3007 = vmatprep.subr.mxu0 0.0
        %3008 = vmatpush1.msra.mxu0 0.0
        %3009 = vmatprep.subr.mxu0 0.0
        %3010 = vmatpush1.msra.mxu0 0.0
        %3011 = vmatprep.subr.mxu0 0.0
        %3012 = vmatpush1.msra.mxu0 0.0
        %3013 = vmatprep.subr.mxu0 0.0
        %3014 = vmatpush1.msra.mxu0 0.0
        %3015 = vmatprep.subr.mxu0 0.0
        %3016 = vmatpush1.msra.mxu0 0.0
        %3017 = vmatprep.subr.mxu0 0.0
        %3018 = vmatpush1.msra.mxu0 0.0
        %3019 = vmatprep.subr.mxu0 0.0
        %3020 = vmatpush1.msra.mxu0 0.0
        %3021 = vmatprep.subr.mxu0 0.0
        %3022 = vmatpush1.msra.mxu0 0.0
        %3023 = vmatprep.subr.mxu0 0.0
        %3024 = vmatpush1.msra.mxu0 0.0
        %3025 = vmatprep.subr.mxu0 0.0
        %3026 = vmatpush1.msra.mxu0 0.0
        %3027 = vmatprep.subr.mxu0 0.0
        %3028 = vmatpush1.msra.mxu0 0.0
        %3029 = vmatprep.subr.mxu0 0.0
        %3030 = vmatpush1.msra.mxu0 0.0
        %3031 = vmatprep.subr.mxu0 0.0
        %3032 = vmatpush1.msra.mxu0 0.0
        %3033 = vmatprep.subr.mxu0 0.0
        %3034 = vmatpush1.msra.mxu0 0.0
        %3035 = vmatprep.subr.mxu0 0.0
        %3036 = vmatpush1.msra.mxu0 0.0
        %3037 = vmatprep.subr.mxu0 0.0
        %3038 = vmatpush1.msra.mxu0 0.0
        %3039 = vmatprep.subr.mxu0 0.0
        %3040 = vmatpush1.msra.mxu0 0.0
        %3041 = vmatprep.subr.mxu0 0.0
        %3042 = vmatpush1.msra.mxu0 0.0
        %3043 = vmatprep.subr.mxu0 0.0
        %3044 = vmatpush1.msra.mxu0 0.0
        %3045 = vmatprep.subr.mxu0 0.0
        %3046 = vmatpush1.msra.mxu0 0.0
        %3047 = vmatprep.subr.mxu0 0.0
        %3048 = vmatpush1.msra.mxu0 0.0
        %3049 = vmatprep.subr.mxu0 0.0
        %3050 = vmatpush1.msra.mxu0 0.0
        %3051 = vmatprep.subr.mxu0 0.0
        %3052 = vmatpush1.msra.mxu0 0.0
        %3053 = vmatprep.subr.mxu0 0.0
        %3054 = vmatpush1.msra.mxu0 0.0
        %3055 = vmatprep.subr.mxu0 0.0
        %3056 = vmatpush1.msra.mxu0 0.0
        %3057 = vmatprep.subr.mxu0 0.0
        %3058 = vmatpush1.msra.mxu0 0.0
        %3059 = vmatprep.subr.mxu0 0.0
        %3060 = vmatpush1.msra.mxu0 0.0
        %3061 = vmatprep.mubr.f32.mxu0 0.0
        %3062 = vmatmul.mubr.f32.gmra.mrb[0].mxu0 %v2993
        %v3063 = vpop.f32.mrb[0].mxu0
        %v3064 = vadd.f32 0.0, %v3063
        %v3065 = vpop.f32.mrb[0].mxu0
        %v3066 = vadd.f32 0.0, %v3065
        %3067 = vmatprep.mubr.f32.mxu0 0.0
        %3068 = vmatmul.mubr.f32.gmra.mrb[0].mxu0 %v2995
        %v3069 = vpop.f32.mrb[0].mxu0
        %v3070 = vadd.f32 0.0, %v3069
        %v3071 = vpop.f32.mrb[0].mxu0
        %v3072 = vadd.f32 0.0, %v3071
        %3073 = vdwg.mxu0
        %v3074 = vmul.f32 %v3064, %v479
        %v3075 = vmul.f32 %v3066, %v480
        %v3076 = vmul.f32 %v3070, %v481
        %v3077 = vmul.f32 %v3072, %v482
        %v3079 = vsel %vm849, %v3075, 0
        %v3082 = vsel %vm849, %v3077, 0
        %3084 = vmatprep.subr.mxu0 0.0
        %3085 = vmatpush1.msra.mxu0 %v637
        %3086 = vmatprep.subr.mxu0 0.0
        %3087 = vmatpush1.msra.mxu0 %v638
        %3088 = vmatprep.subr.mxu0 0.0
        %3089 = vmatpush1.msra.mxu0 %v639
        %3090 = vmatprep.subr.mxu0 0.0
        %3091 = vmatpush1.msra.mxu0 %v640
        %3092 = vmatprep.subr.mxu0 0.0
        %3093 = vmatpush1.msra.mxu0 %v641
        %3094 = vmatprep.subr.mxu0 0.0
        %3095 = vmatpush1.msra.mxu0 %v642
        %3096 = vmatprep.subr.mxu0 0.0
        %3097 = vmatpush1.msra.mxu0 %v643
        %3098 = vmatprep.subr.mxu0 0.0
        %3099 = vmatpush1.msra.mxu0 %v644
        %3100 = vmatprep.subr.mxu0 0.0
        %3101 = vmatpush1.msra.mxu0 %v645
        %3102 = vmatprep.subr.mxu0 0.0
        %3103 = vmatpush1.msra.mxu0 %v646
        %3104 = vmatprep.subr.mxu0 0.0
        %3105 = vmatpush1.msra.mxu0 %v647
        %3106 = vmatprep.subr.mxu0 0.0
        %3107 = vmatpush1.msra.mxu0 %v648
        %3108 = vmatprep.subr.mxu0 0.0
        %3109 = vmatpush1.msra.mxu0 %v649
        %3110 = vmatprep.subr.mxu0 0.0
        %3111 = vmatpush1.msra.mxu0 %v650
        %3112 = vmatprep.subr.mxu0 0.0
        %3113 = vmatpush1.msra.mxu0 %v651
        %3114 = vmatprep.subr.mxu0 0.0
        %3115 = vmatpush1.msra.mxu0 %v652
        %3116 = vmatprep.subr.mxu0 0.0
        %3117 = vmatpush1.msra.mxu0 %v653
        %3118 = vmatprep.subr.mxu0 0.0
        %3119 = vmatpush1.msra.mxu0 %v654
        %3120 = vmatprep.subr.mxu0 0.0
        %3121 = vmatpush1.msra.mxu0 0.0
        %3122 = vmatprep.subr.mxu0 0.0
        %3123 = vmatpush1.msra.mxu0 0.0
        %3124 = vmatprep.subr.mxu0 0.0
        %3125 = vmatpush1.msra.mxu0 0.0
        %3126 = vmatprep.subr.mxu0 0.0
        %3127 = vmatpush1.msra.mxu0 0.0
        %3128 = vmatprep.subr.mxu0 0.0
        %3129 = vmatpush1.msra.mxu0 0.0
        %3130 = vmatprep.subr.mxu0 0.0
        %3131 = vmatpush1.msra.mxu0 0.0
        %3132 = vmatprep.subr.mxu0 0.0
        %3133 = vmatpush1.msra.mxu0 0.0
        %3134 = vmatprep.subr.mxu0 0.0
        %3135 = vmatpush1.msra.mxu0 0.0
        %3136 = vmatprep.subr.mxu0 0.0
        %3137 = vmatpush1.msra.mxu0 0.0
        %3138 = vmatprep.subr.mxu0 0.0
        %3139 = vmatpush1.msra.mxu0 0.0
        %3140 = vmatprep.subr.mxu0 0.0
        %3141 = vmatpush1.msra.mxu0 0.0
        %3142 = vmatprep.subr.mxu0 0.0
        %3143 = vmatpush1.msra.mxu0 0.0
        %3144 = vmatprep.subr.mxu0 0.0
        %3145 = vmatpush1.msra.mxu0 0.0
        %3146 = vmatprep.subr.mxu0 0.0
        %3147 = vmatpush1.msra.mxu0 0.0
        %3148 = vmatprep.mubr.f32.mxu0 %v3079
        %3149 = vmatmul.mubr.f32.gmra.mrb[0].mxu0 %v3074
        %v3150 = vpop.f32.mrb[0].mxu0
        %v3151 = vadd.f32 0.0, %v3150
        %v3152 = vpop.f32.mrb[0].mxu0
        %3153 = vmatprep.mubr.f32.mxu0 %v3082
        %3154 = vmatmul.mubr.f32.gmra.mrb[0].mxu0 %v3076
        %v3155 = vpop.f32.mrb[0].mxu0
        %v3156 = vadd.f32 0.0, %v3155
        %v3157 = vpop.f32.mrb[0].mxu0
        %3158 = vdwg.mxu0
        %3159 = vrot.lane.b32.xlu0 %v2430, 112
        %v3160 = vpop.permute.xlu0 %3159
        %3161 = vrot.lane.b32.xlu0 %v2435, 112
        %v3162 = vpop.permute.xlu0 %3161
        %3163 = vrot.lane.b32.xlu0 %v2430, 80
        %v3164 = vpop.permute.xlu0 %3163
        %3165 = vrot.lane.b32.xlu0 %v2435, 80
        %v3166 = vpop.permute.xlu0 %3165
        %v3167 = vsel %vm849, %v3160, 0
        %v3169 = vsel %vm849, %v3162, 0
        %v3171 = vsel %vm849, %v3164, 0
        %v3173 = vsel %vm849, %v3166, 0
        %3175 = vmatprep.subr.mxu0 0.0
        %3176 = vmatpush1.xpose.msra.mxu0 %v3171
        %3177 = vmatprep.subr.mxu0 0.0
        %3178 = vmatpush1.xpose.msra.mxu0 %v3173
        %3179 = vmatprep.subr.mxu0 0.0
        %3180 = vmatpush1.xpose.msra.mxu0 0.0
        %3181 = vmatprep.subr.mxu0 0.0
        %3182 = vmatpush1.xpose.msra.mxu0 0.0
        %3183 = vmatprep.subr.mxu0 0.0
        %3184 = vmatpush1.xpose.msra.mxu0 0.0
        %3185 = vmatprep.subr.mxu0 0.0
        %3186 = vmatpush1.xpose.msra.mxu0 0.0
        %3187 = vmatprep.subr.mxu0 0.0
        %3188 = vmatpush1.xpose.msra.mxu0 0.0
        %3189 = vmatprep.subr.mxu0 0.0
        %3190 = vmatpush1.xpose.msra.mxu0 0.0
        %3191 = vmatprep.subr.mxu0 0.0
        %3192 = vmatpush1.xpose.msra.mxu0 0.0
        %3193 = vmatprep.subr.mxu0 0.0
        %3194 = vmatpush1.xpose.msra.mxu0 0.0
        %3195 = vmatprep.subr.mxu0 0.0
        %3196 = vmatpush1.xpose.msra.mxu0 0.0
        %3197 = vmatprep.subr.mxu0 0.0
        %3198 = vmatpush1.xpose.msra.mxu0 0.0
        %3199 = vmatprep.subr.mxu0 0.0
        %3200 = vmatpush1.xpose.msra.mxu0 0.0
        %3201 = vmatprep.subr.mxu0 0.0
        %3202 = vmatpush1.xpose.msra.mxu0 0.0
        %3203 = vmatprep.subr.mxu0 0.0
        %3204 = vmatpush1.xpose.msra.mxu0 0.0
        %3205 = vmatprep.subr.mxu0 0.0
        %3206 = vmatpush1.xpose.msra.mxu0 0.0
        %3207 = vmatprep.subr.mxu0 0.0
        %3208 = vmatpush1.xpose.msra.mxu0 0.0
        %3209 = vmatprep.subr.mxu0 0.0
        %3210 = vmatpush1.xpose.msra.mxu0 0.0
        %3211 = vmatprep.subr.mxu0 0.0
        %3212 = vmatpush1.xpose.msra.mxu0 0.0
        %3213 = vmatprep.subr.mxu0 0.0
        %3214 = vmatpush1.xpose.msra.mxu0 0.0
        %3215 = vmatprep.subr.mxu0 0.0
        %3216 = vmatpush1.xpose.msra.mxu0 0.0
        %3217 = vmatprep.subr.mxu0 0.0
        %3218 = vmatpush1.xpose.msra.mxu0 0.0
        %3219 = vmatprep.subr.mxu0 0.0
        %3220 = vmatpush1.xpose.msra.mxu0 0.0
        %3221 = vmatprep.subr.mxu0 0.0
        %3222 = vmatpush1.xpose.msra.mxu0 0.0
        %3223 = vmatprep.subr.mxu0 0.0
        %3224 = vmatpush1.xpose.msra.mxu0 0.0
        %3225 = vmatprep.subr.mxu0 0.0
        %3226 = vmatpush1.xpose.msra.mxu0 0.0
        %3227 = vmatprep.subr.mxu0 0.0
        %3228 = vmatpush1.xpose.msra.mxu0 0.0
        %3229 = vmatprep.subr.mxu0 0.0
        %3230 = vmatpush1.xpose.msra.mxu0 0.0
        %3231 = vmatprep.subr.mxu0 0.0
        %3232 = vmatpush1.xpose.msra.mxu0 0.0
        %3233 = vmatprep.subr.mxu0 0.0
        %3234 = vmatpush1.xpose.msra.mxu0 0.0
        %3235 = vmatprep.subr.mxu0 0.0
        %3236 = vmatpush1.xpose.msra.mxu0 0.0
        %3237 = vmatprep.subr.mxu0 0.0
        %3238 = vmatpush1.xpose.msra.mxu0 0.0
        %3239 = vmatprep.mubr.f32.mxu0 0.0
        %3240 = vmatmul.mubr.f32.gmra.mrb[0].mxu0 %v3167
        %v3241 = vpop.f32.mrb[0].mxu0
        %v3242 = vadd.f32 %v3151, %v3241
        %v3243 = vpop.f32.mrb[0].mxu0
        %3244 = vmatprep.mubr.f32.mxu0 0.0
        %3245 = vmatmul.mubr.f32.gmra.mrb[0].mxu0 %v3169
        %v3246 = vpop.f32.mrb[0].mxu0
        %v3247 = vadd.f32 %v3156, %v3246
        %v3248 = vpop.f32.mrb[0].mxu0
        %3249 = vdwg.mxu0
        %v3250 = vsel %vm1018, %v3242, -10000.0
        %v3251 = vsel %vm1019, %v3247, -10000.0
        %v3252 = vsel %vm849, %v3250, -inf
        %3253 = vmax.xlane.f32.xlu0 %v3252
        %v3254 = vpop.xlane.xlu0 %3253
        %v3255 = vsel %vm849, %v3251, -inf
        %3256 = vmax.xlane.f32.xlu0 %v3255
        %v3257 = vpop.xlane.xlu0 %3256
        %v3258 = vsub.f32 %v3250, %v3254
        %v3259 = vsub.f32 %v3251, %v3257
        %v3260 = vmul.f32 %v3258, 1.442695
        %v3261 = vpow.pop %v3260
        %v3262 = vmul.f32 %v3259, 1.442695
        %v3263 = vpow.pop %v3262
        %v3264 = vsel %vm849, %v3261, 0.0
        %3265 = vadd.xlane.f32.xlu0 %v3264
        %v3266 = vpop.xlane.xlu0 %3265
        %v3267 = vsel %vm849, %v3263, 0.0
        %3268 = vadd.xlane.f32.xlu0 %v3267
        %v3269 = vpop.xlane.xlu0 %3268
        %v3270 = vrcp.pop %v3266
        %v3271 = vrcp.pop %v3269
        %v3272 = vmul.f32 %v3261, %v3270
        %v3273 = vmul.f32 %v3263, %v3271
        %v3275 = vsel %vm849, %v3272, 0
        %v3278 = vsel %vm849, %v3273, 0
        %3280 = vmatprep.subr.mxu0 %v480
        %3281 = vmatpush1.msra.mxu0 %v479
        %3282 = vmatprep.subr.mxu0 %v482
        %3283 = vmatpush1.msra.mxu0 %v481
        %3284 = vmatprep.subr.mxu0 0.0
        %3285 = vmatpush1.msra.mxu0 0.0
        %3286 = vmatprep.subr.mxu0 0.0
        %3287 = vmatpush1.msra.mxu0 0.0
        %3288 = vmatprep.subr.mxu0 0.0
        %3289 = vmatpush1.msra.mxu0 0.0
        %3290 = vmatprep.subr.mxu0 0.0
        %3291 = vmatpush1.msra.mxu0 0.0
        %3292 = vmatprep.subr.mxu0 0.0
        %3293 = vmatpush1.msra.mxu0 0.0
        %3294 = vmatprep.subr.mxu0 0.0
        %3295 = vmatpush1.msra.mxu0 0.0
        %3296 = vmatprep.subr.mxu0 0.0
        %3297 = vmatpush1.msra.mxu0 0.0
        %3298 = vmatprep.subr.mxu0 0.0
        %3299 = vmatpush1.msra.mxu0 0.0
        %3300 = vmatprep.subr.mxu0 0.0
        %3301 = vmatpush1.msra.mxu0 0.0
        %3302 = vmatprep.subr.mxu0 0.0
        %3303 = vmatpush1.msra.mxu0 0.0
        %3304 = vmatprep.subr.mxu0 0.0
        %3305 = vmatpush1.msra.mxu0 0.0
        %3306 = vmatprep.subr.mxu0 0.0
        %3307 = vmatpush1.msra.mxu0 0.0
        %3308 = vmatprep.subr.mxu0 0.0
        %3309 = vmatpush1.msra.mxu0 0.0
        %3310 = vmatprep.subr.mxu0 0.0
        %3311 = vmatpush1.msra.mxu0 0.0
        %3312 = vmatprep.subr.mxu0 0.0
        %3313 = vmatpush1.msra.mxu0 0.0
        %3314 = vmatprep.subr.mxu0 0.0
        %3315 = vmatpush1.msra.mxu0 0.0
        %3316 = vmatprep.subr.mxu0 0.0
        %3317 = vmatpush1.msra.mxu0 0.0
        %3318 = vmatprep.subr.mxu0 0.0
        %3319 = vmatpush1.msra.mxu0 0.0
        %3320 = vmatprep.subr.mxu0 0.0
        %3321 = vmatpush1.msra.mxu0 0.0
        %3322 = vmatprep.subr.mxu0 0.0
        %3323 = vmatpush1.msra.mxu0 0.0
        %3324 = vmatprep.subr.mxu0 0.0
        %3325 = vmatpush1.msra.mxu0 0.0
        %3326 = vmatprep.subr.mxu0 0.0
        %3327 = vmatpush1.msra.mxu0 0.0
        %3328 = vmatprep.subr.mxu0 0.0
        %3329 = vmatpush1.msra.mxu0 0.0
        %3330 = vmatprep.subr.mxu0 0.0
        %3331 = vmatpush1.msra.mxu0 0.0
        %3332 = vmatprep.subr.mxu0 0.0
        %3333 = vmatpush1.msra.mxu0 0.0
        %3334 = vmatprep.subr.mxu0 0.0
        %3335 = vmatpush1.msra.mxu0 0.0
        %3336 = vmatprep.subr.mxu0 0.0
        %3337 = vmatpush1.msra.mxu0 0.0
        %3338 = vmatprep.subr.mxu0 0.0
        %3339 = vmatpush1.msra.mxu0 0.0
        %3340 = vmatprep.subr.mxu0 0.0
        %3341 = vmatpush1.msra.mxu0 0.0
        %3342 = vmatprep.subr.mxu0 0.0
        %3343 = vmatpush1.msra.mxu0 0.0
        %3344 = vmatprep.mubr.f32.mxu0 0.0
        %3345 = vmatmul.mubr.f32.gmra.mrb[0].mxu0 %v3275
        %v3346 = vpop.f32.mrb[0].mxu0
        %v3347 = vadd.f32 0.0, %v3346
        %v3348 = vpop.f32.mrb[0].mxu0
        %v3349 = vadd.f32 0.0, %v3348
        %3350 = vmatprep.mubr.f32.mxu0 0.0
        %3351 = vmatmul.mubr.f32.gmra.mrb[0].mxu0 %v3278
        %v3352 = vpop.f32.mrb[0].mxu0
        %v3353 = vadd.f32 0.0, %v3352
        %v3354 = vpop.f32.mrb[0].mxu0
        %v3355 = vadd.f32 0.0, %v3354
        %3356 = vdwg.mxu0
        %v3357 = vmul.f32 %v3347, %v497
        %v3358 = vmul.f32 %v3349, %v498
        %v3359 = vmul.f32 %v3353, %v499
        %v3360 = vmul.f32 %v3355, %v500
        %v3362 = vsel %vm849, %v3358, 0
        %v3365 = vsel %vm849, %v3360, 0
        %3367 = vmatprep.subr.mxu0 0.0
        %3368 = vmatpush1.msra.mxu0 %v2809
        %3369 = vmatprep.subr.mxu0 0.0
        %3370 = vmatpush1.msra.mxu0 %v2810
        %3371 = vmatprep.subr.mxu0 0.0
        %3372 = vmatpush1.msra.mxu0 %v2811
        %3373 = vmatprep.subr.mxu0 0.0
        %3374 = vmatpush1.msra.mxu0 %v2812
        %3375 = vmatprep.subr.mxu0 0.0
        %3376 = vmatpush1.msra.mxu0 %v2813
        %3377 = vmatprep.subr.mxu0 0.0
        %3378 = vmatpush1.msra.mxu0 %v2814
        %3379 = vmatprep.subr.mxu0 0.0
        %3380 = vmatpush1.msra.mxu0 %v2815
        %3381 = vmatprep.subr.mxu0 0.0
        %3382 = vmatpush1.msra.mxu0 %v2816
        %3383 = vmatprep.subr.mxu0 0.0
        %3384 = vmatpush1.msra.mxu0 %v2817
        %3385 = vmatprep.subr.mxu0 0.0
        %3386 = vmatpush1.msra.mxu0 %v2818
        %3387 = vmatprep.subr.mxu0 0.0
        %3388 = vmatpush1.msra.mxu0 %v2819
        %3389 = vmatprep.subr.mxu0 0.0
        %3390 = vmatpush1.msra.mxu0 %v2820
        %3391 = vmatprep.subr.mxu0 0.0
        %3392 = vmatpush1.msra.mxu0 %v2821
        %3393 = vmatprep.subr.mxu0 0.0
        %3394 = vmatpush1.msra.mxu0 %v2822
        %3395 = vmatprep.subr.mxu0 0.0
        %3396 = vmatpush1.msra.mxu0 %v2823
        %3397 = vmatprep.subr.mxu0 0.0
        %3398 = vmatpush1.msra.mxu0 %v2824
        %3399 = vmatprep.subr.mxu0 0.0
        %3400 = vmatpush1.msra.mxu0 %v2825
        %3401 = vmatprep.subr.mxu0 0.0
        %3402 = vmatpush1.msra.mxu0 %v2826
        %3403 = vmatprep.subr.mxu0 0.0
        %3404 = vmatpush1.msra.mxu0 0.0
        %3405 = vmatprep.subr.mxu0 0.0
        %3406 = vmatpush1.msra.mxu0 0.0
        %3407 = vmatprep.subr.mxu0 0.0
        %3408 = vmatpush1.msra.mxu0 0.0
        %3409 = vmatprep.subr.mxu0 0.0
        %3410 = vmatpush1.msra.mxu0 0.0
        %3411 = vmatprep.subr.mxu0 0.0
        %3412 = vmatpush1.msra.mxu0 0.0
        %3413 = vmatprep.subr.mxu0 0.0
        %3414 = vmatpush1.msra.mxu0 0.0
        %3415 = vmatprep.subr.mxu0 0.0
        %3416 = vmatpush1.msra.mxu0 0.0
        %3417 = vmatprep.subr.mxu0 0.0
        %3418 = vmatpush1.msra.mxu0 0.0
        %3419 = vmatprep.subr.mxu0 0.0
        %3420 = vmatpush1.msra.mxu0 0.0
        %3421 = vmatprep.subr.mxu0 0.0
        %3422 = vmatpush1.msra.mxu0 0.0
        %3423 = vmatprep.subr.mxu0 0.0
        %3424 = vmatpush1.msra.mxu0 0.0
        %3425 = vmatprep.subr.mxu0 0.0
        %3426 = vmatpush1.msra.mxu0 0.0
        %3427 = vmatprep.subr.mxu0 0.0
        %3428 = vmatpush1.msra.mxu0 0.0
        %3429 = vmatprep.subr.mxu0 0.0
        %3430 = vmatpush1.msra.mxu0 0.0
        %3431 = vmatprep.mubr.f32.mxu0 %v3362
        %3432 = vmatmul.mubr.f32.gmra.mrb[0].mxu0 %v3357
        %v3433 = vpop.f32.mrb[0].mxu0
        %v3434 = vadd.f32 0.0, %v3433
        %v3435 = vpop.f32.mrb[0].mxu0
        %3436 = vmatprep.mubr.f32.mxu0 %v3365
        %3437 = vmatmul.mubr.f32.gmra.mrb[0].mxu0 %v3359
        %v3438 = vpop.f32.mrb[0].mxu0
        %v3439 = vadd.f32 0.0, %v3438
        %v3440 = vpop.f32.mrb[0].mxu0
        %3441 = vdwg.mxu0
        %3442 = vrot.lane.b32.xlu0 %v2430, 48
        %v3443 = vpop.permute.xlu0 %3442
        %3444 = vrot.lane.b32.xlu0 %v2435, 48
        %v3445 = vpop.permute.xlu0 %3444
        %3448 = vmatprep.subr.mxu0 0.0
        %3449 = vmatpush1.msra.mxu0 %v3443
        %3450 = vmatprep.subr.mxu0 0.0
        %3451 = vmatpush1.msra.mxu0 %v3445
        %3452 = vmatprep.subr.mxu0 0.0
        %3453 = vmatpush1.msra.mxu0 0.0
        %3454 = vmatprep.subr.mxu0 0.0
        %3455 = vmatpush1.msra.mxu0 0.0
        %3456 = vmatprep.subr.mxu0 0.0
        %3457 = vmatpush1.msra.mxu0 0.0
        %3458 = vmatprep.subr.mxu0 0.0
        %3459 = vmatpush1.msra.mxu0 0.0
        %3460 = vmatprep.subr.mxu0 0.0
        %3461 = vmatpush1.msra.mxu0 0.0
        %3462 = vmatprep.subr.mxu0 0.0
        %3463 = vmatpush1.msra.mxu0 0.0
        %3464 = vmatprep.subr.mxu0 0.0
        %3465 = vmatpush1.msra.mxu0 0.0
        %3466 = vmatprep.subr.mxu0 0.0
        %3467 = vmatpush1.msra.mxu0 0.0
        %3468 = vmatprep.subr.mxu0 0.0
        %3469 = vmatpush1.msra.mxu0 0.0
        %3470 = vmatprep.subr.mxu0 0.0
        %3471 = vmatpush1.msra.mxu0 0.0
        %3472 = vmatprep.subr.mxu0 0.0
        %3473 = vmatpush1.msra.mxu0 0.0
        %3474 = vmatprep.subr.mxu0 0.0
        %3475 = vmatpush1.msra.mxu0 0.0
        %3476 = vmatprep.subr.mxu0 0.0
        %3477 = vmatpush1.msra.mxu0 0.0
        %3478 = vmatprep.subr.mxu0 0.0
        %3479 = vmatpush1.msra.mxu0 0.0
        %3480 = vmatprep.subr.mxu0 0.0
        %3481 = vmatpush1.msra.mxu0 0.0
        %3482 = vmatprep.subr.mxu0 0.0
        %3483 = vmatpush1.msra.mxu0 0.0
        %3484 = vmatprep.subr.mxu0 0.0
        %3485 = vmatpush1.msra.mxu0 0.0
        %3486 = vmatprep.subr.mxu0 0.0
        %3487 = vmatpush1.msra.mxu0 0.0
        %3488 = vmatprep.subr.mxu0 0.0
        %3489 = vmatpush1.msra.mxu0 0.0
        %3490 = vmatprep.subr.mxu0 0.0
        %3491 = vmatpush1.msra.mxu0 0.0
        %3492 = vmatprep.subr.mxu0 0.0
        %3493 = vmatpush1.msra.mxu0 0.0
        %3494 = vmatprep.subr.mxu0 0.0
        %3495 = vmatpush1.msra.mxu0 0.0
        %3496 = vmatprep.subr.mxu0 0.0
        %3497 = vmatpush1.msra.mxu0 0.0
        %3498 = vmatprep.subr.mxu0 0.0
        %3499 = vmatpush1.msra.mxu0 0.0
        %3500 = vmatprep.subr.mxu0 0.0
        %3501 = vmatpush1.msra.mxu0 0.0
        %3502 = vmatprep.subr.mxu0 0.0
        %3503 = vmatpush1.msra.mxu0 0.0
        %3504 = vmatprep.subr.mxu0 0.0
        %3505 = vmatpush1.msra.mxu0 0.0
        %3506 = vmatprep.subr.mxu0 0.0
        %3507 = vmatpush1.msra.mxu0 0.0
        %3508 = vmatprep.subr.mxu0 0.0
        %3509 = vmatpush1.msra.mxu0 0.0
        %3510 = vmatprep.subr.mxu0 0.0
        %3511 = vmatpush1.msra.mxu0 0.0
        %3512 = vmatprep.mubr.f32.mxu0 0.0
        %3513 = vmatmul.mubr.f32.gmra.mrb[0].mxu0 %v3275
        %v3514 = vpop.f32.mrb[0].mxu0
        %v3515 = vadd.f32 %v3434, %v3514
        %v3516 = vpop.f32.mrb[0].mxu0
        %3517 = vmatprep.mubr.f32.mxu0 0.0
        %3518 = vmatmul.mubr.f32.gmra.mrb[0].mxu0 %v3278
        %v3519 = vpop.f32.mrb[0].mxu0
        %v3520 = vadd.f32 %v3439, %v3519
        %v3521 = vpop.f32.mrb[0].mxu0
        %3522 = vdwg.mxu0
        %3525 = vrot.lane.b32.xlu0 %v3515, 16
        %v3526 = vpop.permute.xlu0 %3525
        %3527 = vrot.lane.b32.xlu0 %v3520, 16
        %v3528 = vpop.permute.xlu0 %3527
        %v3531 = vsel %vm849, %v2981, %v3526
        %v3532 = vsel %vm849, %v2986, %v3528
        %s3533 = scalar_lea.vmem %s4, 32
        %v3534 = vld [vmem:[%s3533] sm:$0xff]
        %v3535 = vld [vmem:[%s3533 + $0x8] sm:$0xff]
        %v3536 = vld [vmem:[%s3533 + $0x10] sm:$0xff]
        %v3537 = vld [vmem:[%s3533 + $0x18] sm:$0xff]
        %s3538 = scalar_lea.vmem %s5, 1
        %v3539 = vld [vmem:[%s3538] sm:$0x1]
        %v3541 = vlaneseq
        %v3542 = vshrl.u32 %v3541, 7
        %v3543 = vsub.s32 0, %v3542
        %v3544 = vrot.slane %v3539, %v3543
        %v3547 = vsel %vm668, %v3531, 0
        %v3550 = vsel %vm668, %v3532, 0
        %3552 = vmatprep.subr.mxu0 0.0
        %3553 = vmatpush1.msra.mxu0 %v3534
        %3554 = vmatprep.subr.mxu0 0.0
        %3555 = vmatpush1.msra.mxu0 %v3535
        %3556 = vmatprep.subr.mxu0 0.0
        %3557 = vmatpush1.msra.mxu0 %v3536
        %3558 = vmatprep.subr.mxu0 0.0
        %3559 = vmatpush1.msra.mxu0 %v3537
        %3560 = vmatprep.subr.mxu0 0.0
        %3561 = vmatpush1.msra.mxu0 0.0
        %3562 = vmatprep.subr.mxu0 0.0
        %3563 = vmatpush1.msra.mxu0 0.0
        %3564 = vmatprep.subr.mxu0 0.0
        %3565 = vmatpush1.msra.mxu0 0.0
        %3566 = vmatprep.subr.mxu0 0.0
        %3567 = vmatpush1.msra.mxu0 0.0
        %3568 = vmatprep.subr.mxu0 0.0
        %3569 = vmatpush1.msra.mxu0 0.0
        %3570 = vmatprep.subr.mxu0 0.0
        %3571 = vmatpush1.msra.mxu0 0.0
        %3572 = vmatprep.subr.mxu0 0.0
        %3573 = vmatpush1.msra.mxu0 0.0
        %3574 = vmatprep.subr.mxu0 0.0
        %3575 = vmatpush1.msra.mxu0 0.0
        %3576 = vmatprep.subr.mxu0 0.0
        %3577 = vmatpush1.msra.mxu0 0.0
        %3578 = vmatprep.subr.mxu0 0.0
        %3579 = vmatpush1.msra.mxu0 0.0
        %3580 = vmatprep.subr.mxu0 0.0
        %3581 = vmatpush1.msra.mxu0 0.0
        %3582 = vmatprep.subr.mxu0 0.0
        %3583 = vmatpush1.msra.mxu0 0.0
        %3584 = vmatprep.subr.mxu0 0.0
        %3585 = vmatpush1.msra.mxu0 0.0
        %3586 = vmatprep.subr.mxu0 0.0
        %3587 = vmatpush1.msra.mxu0 0.0
        %3588 = vmatprep.subr.mxu0 0.0
        %3589 = vmatpush1.msra.mxu0 0.0
        %3590 = vmatprep.subr.mxu0 0.0
        %3591 = vmatpush1.msra.mxu0 0.0
        %3592 = vmatprep.subr.mxu0 0.0
        %3593 = vmatpush1.msra.mxu0 0.0
        %3594 = vmatprep.subr.mxu0 0.0
        %3595 = vmatpush1.msra.mxu0 0.0
        %3596 = vmatprep.subr.mxu0 0.0
        %3597 = vmatpush1.msra.mxu0 0.0
        %3598 = vmatprep.subr.mxu0 0.0
        %3599 = vmatpush1.msra.mxu0 0.0
        %3600 = vmatprep.subr.mxu0 0.0
        %3601 = vmatpush1.msra.mxu0 0.0
        %3602 = vmatprep.subr.mxu0 0.0
        %3603 = vmatpush1.msra.mxu0 0.0
        %3604 = vmatprep.subr.mxu0 0.0
        %3605 = vmatpush1.msra.mxu0 0.0
        %3606 = vmatprep.subr.mxu0 0.0
        %3607 = vmatpush1.msra.mxu0 0.0
        %3608 = vmatprep.subr.mxu0 0.0
        %3609 = vmatpush1.msra.mxu0 0.0
        %3610 = vmatprep.subr.mxu0 0.0
        %3611 = vmatpush1.msra.mxu0 0.0
        %3612 = vmatprep.subr.mxu0 0.0
        %3613 = vmatpush1.msra.mxu0 0.0
        %3614 = vmatprep.subr.mxu0 0.0
        %3615 = vmatpush1.msra.mxu0 0.0
        %3616 = vmatprep.mubr.f32.mxu0 0.0
        %3617 = vmatmul.mubr.f32.gmra.mrb[0].mxu0 %v3547
        %v3618 = vpop.f32.mrb[0].mxu0
        %v3619 = vadd.f32 %v3544, %v3618
        %v3620 = vpop.f32.mrb[0].mxu0
        %3621 = vmatprep.mubr.f32.mxu0 0.0
        %3622 = vmatmul.mubr.f32.gmra.mrb[0].mxu0 %v3550
        %v3623 = vpop.f32.mrb[0].mxu0
        %v3624 = vadd.f32 %v3544, %v3623
        %v3625 = vpop.f32.mrb[0].mxu0
        %3626 = vdwg.mxu0
        %v3627 = vadd.f32 %v2342, %v3619
        %v3628 = vadd.f32 %v2343, %v3624
        %s3629 = scalar_lea.vmem %s7, 4
        %v3630 = vld [vmem:[%s3629] sm:$0x1]
        %s3631 = scalar_lea.vmem %s7, 5
        %v3632 = vld [vmem:[%s3631] sm:$0x1]
        %v3633 = vsel %vm668, %v3627, 0.0
        %3634 = vadd.xlane.f32.xlu0 %v3633
        %v3635 = vpop.xlane.xlu0 %3634
        %v3636 = vsel %vm668, %v3628, 0.0
        %3637 = vadd.xlane.f32.xlu0 %v3636
        %v3638 = vpop.xlane.xlu0 %3637
        %v3639 = vmul.f32 %v3635, %v1958
        %v3640 = vmul.f32 %v3638, %v1958
        %v3641 = vsub.f32 %v3627, %v3639
        %v3642 = vsub.f32 %v3628, %v3640
        %v3643 = vmul.f32 %v3641, %v3641
        %v3644 = vmul.f32 %v3642, %v3642
        %v3645 = vsel %vm668, %v3643, 0.0
        %3646 = vadd.xlane.f32.xlu0 %v3645
        %v3647 = vpop.xlane.xlu0 %3646
        %v3648 = vsel %vm668, %v3644, 0.0
        %3649 = vadd.xlane.f32.xlu0 %v3648
        %v3650 = vpop.xlane.xlu0 %3649
        %v3651 = vmul.f32 %v3647, %v1958
        %v3652 = vmul.f32 %v3650, %v1958
        %v3653 = vadd.f32 %v3651, 1e-05
        %v3654 = vadd.f32 %v3652, 1e-05
        %v3655 = vrsqrt.pop %v3653
        %v3656 = vrsqrt.pop %v3654
        %v3657 = vmul.f32 %v3641, %v3655
        %v3658 = vmul.f32 %v3642, %v3656
        %v3660 = vlaneseq
        %v3661 = vshrl.u32 %v3660, 7
        %v3662 = vsub.s32 0, %v3661
        %v3663 = vrot.slane %v3630, %v3662
        %v3665 = vmul.f32 %v3657, %v3663
        %v3666 = vmul.f32 %v3658, %v3663
        %v3668 = vlaneseq
        %v3669 = vshrl.u32 %v3668, 7
        %v3670 = vsub.s32 0, %v3669
        %v3671 = vrot.slane %v3632, %v3670
        %v3673 = vadd.f32 %v3665, %v3671
        %v3674 = vadd.f32 %v3666, %v3671
        %v3675 = vmul.f32 %v3673, %v459
        %v3676 = vmul.f32 %v3674, %v460
        %v3679 = vrot.slane %v3675, 1
        %v3680 = vrot.slane %v3676, 1
        %v3681 = vsel %vm1999, %v3679, %v3680
        %3682 = vrot.lane.b32.xlu0 %v3679, 32
        %v3683 = vpop.permute.xlu0 %3682
        %3684 = vrot.lane.b32.xlu0 %v3681, 32
        %v3685 = vpop.permute.xlu0 %3684
        %3686 = vrot.lane.b32.xlu0 %v3680, 32
        %v3687 = vpop.permute.xlu0 %3686
        %v3691 = vrot.slane %v3675, 2
        %v3692 = vrot.slane %v3676, 2
        %v3693 = vsel %vm2013, %v3691, %v3692
        %v3694 = vsel %vm2013, %v3692, %v2017
        %3695 = vrot.lane.b32.xlu0 %v3691, 64
        %v3696 = vpop.permute.xlu0 %3695
        %3697 = vrot.lane.b32.xlu0 %v3693, 64
        %v3698 = vpop.permute.xlu0 %3697
        %3699 = vrot.lane.b32.xlu0 %v3694, 64
        %v3700 = vpop.permute.xlu0 %3699
        %v3704 = vsel %vm668, 0.0, %v3683
        %v3705 = vsel %vm668, %v3675, %v3685
        %v3706 = vsel %vm668, %v3676, %v3687
        %v3707 = vsel %vm2031, %v3704, %v3696
        %v3708 = vsel %vm2031, %v3705, %v3698
        %v3709 = vsel %vm2031, %v3706, %v3700
        %s3710 = scalar_lea.vmem %s8, 96
        %v3711 = vld [vmem:[%s3710] sm:$0xff]
        %v3712 = vld [vmem:[%s3710 + $0x8] sm:$0xff]
        %v3713 = vld [vmem:[%s3710 + $0x10] sm:$0xff]
        %v3714 = vld [vmem:[%s3710 + $0x18] sm:$0xff]
        %v3715 = vld [vmem:[%s3710 + $0x20] sm:$0xff]
        %v3716 = vld [vmem:[%s3710 + $0x28] sm:$0xff]
        %v3717 = vld [vmem:[%s3710 + $0x30] sm:$0xff]
        %v3718 = vld [vmem:[%s3710 + $0x38] sm:$0xff]
        %v3719 = vld [vmem:[%s3710 + $0x40] sm:$0xff]
        %v3720 = vld [vmem:[%s3710 + $0x48] sm:$0xff]
        %v3721 = vld [vmem:[%s3710 + $0x50] sm:$0xff]
        %v3722 = vld [vmem:[%s3710 + $0x58] sm:$0xff]
        %s3723 = scalar_lea.vmem %s9, 1
        %v3724 = vld [vmem:[%s3723] sm:$0x1]
        %v3726 = vlaneseq
        %v3727 = vshrl.u32 %v3726, 7
        %v3728 = vsub.s32 0, %v3727
        %v3729 = vrot.slane %v3724, %v3728
        %v3734 = vrot.slane %v3707, 7
        %v3735 = vrot.slane %v3708, 7
        %v3736 = vsel %vm761, %v3734, %v3735
        %v3737 = vrot.slane %v3709, 7
        %v3738 = vsel %vm761, %v3735, %v3737
        %v3739 = vsel %vm2062, %v3736, 0
        %v3741 = vsel %vm2062, %v3738, 0
        %3743 = vmatprep.subr.mxu0 0.0
        %3744 = vmatpush1.msra.mxu0 %v3711
        %3745 = vmatprep.subr.mxu0 0.0
        %3746 = vmatpush1.msra.mxu0 %v3712
        %3747 = vmatprep.subr.mxu0 0.0
        %3748 = vmatpush1.msra.mxu0 %v3713
        %3749 = vmatprep.subr.mxu0 0.0
        %3750 = vmatpush1.msra.mxu0 %v3714
        %3751 = vmatprep.subr.mxu0 0.0
        %3752 = vmatpush1.msra.mxu0 %v3715
        %3753 = vmatprep.subr.mxu0 0.0
        %3754 = vmatpush1.msra.mxu0 %v3716
        %3755 = vmatprep.subr.mxu0 0.0
        %3756 = vmatpush1.msra.mxu0 %v3717
        %3757 = vmatprep.subr.mxu0 0.0
        %3758 = vmatpush1.msra.mxu0 %v3718
        %3759 = vmatprep.subr.mxu0 0.0
        %3760 = vmatpush1.msra.mxu0 %v3719
        %3761 = vmatprep.subr.mxu0 0.0
        %3762 = vmatpush1.msra.mxu0 %v3720
        %3763 = vmatprep.subr.mxu0 0.0
        %3764 = vmatpush1.msra.mxu0 %v3721
        %3765 = vmatprep.subr.mxu0 0.0
        %3766 = vmatpush1.msra.mxu0 %v3722
        %3767 = vmatprep.subr.mxu0 0.0
        %3768 = vmatpush1.msra.mxu0 0.0
        %3769 = vmatprep.subr.mxu0 0.0
        %3770 = vmatpush1.msra.mxu0 0.0
        %3771 = vmatprep.subr.mxu0 0.0
        %3772 = vmatpush1.msra.mxu0 0.0
        %3773 = vmatprep.subr.mxu0 0.0
        %3774 = vmatpush1.msra.mxu0 0.0
        %3775 = vmatprep.subr.mxu0 0.0
        %3776 = vmatpush1.msra.mxu0 0.0
        %3777 = vmatprep.subr.mxu0 0.0
        %3778 = vmatpush1.msra.mxu0 0.0
        %3779 = vmatprep.subr.mxu0 0.0
        %3780 = vmatpush1.msra.mxu0 0.0
        %3781 = vmatprep.subr.mxu0 0.0
        %3782 = vmatpush1.msra.mxu0 0.0
        %3783 = vmatprep.subr.mxu0 0.0
        %3784 = vmatpush1.msra.mxu0 0.0
        %3785 = vmatprep.subr.mxu0 0.0
        %3786 = vmatpush1.msra.mxu0 0.0
        %3787 = vmatprep.subr.mxu0 0.0
        %3788 = vmatpush1.msra.mxu0 0.0
        %3789 = vmatprep.subr.mxu0 0.0
        %3790 = vmatpush1.msra.mxu0 0.0
        %3791 = vmatprep.subr.mxu0 0.0
        %3792 = vmatpush1.msra.mxu0 0.0
        %3793 = vmatprep.subr.mxu0 0.0
        %3794 = vmatpush1.msra.mxu0 0.0
        %3795 = vmatprep.subr.mxu0 0.0
        %3796 = vmatpush1.msra.mxu0 0.0
        %3797 = vmatprep.subr.mxu0 0.0
        %3798 = vmatpush1.msra.mxu0 0.0
        %3799 = vmatprep.subr.mxu0 0.0
        %3800 = vmatpush1.msra.mxu0 0.0
        %3801 = vmatprep.subr.mxu0 0.0
        %3802 = vmatpush1.msra.mxu0 0.0
        %3803 = vmatprep.subr.mxu0 0.0
        %3804 = vmatpush1.msra.mxu0 0.0
        %3805 = vmatprep.subr.mxu0 0.0
        %3806 = vmatpush1.msra.mxu0 0.0
        %3807 = vmatprep.mubr.f32.mxu0 0.0
        %3808 = vmatmul.mubr.f32.gmra.mrb[0].mxu0 %v3739
        %v3809 = vpop.f32.mrb[0].mxu0
        %v3810 = vadd.f32 %v3729, %v3809
        %v3811 = vpop.f32.mrb[0].mxu0
        %3812 = vmatprep.mubr.f32.mxu0 0.0
        %3813 = vmatmul.mubr.f32.gmra.mrb[0].mxu0 %v3741
        %v3814 = vpop.f32.mrb[0].mxu0
        %v3815 = vadd.f32 %v3729, %v3814
        %v3816 = vpop.f32.mrb[0].mxu0
        %3817 = vdwg.mxu0
        %v3818 = vmax.f32 %v3810, 0.0
        %v3819 = vmax.f32 %v3815, 0.0
        %v3820 = vmul.f32 %v3818, %v459
        %v3821 = vmul.f32 %v3819, %v460
        %v3824 = vrot.slane %v3820, 1
        %v3825 = vrot.slane %v3821, 1
        %v3826 = vsel %vm1999, %v3824, %v3825
        %3827 = vrot.lane.b32.xlu0 %v3824, 64
        %v3828 = vpop.permute.xlu0 %3827
        %3829 = vrot.lane.b32.xlu0 %v3826, 64
        %v3830 = vpop.permute.xlu0 %3829
        %3831 = vrot.lane.b32.xlu0 %v3825, 64
        %v3832 = vpop.permute.xlu0 %3831
        %v3836 = vrot.slane %v3820, 2
        %v3837 = vrot.slane %v3821, 2
        %v3838 = vsel %vm2013, %v3836, %v3837
        %v3839 = vsel %vm2013, %v3837, %v2017
        %v3840 = vsel %vm2031, 0.0, %v3828
        %v3841 = vsel %vm2031, %v3820, %v3830
        %v3842 = vsel %vm2031, %v3821, %v3832
        %s3843 = scalar_lea.vmem %s10, 192
        %v3844 = vld [vmem:[%s3843] sm:$0xff]
        %v3845 = vld [vmem:[%s3843 + $0x8] sm:$0xff]
        %v3846 = vld [vmem:[%s3843 + $0x10] sm:$0xff]
        %v3847 = vld [vmem:[%s3843 + $0x18] sm:$0xff]
        %v3848 = vld [vmem:[%s3843 + $0x20] sm:$0xff]
        %v3849 = vld [vmem:[%s3843 + $0x28] sm:$0xff]
        %v3850 = vld [vmem:[%s3843 + $0x30] sm:$0xff]
        %v3851 = vld [vmem:[%s3843 + $0x38] sm:$0xff]
        %v3852 = vld [vmem:[%s3843 + $0x40] sm:$0xff]
        %v3853 = vld [vmem:[%s3843 + $0x48] sm:$0xff]
        %v3854 = vld [vmem:[%s3843 + $0x50] sm:$0xff]
        %v3855 = vld [vmem:[%s3843 + $0x58] sm:$0xff]
        %v3856 = vld [vmem:[%s3843 + $0x60] sm:$0xff]
        %v3857 = vld [vmem:[%s3843 + $0x68] sm:$0xff]
        %v3858 = vld [vmem:[%s3843 + $0x70] sm:$0xff]
        %v3859 = vld [vmem:[%s3843 + $0x78] sm:$0xff]
        %v3860 = vld [vmem:[%s3843 + $0x80] sm:$0xff]
        %v3861 = vld [vmem:[%s3843 + $0x88] sm:$0xff]
        %v3862 = vld [vmem:[%s3843 + $0x90] sm:$0xff]
        %v3863 = vld [vmem:[%s3843 + $0x98] sm:$0xff]
        %v3864 = vld [vmem:[%s3843 + $0xa0] sm:$0xff]
        %v3865 = vld [vmem:[%s3843 + $0xa8] sm:$0xff]
        %v3866 = vld [vmem:[%s3843 + $0xb0] sm:$0xff]
        %v3867 = vld [vmem:[%s3843 + $0xb8] sm:$0xff]
        %s3868 = scalar_lea.vmem %s11, 1
        %v3869 = vld [vmem:[%s3868] sm:$0x1]
        %v3871 = vlaneseq
        %v3872 = vshrl.u32 %v3871, 7
        %v3873 = vsub.s32 0, %v3872
        %v3874 = vrot.slane %v3869, %v3873
        %v3879 = vrot.slane %v3840, 7
        %v3880 = vrot.slane %v3841, 7
        %v3881 = vsel %vm761, %v3879, %v3880
        %v3882 = vrot.slane %v3836, 7
        %v3883 = vrot.slane %v3838, 7
        %v3884 = vsel %vm761, %v3882, %v3883
        %v3885 = vrot.slane %v3842, 7
        %v3886 = vsel %vm761, %v3880, %v3885
        %v3887 = vrot.slane %v3839, 7
        %v3888 = vsel %vm761, %v3883, %v3887
        %v3891 = vsel %vm2031, %v3884, 0
        %v3893 = vsel %vm2031, %v3888, 0
        %3895 = vmatprep.subr.mxu0 0.0
        %3896 = vmatpush1.msra.mxu0 %v3844
        %3897 = vmatprep.subr.mxu0 0.0
        %3898 = vmatpush1.msra.mxu0 %v3845
        %3899 = vmatprep.subr.mxu0 0.0
        %3900 = vmatpush1.msra.mxu0 %v3846
        %3901 = vmatprep.subr.mxu0 0.0
        %3902 = vmatpush1.msra.mxu0 %v3847
        %3903 = vmatprep.subr.mxu0 0.0
        %3904 = vmatpush1.msra.mxu0 %v3848
        %3905 = vmatprep.subr.mxu0 0.0
        %3906 = vmatpush1.msra.mxu0 %v3849
        %3907 = vmatprep.subr.mxu0 0.0
        %3908 = vmatpush1.msra.mxu0 %v3850
        %3909 = vmatprep.subr.mxu0 0.0
        %3910 = vmatpush1.msra.mxu0 %v3851
        %3911 = vmatprep.subr.mxu0 0.0
        %3912 = vmatpush1.msra.mxu0 %v3852
        %3913 = vmatprep.subr.mxu0 0.0
        %3914 = vmatpush1.msra.mxu0 %v3853
        %3915 = vmatprep.subr.mxu0 0.0
        %3916 = vmatpush1.msra.mxu0 %v3854
        %3917 = vmatprep.subr.mxu0 0.0
        %3918 = vmatpush1.msra.mxu0 %v3855
        %3919 = vmatprep.subr.mxu0 0.0
        %3920 = vmatpush1.msra.mxu0 %v3856
        %3921 = vmatprep.subr.mxu0 0.0
        %3922 = vmatpush1.msra.mxu0 %v3857
        %3923 = vmatprep.subr.mxu0 0.0
        %3924 = vmatpush1.msra.mxu0 %v3858
        %3925 = vmatprep.subr.mxu0 0.0
        %3926 = vmatpush1.msra.mxu0 %v3859
        %3927 = vmatprep.subr.mxu0 0.0
        %3928 = vmatpush1.msra.mxu0 %v3860
        %3929 = vmatprep.subr.mxu0 0.0
        %3930 = vmatpush1.msra.mxu0 %v3861
        %3931 = vmatprep.subr.mxu0 0.0
        %3932 = vmatpush1.msra.mxu0 %v3862
        %3933 = vmatprep.subr.mxu0 0.0
        %3934 = vmatpush1.msra.mxu0 %v3863
        %3935 = vmatprep.subr.mxu0 0.0
        %3936 = vmatpush1.msra.mxu0 %v3864
        %3937 = vmatprep.subr.mxu0 0.0
        %3938 = vmatpush1.msra.mxu0 %v3865
        %3939 = vmatprep.subr.mxu0 0.0
        %3940 = vmatpush1.msra.mxu0 %v3866
        %3941 = vmatprep.subr.mxu0 0.0
        %3942 = vmatpush1.msra.mxu0 %v3867
        %3943 = vmatprep.subr.mxu0 0.0
        %3944 = vmatpush1.msra.mxu0 0.0
        %3945 = vmatprep.subr.mxu0 0.0
        %3946 = vmatpush1.msra.mxu0 0.0
        %3947 = vmatprep.subr.mxu0 0.0
        %3948 = vmatpush1.msra.mxu0 0.0
        %3949 = vmatprep.subr.mxu0 0.0
        %3950 = vmatpush1.msra.mxu0 0.0
        %3951 = vmatprep.subr.mxu0 0.0
        %3952 = vmatpush1.msra.mxu0 0.0
        %3953 = vmatprep.subr.mxu0 0.0
        %3954 = vmatpush1.msra.mxu0 0.0
        %3955 = vmatprep.subr.mxu0 0.0
        %3956 = vmatpush1.msra.mxu0 0.0
        %3957 = vmatprep.subr.mxu0 0.0
        %3958 = vmatpush1.msra.mxu0 0.0
        %3959 = vmatprep.mubr.f32.mxu0 %v3891
        %3960 = vmatmul.mubr.f32.gmra.mrb[0].mxu0 %v3881
        %v3961 = vpop.f32.mrb[0].mxu0
        %v3962 = vadd.f32 %v3874, %v3961
        %v3963 = vpop.f32.mrb[0].mxu0
        %3964 = vmatprep.mubr.f32.mxu0 %v3893
        %3965 = vmatmul.mubr.f32.gmra.mrb[0].mxu0 %v3886
        %v3966 = vpop.f32.mrb[0].mxu0
        %v3967 = vadd.f32 %v3874, %v3966
        %v3968 = vpop.f32.mrb[0].mxu0
        %3969 = vdwg.mxu0
        %v3970 = vmul.f32 %v3962, %v459
        %v3971 = vmul.f32 %v3967, %v460
        %v3972 = vadd.f32 %v3673, %v3970
        %v3973 = vadd.f32 %v3674, %v3971
        %s3974 = scalar_lea.vmem %s7, 6
        %v3975 = vld [vmem:[%s3974] sm:$0x1]
        %s3976 = scalar_lea.vmem %s7, 7
        %v3977 = vld [vmem:[%s3976] sm:$0x1]
        %v3978 = vsel %vm668, %v3972, 0.0
        %3979 = vadd.xlane.f32.xlu0 %v3978
        %v3980 = vpop.xlane.xlu0 %3979
        %v3981 = vsel %vm668, %v3973, 0.0
        %3982 = vadd.xlane.f32.xlu0 %v3981
        %v3983 = vpop.xlane.xlu0 %3982
        %v3984 = vmul.f32 %v3980, %v1958
        %v3985 = vmul.f32 %v3983, %v1958
        %v3986 = vsub.f32 %v3972, %v3984
        %v3987 = vsub.f32 %v3973, %v3985
        %v3988 = vmul.f32 %v3986, %v3986
        %v3989 = vmul.f32 %v3987, %v3987
        %v3990 = vsel %vm668, %v3988, 0.0
        %3991 = vadd.xlane.f32.xlu0 %v3990
        %v3992 = vpop.xlane.xlu0 %3991
        %v3993 = vsel %vm668, %v3989, 0.0
        %3994 = vadd.xlane.f32.xlu0 %v3993
        %v3995 = vpop.xlane.xlu0 %3994
        %v3996 = vmul.f32 %v3992, %v1958
        %v3997 = vmul.f32 %v3995, %v1958
        %v3998 = vadd.f32 %v3996, 1e-05
        %v3999 = vadd.f32 %v3997, 1e-05
        %v4000 = vrsqrt.pop %v3998
        %v4001 = vrsqrt.pop %v3999
        %v4002 = vmul.f32 %v3986, %v4000
        %v4003 = vmul.f32 %v3987, %v4001
        %v4005 = vlaneseq
        %v4006 = vshrl.u32 %v4005, 7
        %v4007 = vsub.s32 0, %v4006
        %v4008 = vrot.slane %v3975, %v4007
        %v4010 = vmul.f32 %v4002, %v4008
        %v4011 = vmul.f32 %v4003, %v4008
        %v4013 = vlaneseq
        %v4014 = vshrl.u32 %v4013, 7
        %v4015 = vsub.s32 0, %v4014
        %v4016 = vrot.slane %v3977, %v4015
        %v4018 = vadd.f32 %v4010, %v4016
        %v4019 = vadd.f32 %v4011, %v4016
        %v4020 = vmul.f32 %v4018, %v459
        %v4021 = vmul.f32 %v4019, %v460
        %v4022 = vld [vmem:[%s12] sm:$0xff]
        %v4023 = vld [vmem:[%s12 + $0x8] sm:$0xff]
        %v4024 = vld [vmem:[%s12 + $0x10] sm:$0xff]
        %v4025 = vld [vmem:[%s12 + $0x18] sm:$0xff]
        %v4026 = vld [vmem:[%s13] sm:$0x1]
        %v4028 = vlaneseq
        %v4029 = vshrl.u32 %v4028, 7
        %v4030 = vsub.s32 0, %v4029
        %v4031 = vrot.slane %v4026, %v4030
        %v4034 = vsel %vm668, %v4020, 0
        %v4037 = vsel %vm668, %v4021, 0
        %4039 = vmatprep.subr.mxu0 0.0
        %4040 = vmatpush1.msra.mxu0 %v4022
        %4041 = vmatprep.subr.mxu0 0.0
        %4042 = vmatpush1.msra.mxu0 %v4023
        %4043 = vmatprep.subr.mxu0 0.0
        %4044 = vmatpush1.msra.mxu0 %v4024
        %4045 = vmatprep.subr.mxu0 0.0
        %4046 = vmatpush1.msra.mxu0 %v4025
        %4047 = vmatprep.subr.mxu0 0.0
        %4048 = vmatpush1.msra.mxu0 0.0
        %4049 = vmatprep.subr.mxu0 0.0
        %4050 = vmatpush1.msra.mxu0 0.0
        %4051 = vmatprep.subr.mxu0 0.0
        %4052 = vmatpush1.msra.mxu0 0.0
        %4053 = vmatprep.subr.mxu0 0.0
        %4054 = vmatpush1.msra.mxu0 0.0
        %4055 = vmatprep.subr.mxu0 0.0
        %4056 = vmatpush1.msra.mxu0 0.0
        %4057 = vmatprep.subr.mxu0 0.0
        %4058 = vmatpush1.msra.mxu0 0.0
        %4059 = vmatprep.subr.mxu0 0.0
        %4060 = vmatpush1.msra.mxu0 0.0
        %4061 = vmatprep.subr.mxu0 0.0
        %4062 = vmatpush1.msra.mxu0 0.0
        %4063 = vmatprep.subr.mxu0 0.0
        %4064 = vmatpush1.msra.mxu0 0.0
        %4065 = vmatprep.subr.mxu0 0.0
        %4066 = vmatpush1.msra.mxu0 0.0
        %4067 = vmatprep.subr.mxu0 0.0
        %4068 = vmatpush1.msra.mxu0 0.0
        %4069 = vmatprep.subr.mxu0 0.0
        %4070 = vmatpush1.msra.mxu0 0.0
        %4071 = vmatprep.subr.mxu0 0.0
        %4072 = vmatpush1.msra.mxu0 0.0
        %4073 = vmatprep.subr.mxu0 0.0
        %4074 = vmatpush1.msra.mxu0 0.0
        %4075 = vmatprep.subr.mxu0 0.0
        %4076 = vmatpush1.msra.mxu0 0.0
        %4077 = vmatprep.subr.mxu0 0.0
        %4078 = vmatpush1.msra.mxu0 0.0
        %4079 = vmatprep.subr.mxu0 0.0
        %4080 = vmatpush1.msra.mxu0 0.0
        %4081 = vmatprep.subr.mxu0 0.0
        %4082 = vmatpush1.msra.mxu0 0.0
        %4083 = vmatprep.subr.mxu0 0.0
        %4084 = vmatpush1.msra.mxu0 0.0
        %4085 = vmatprep.subr.mxu0 0.0
        %4086 = vmatpush1.msra.mxu0 0.0
        %4087 = vmatprep.subr.mxu0 0.0
        %4088 = vmatpush1.msra.mxu0 0.0
        %4089 = vmatprep.subr.mxu0 0.0
        %4090 = vmatpush1.msra.mxu0 0.0
        %4091 = vmatprep.subr.mxu0 0.0
        %4092 = vmatpush1.msra.mxu0 0.0
        %4093 = vmatprep.subr.mxu0 0.0
        %4094 = vmatpush1.msra.mxu0 0.0
        %4095 = vmatprep.subr.mxu0 0.0
        %4096 = vmatpush1.msra.mxu0 0.0
        %4097 = vmatprep.subr.mxu0 0.0
        %4098 = vmatpush1.msra.mxu0 0.0
        %4099 = vmatprep.subr.mxu0 0.0
        %4100 = vmatpush1.msra.mxu0 0.0
        %4101 = vmatprep.subr.mxu0 0.0
        %4102 = vmatpush1.msra.mxu0 0.0
        %4103 = vmatprep.mubr.f32.mxu0 0.0
        %4104 = vmatmul.mubr.f32.gmra.mrb[0].mxu0 %v4034
        %v4105 = vpop.f32.mrb[0].mxu0
        %v4106 = vadd.f32 %v4031, %v4105
        %v4107 = vpop.f32.mrb[0].mxu0
        %4108 = vmatprep.mubr.f32.mxu0 0.0
        %4109 = vmatmul.mubr.f32.gmra.mrb[0].mxu0 %v4037
        %v4110 = vpop.f32.mrb[0].mxu0
        %v4111 = vadd.f32 %v4031, %v4110
        %v4112 = vpop.f32.mrb[0].mxu0
        %4113 = vdwg.mxu0
        %v4114 = vmul.f32 %v4106, %v459
        %v4115 = vmul.f32 %v4111, %v460
        %4118 = vrot.lane.b32.xlu0 %v4114, 32
        %v4119 = vpop.permute.xlu0 %4118
        %4120 = vrot.lane.b32.xlu0 %v4115, 32
        %v4121 = vpop.permute.xlu0 %4120
        %v4124 = vsel %vm668, %v4020, %v4119
        %v4125 = vsel %vm668, %v4021, %v4121
        %4126 = vst.msk [vmem:[%s440] sm:$0xff] %vm2031, %v4124
        %4127 = vst.msk [vmem:[%s440 + $0x8] sm:$0xff] %vm2031, %v4125
        %s4128 = sand.u32 %s320, 1
        %s4129 = scalar_lea.sflag [#allocation5], %s4128
        %s4130 = sand.u32 %s320, 1
        %s4131 = smul.addr %s4130, 16
        %s4132 = scalar_lea.vmem [#allocation4], %s4131
        // Predicated region
        $region73: #{tpu_custom_call.1} parent=71 // pred_check
          %p4133 = pneg %p330
        $region74: #{tpu_custom_call.1} parent=71 // pred_check_branch
          %4135 = sbr.rel (%p4133) target = $region76
        $region75: #{tpu_custom_call.1} parent=71 // pred_region
          %s4137 = ssub.s32 256, 256
          %4138 = vsyncadd %s4129, %s4137
          %s4139 = smul.addr %s34, 2
          %s4140 = smul.addr %s4139, 128
          %s4141 = scalar_lea.hbm %s14, %s4140
          %s4142 = sshll.u32 %s4132, 4
          %s4143 = int_to_ptr.vmem [resolvable:$true] %s4142
          %4148 = dma.vmem_to_hbm [thread:$0]  %s4143, 256, %s4141, %s4129, 128, 128, 8
        $region76: #{tpu_custom_call.1} parent=71 // pred_fallthru
          _
      $region72: #{tpu_custom_call.1} parent=5 // pred_fallthru
        _
      %p4149 = scmp.le.s32.totalorder 2, %s29
      // Predicated region
      $region77: #{tpu_custom_call.1} parent=5 // pred_check
        %p4150 = pneg %p4149
      $region78: #{tpu_custom_call.1} parent=5 // pred_check_branch
        %4152 = sbr.rel (%p4150) target = $region80
      $region79: #{tpu_custom_call.1} parent=5 // pred_region
        %s4153 = ssub.s32 %s29, 2
        // Predicated region
        $region81: #{tpu_custom_call.1} parent=79 // pred_check
          %p4154 = pneg %p336
        $region82: #{tpu_custom_call.1} parent=79 // pred_check_branch
          %4156 = sbr.rel (%p4154) target = $region84
        $region83: #{tpu_custom_call.1} parent=79 // pred_region
          %s4157 = sand.u32 %s321, 1
          %s4158 = scalar_lea.sflag [#allocation5], %s4157
          %s4159 = sand.u32 %s321, 1
          %s4160 = smul.addr %s4159, 16
          %s4161 = scalar_lea.vmem [#allocation4], %s4160
          %4162 = dma.done %s4158, 256
        $region84: #{tpu_custom_call.1} parent=79 // pred_fallthru
          _
      $region80: #{tpu_custom_call.1} parent=5 // pred_fallthru
        _
    $region6: #{tpu_custom_call.1} parent=1 // loop_footer
      %s33 = sadd.s32 1, %s29
    $region7: #{tpu_custom_call.1} parent=1 // loop_footer_branch
      %28 = sbr.rel target = $region3
    $region8: #{tpu_custom_call.1} parent=1 // loop_exit
      _
    %4163 = vsyncpa [#allocation5], 1
    %s4164 = scalar_lea.sflag [#allocation5], 1
    %4165 = vsyncpa %s4164, 1

</llo_original>
